<compile_context>
chip_gen: v7x
topology: tpu7x:2x2x1
jax: 0.10.0
libtpu: 0.0.40
codegen_flags: <defaults>
</compile_context>

<pallas_src>
import numpy as np
import jax
import jax.numpy as jnp
from jax.experimental import pallas as pl
from jax.experimental.pallas import tpu as pltpu

LANE = 128
EPS = 1e-5
# Raw (pre-BN) intermediates y1/y2.  float32 keeps bit-tight agreement with the f32
# reference; flip to jnp.bfloat16 on v6e/v7x to halve their HBM traffic (BN statistics are
# always accumulated in f32 inside the kernels, math stays f32 for v5e's VPU).
INTERMEDIATE_DTYPE = jnp.float32
VMEM_LIMIT = 64 * 1024 * 1024  # explicit scoped-VMEM budget (fits v7x's 64 MiB physical)


def _round_up(x, m):
    return (x + m - 1) // m * m


def _pad_last(a, target):
    pad = target - a.shape[-1]
    if pad == 0:
        return a
    return jnp.pad(a, [(0, 0)] * (a.ndim - 1) + [(0, pad)])


# ---------------------------------------------------------------- kernels ----

def _pool_conv_kernel(x_ref, w_ref, y_ref, sum_ref, ssq_ref, pad_ref):
    # x_ref  : (1, Hp, 2, Wp, 2*Ci) one image; 2x2-pool phases exposed by a *contiguous*
    #          (free) reshape in the wrapper -> all phase reads are aligned, no strides.
    # w_ref  : (9, Ci, Co) conv1 weights, resident across the grid (constant index_map).
    # y_ref  : (1, Hp, Wp, Co) raw conv output (pre-BN).
    # sum_ref/ssq_ref : (1, 1, Co) per-image channel sum / sum-of-squares (f32).
    # pad_ref: VMEM scratch (Hp+2, Wp+2, Ci) zero-padded pooled activation (halo buffer).
    Hp, Wp = y_ref.shape[1], y_ref.shape[2]
    Ci = pad_ref.shape[2]
    Co = y_ref.shape[3]

    # Fused 2x2 max-pool on the VPU (outer-dim indexing + 128-aligned lane slices only).
    r0 = x_ref[0, :, 0, :, :]                      # (Hp, Wp, 2*Ci)  rows 0,2,4,...
    r1 = x_ref[0, :, 1, :, :]                      # rows 1,3,5,...
    m = jnp.maximum(r0, r1)
    pool = jnp.maximum(m[:, :, :Ci], m[:, :, Ci:])  # (Hp, Wp, Ci)

    # Rebuild the zero-padded halo buffer every step (safe under any megacore grid split).
    pad_ref[...] = jnp.zeros_like(pad_ref)
    pad_ref[1:Hp + 1, 1:Wp + 1, :] = pool

    # 3x3 conv (padding=1) as 9 shifted MXU matmuls accumulated in f32 — no im2col in HBM.
    acc = jnp.zeros((Hp * Wp, Co), jnp.float32)
    for k in range(9):
        dy, dx = k // 3, k % 3
        win = pad_ref[dy:dy + Hp, dx:dx + Wp, :].reshape(Hp * Wp, Ci)
        acc = acc + jnp.dot(win, w_ref[k], preferred_element_type=jnp.float32)

    y_ref[...] = acc.reshape(1, Hp, Wp, Co).astype(y_ref.dtype)
    sum_ref[...] = jnp.sum(acc, axis=0, keepdims=True).reshape(1, 1, Co)
    ssq_ref[...] = jnp.sum(acc * acc, axis=0, keepdims=True).reshape(1, 1, Co)


def _bn_relu_conv_kernel(y1_ref, s_ref, t_ref, w_ref, y2_ref, sum_ref, ssq_ref, pad_ref):
    # Applies BN1 (folded per-channel scale/shift) + ReLU to the raw conv1 output and runs
    # conv2 on it in the same kernel — the normalized activation never round-trips HBM.
    Hp, Wp = y2_ref.shape[1], y2_ref.shape[2]
    C1 = pad_ref.shape[2]
    C2 = y2_ref.shape[3]

    scale = s_ref[...].reshape(1, 1, C1)
    shift = t_ref[...].reshape(1, 1, C1)
    h = jnp.maximum(y1_ref[0].astype(jnp.float32) * scale + shift, 0.0)   # (Hp, Wp, C1)

    pad_ref[...] = jnp.zeros_like(pad_ref)
    pad_ref[1:Hp + 1, 1:Wp + 1, :] = h

    acc = jnp.zeros((Hp * Wp, C2), jnp.float32)
    for k in range(9):
        dy, dx = k // 3, k % 3
        win = pad_ref[dy:dy + Hp, dx:dx + Wp, :].reshape(Hp * Wp, C1)
        acc = acc + jnp.dot(win, w_ref[k], preferred_element_type=jnp.float32)

    y2_ref[...] = acc.reshape(1, Hp, Wp, C2).astype(y2_ref.dtype)
    sum_ref[...] = jnp.sum(acc, axis=0, keepdims=True).reshape(1, 1, C2)
    ssq_ref[...] = jnp.sum(acc * acc, axis=0, keepdims=True).reshape(1, 1, C2)


def _bn_relu_kernel(y_ref, s_ref, t_ref, o_ref):
    # Final BN2 + ReLU over a lane-dense (TM, C) row tile.
    y = y_ref[...].astype(jnp.float32)
    o_ref[...] = jnp.maximum(y * s_ref[...] + t_ref[...], 0.0).astype(o_ref.dtype)


# ------------------------------------------------------------- pallas glue ----

def _conv_compiler_params():
    return pltpu.CompilerParams(dimension_semantics=("parallel",),
                                vmem_limit_bytes=VMEM_LIMIT)


def _pool_conv_call(x5, w, n, hp, wp, ci, co):
    flops = 2 * n * hp * wp * 9 * ci * co
    bytes_accessed = int(x5.size * 4 + w.size * 4
                         + n * hp * wp * co * jnp.dtype(INTERMEDIATE_DTYPE).itemsize)
    return pl.pallas_call(
        _pool_conv_kernel,
        out_shape=(
            jax.ShapeDtypeStruct((n, hp, wp, co), INTERMEDIATE_DTYPE),
            jax.ShapeDtypeStruct((n, 1, co), jnp.float32),
            jax.ShapeDtypeStruct((n, 1, co), jnp.float32),
        ),
        grid=(n,),
        in_specs=[
            pl.BlockSpec((1, hp, 2, wp, 2 * ci), lambda i: (i, 0, 0, 0, 0)),
            pl.BlockSpec((9, ci, co), lambda i: (0, 0, 0)),      # resident weights
        ],
        out_specs=(
            pl.BlockSpec((1, hp, wp, co), lambda i: (i, 0, 0, 0)),
            pl.BlockSpec((1, 1, co), lambda i: (i, 0, 0)),
            pl.BlockSpec((1, 1, co), lambda i: (i, 0, 0)),
        ),
        scratch_shapes=[pltpu.VMEM((hp + 2, wp + 2, ci), jnp.float32)],
        compiler_params=_conv_compiler_params(),
        cost_estimate=pl.CostEstimate(flops=flops, transcendentals=0,
                                      bytes_accessed=bytes_accessed),
    )(x5, w)


def _bn_relu_conv_call(y1, scale, shift, w, n, hp, wp, c1, c2):
    flops = 2 * n * hp * wp * 9 * c1 * c2
    bytes_accessed = int(y1.size * jnp.dtype(y1.dtype).itemsize + w.size * 4
                         + n * hp * wp * c2 * jnp.dtype(INTERMEDIATE_DTYPE).itemsize)
    return pl.pallas_call(
        _bn_relu_conv_kernel,
        out_shape=(
            jax.ShapeDtypeStruct((n, hp, wp, c2), INTERMEDIATE_DTYPE),
            jax.ShapeDtypeStruct((n, 1, c2), jnp.float32),
            jax.ShapeDtypeStruct((n, 1, c2), jnp.float32),
        ),
        grid=(n,),
        in_specs=[
            pl.BlockSpec((1, hp, wp, c1), lambda i: (i, 0, 0, 0)),
            pl.BlockSpec((1, c1), lambda i: (0, 0)),
            pl.BlockSpec((1, c1), lambda i: (0, 0)),
            pl.BlockSpec((9, c1, c2), lambda i: (0, 0, 0)),      # resident weights
        ],
        out_specs=(
            pl.BlockSpec((1, hp, wp, c2), lambda i: (i, 0, 0, 0)),
            pl.BlockSpec((1, 1, c2), lambda i: (i, 0, 0)),
            pl.BlockSpec((1, 1, c2), lambda i: (i, 0, 0)),
        ),
        scratch_shapes=[pltpu.VMEM((hp + 2, wp + 2, c1), jnp.float32)],
        compiler_params=_conv_compiler_params(),
        cost_estimate=pl.CostEstimate(flops=flops, transcendentals=0,
                                      bytes_accessed=bytes_accessed),
    )(y1, scale, shift, w)


def _pick_row_tile(m):
    for t in (1024, 512, 256, 128, 64, 32, 16, 8):
        if m % t == 0:
            return t
    return m


def _bn_relu_call(y_flat, scale, shift):
    M, C = y_flat.shape
    tm = _pick_row_tile(M)
    bytes_accessed = int(y_flat.size * jnp.dtype(y_flat.dtype).itemsize + M * C * 4)
    return pl.pallas_call(
        _bn_relu_kernel,
        out_shape=jax.ShapeDtypeStruct((M, C), jnp.float32),
        grid=(M // tm,),
        in_specs=[
            pl.BlockSpec((tm, C), lambda i: (i, 0)),
            pl.BlockSpec((1, C), lambda i: (0, 0)),
            pl.BlockSpec((1, C), lambda i: (0, 0)),
        ],
        out_specs=pl.BlockSpec((tm, C), lambda i: (i, 0)),
        compiler_params=pltpu.CompilerParams(dimension_semantics=("parallel",),
                                             vmem_limit_bytes=VMEM_LIMIT),
        cost_estimate=pl.CostEstimate(flops=2 * M * C, transcendentals=0,
                                      bytes_accessed=bytes_accessed),
    )(y_flat, scale, shift)


def _bn_affine(psum, pssq, count, gamma, beta):
    # Tiny (C,)-sized wrapper math: fold batch mean/var + gamma/beta into scale/shift.
    s = jnp.sum(psum, axis=(0, 1))
    ss = jnp.sum(pssq, axis=(0, 1))
    mean = s / count
    var = jnp.maximum(ss / count - mean * mean, 0.0)
    inv = jax.lax.rsqrt(var + EPS)
    scale = gamma * inv
    shift = beta - mean * scale
    return scale.reshape(1, -1), shift.reshape(1, -1)


def prepare_params(params, cin, cout):
    """One-time layout prep (hoisted out of the forward): transpose weights to
    (9, Cin_pad, Cout_pad), pad channel dims to multiples of 128, pad gamma/beta.
    Conv biases are intentionally dropped (train-mode BN cancels them exactly)."""
    cip, cop = _round_up(cin, LANE), _round_up(cout, LANE)

    def prep_w(w, ci, cip_):
        w = jnp.transpose(w, (2, 3, 1, 0))                      # (3,3,ci,co)
        w = jnp.pad(w, ((0, 0), (0, 0), (0, cip_ - ci), (0, cop - w.shape[3])))
        return w.reshape(9, cip_, cop).astype(jnp.float32)

    return dict(
        w1=prep_w(params["w1"], cin, cip),
        w2=prep_w(params["w2"], cout, cop),
        g1=_pad_last(params["g1"], cop), be1=_pad_last(params["be1"], cop),
        g2=_pad_last(params["g2"], cop), be2=_pad_last(params["be2"], cop),
    )


def down_forward(x_nchw, prep, cout):
    N, Cin, H, W = x_nchw.shape
    assert H % 2 == 0 and W % 2 == 0, "MaxPool2d(2) path assumes even H, W"
    Cip = prep["w1"].shape[1]
    Cop = prep["w1"].shape[2]
    Hp, Wp = H // 2, W // 2
    M = N * Hp * Wp

    # NCHW -> NHWC, zero-pad channels to a lane-dense multiple of 128, and expose the 2x2
    # pool phases via a *contiguous* (free) reshape — no per-phase copies in HBM.
    x = jnp.transpose(x_nchw, (0, 2, 3, 1)).astype(jnp.float32)
    x = _pad_last(x, Cip)
    x5 = x.reshape(N, Hp, 2, Wp, 2 * Cip)

    # Block 1: fused [maxpool2x2 -> conv3x3]; raw output + per-image BN moments.
    y1, s1, ss1 = _pool_conv_call(x5, prep["w1"], N, Hp, Wp, Cip, Cop)
    scale1, shift1 = _bn_affine(s1, ss1, M, prep["g1"], prep["be1"])

    # Block 2: fused [BN1 + ReLU -> conv3x3]; raw output + per-image BN moments.
    y2, s2, ss2 = _bn_relu_conv_call(y1, scale1, shift1, prep["w2"], N, Hp, Wp, Cop, Cop)
    scale2, shift2 = _bn_affine(s2, ss2, M, prep["g2"], prep["be2"])

    # Final BN2 + ReLU over lane-dense row tiles, then strip channel padding.
    out = _bn_relu_call(y2.reshape(M, Cop), scale2, shift2)
    out = out.reshape(N, Hp, Wp, Cop)[:, :, :, :cout]
    return jnp.transpose(out, (0, 3, 1, 2))                     # NHWC -> NCHW

    # TODO(synk): for very large spatial extents, additionally tile rows within an image
    # (halo rows via a manual DMA) instead of one whole image per grid step.


# -------------------------------------------------------------- params/ref ----

def init_params(key, cin, cout):
    k1, k2 = jax.random.split(key)

    def conv_init(k, co, ci):
        fan_in = ci * 9
        bound = 1.0 / np.sqrt(fan_in)
        kw, kb = jax.random.split(k)
        w = jax.random.uniform(kw, (co, ci, 3, 3), jnp.float32, -bound, bound)
        b = jax.random.uniform(kb, (co,), jnp.float32, -bound, bound)
        return w, b

    w1, b1 = conv_init(k1, cout, cin)
    w2, b2 = conv_init(k2, cout, cout)
    return dict(
        w1=w1, b1=b1, g1=jnp.ones((cout,), jnp.float32), be1=jnp.zeros((cout,), jnp.float32),
        w2=w2, b2=b2, g2=jnp.ones((cout,), jnp.float32), be2=jnp.zeros((cout,), jnp.float32),
    )


def reference(x_nchw, params):
    # Pure-JAX reference mirroring PyTorch Down.forward (training-mode BN, conv bias kept).
    N, C, H, W = x_nchw.shape
    x = x_nchw.reshape(N, C, H // 2, 2, W // 2, 2).max(axis=(3, 5))

    def block(x, w, b, g, beta):
        y = jax.lax.conv_general_dilated(x, w, (1, 1), ((1, 1), (1, 1)),
                                         dimension_numbers=("NCHW", "OIHW", "NCHW"))
        y = y + b[None, :, None, None]
        mean = y.mean(axis=(0, 2, 3), keepdims=True)
        var = ((y - mean) ** 2).mean(axis=(0, 2, 3), keepdims=True)
        y = (y - mean) * jax.lax.rsqrt(var + 1e-5)
        y = y * g[None, :, None, None] + beta[None, :, None, None]
        return jnp.maximum(y, 0.0)

    x = block(x, params["w1"], params["b1"], params["g1"], params["be1"])
    x = block(x, params["w2"], params["b2"], params["g2"], params["be2"])
    return x


if __name__ == "__main__":
    key = jax.random.PRNGKey(0)
    kx, kp = jax.random.split(key)
    N, Cin, H, W = 2, 4, 16, 16
    Cout = 8

    x = jax.random.normal(kx, (N, Cin, H, W), jnp.float32)
    params = init_params(kp, Cin, Cout)
    prep = prepare_params(params, Cin, Cout)   # one-time weight/layout prep (hoisted)

    fwd = jax.jit(down_forward, static_argnums=(2,))
    out = jax.block_until_ready(fwd(x, prep, Cout))
    assert out.shape == (N, Cout, H // 2, W // 2)

    ref = reference(x, params)
    np.testing.assert_allclose(np.asarray(out), np.asarray(ref), rtol=5e-4, atol=5e-4)
    print("KERNEL_OK")
</pallas_src>

<mosaic_0001>
module attributes {stable_mosaic.version = 11 : i64} {
  func.func @_pool_conv_kernel(%arg0: i32, %arg1: memref<1x8x2x8x256xf32, #tpu.memory_space<vmem>>, %arg2: memref<9x128x128xf32, #tpu.memory_space<vmem>>, %arg3: memref<1x8x8x128xf32, #tpu.memory_space<vmem>>, %arg4: memref<1x1x128xf32, #tpu.memory_space<vmem>>, %arg5: memref<1x1x128xf32, #tpu.memory_space<vmem>>, %arg6: memref<10x10x128xf32, #tpu.memory_space<vmem>>) attributes {dimension_semantics = [#tpu.dimension_semantics<parallel>], iteration_bounds = array<i64: 2>, scalar_prefetch = 0 : i64, scratch_operands = 1 : i64, tpu.core_type = #tpu.core_type<tc>, window_params = [{transform_indices = @transform_0, window_bounds = array<i64: 1, 8, 2, 8, 256>}, {pipeline_mode = #tpu.pipeline_mode<synchronous>, transform_indices = @transform_1, window_bounds = array<i64: 9, 128, 128>}, {transform_indices = @transform_2, window_bounds = array<i64: 1, 8, 8, 128>}, {transform_indices = @transform_3, window_bounds = array<i64: 1, 1, 128>}, {transform_indices = @transform_4, window_bounds = array<i64: 1, 1, 128>}]} {
    %c0 = arith.constant 0 : index
    %c0_0 = arith.constant 0 : index
    %c0_1 = arith.constant 0 : index
    %c0_2 = arith.constant 0 : index
    %c0_3 = arith.constant 0 : index
    %0 = vector.load %arg1[%c0, %c0_0, %c0_1, %c0_2, %c0_3] : memref<1x8x2x8x256xf32, #tpu.memory_space<vmem>>, vector<1x8x1x8x256xf32>
    %1 = vector.shape_cast %0 : vector<1x8x1x8x256xf32> to vector<8x8x256xf32>
    %c0_4 = arith.constant 0 : index
    %c0_5 = arith.constant 0 : index
    %c1 = arith.constant 1 : index
    %c0_6 = arith.constant 0 : index
    %c0_7 = arith.constant 0 : index
    %2 = vector.load %arg1[%c0_4, %c0_5, %c1, %c0_6, %c0_7] : memref<1x8x2x8x256xf32, #tpu.memory_space<vmem>>, vector<1x8x1x8x256xf32>
    %3 = vector.shape_cast %2 : vector<1x8x1x8x256xf32> to vector<8x8x256xf32>
    %4 = arith.maximumf %1, %3 : vector<8x8x256xf32>
    %5 = vector.extract_strided_slice %4 {offsets = [0, 0, 0], sizes = [8, 8, 128], strides = [1, 1, 1]} : vector<8x8x256xf32> to vector<8x8x128xf32>
    %6 = vector.extract_strided_slice %4 {offsets = [0, 0, 128], sizes = [8, 8, 128], strides = [1, 1, 1]} : vector<8x8x256xf32> to vector<8x8x128xf32>
    %7 = arith.maximumf %5, %6 : vector<8x8x128xf32>
    %cst = arith.constant 0.000000e+00 : f32
    %8 = vector.broadcast %cst : f32 to vector<10x10x128xf32>
    %c0_8 = arith.constant 0 : index
    %c0_9 = arith.constant 0 : index
    %c0_10 = arith.constant 0 : index
    %9 = vector.load %arg6[%c0_8, %c0_9, %c0_10] : memref<10x10x128xf32, #tpu.memory_space<vmem>>, vector<10x10x128xf32>
    tpu.vector_store %arg6[%c0_8, %c0_9, %c0_10], %8 {strides = array<i32>} : memref<10x10x128xf32, #tpu.memory_space<vmem>>, vector<10x10x128xf32>,
    %c1_11 = arith.constant 1 : index
    %c1_12 = arith.constant 1 : index
    %c0_13 = arith.constant 0 : index
    %10 = vector.load %arg6[%c1_11, %c1_12, %c0_13] : memref<10x10x128xf32, #tpu.memory_space<vmem>>, vector<8x8x128xf32>
    tpu.vector_store %arg6[%c1_11, %c1_12, %c0_13], %7 {strides = array<i32>} : memref<10x10x128xf32, #tpu.memory_space<vmem>>, vector<8x8x128xf32>,
    %cst_14 = arith.constant 0.000000e+00 : f32
    %11 = vector.broadcast %cst_14 : f32 to vector<64x128xf32>
    %c0_15 = arith.constant 0 : index
    %c0_16 = arith.constant 0 : index
    %c0_17 = arith.constant 0 : index
    %12 = vector.load %arg6[%c0_15, %c0_16, %c0_17] : memref<10x10x128xf32, #tpu.memory_space<vmem>>, vector<8x8x128xf32>
    %13 = vector.shape_cast %12 : vector<8x8x128xf32> to vector<64x128xf32>
    %c0_18 = arith.constant 0 : index
    %c0_19 = arith.constant 0 : index
    %c0_20 = arith.constant 0 : index
    %14 = vector.load %arg2[%c0_18, %c0_19, %c0_20] : memref<9x128x128xf32, #tpu.memory_space<vmem>>, vector<1x128x128xf32>
    %15 = vector.shape_cast %14 : vector<1x128x128xf32> to vector<128x128xf32>
    %cst_21 = arith.constant dense<0.000000e+00> : vector<64x128xf32>
    %16 = tpu.matmul %13, %15, %cst_21 {dimension_numbers = #tpu.dot_dimension_numbers<[1], [0], [0], [1], [0, 0, 1, 1], [], []>} : vector<64x128xf32>, vector<128x128xf32>, vector<64x128xf32> -> vector<64x128xf32>
    %17 = arith.addf %11, %16 : vector<64x128xf32>
    %c0_22 = arith.constant 0 : index
    %c1_23 = arith.constant 1 : index
    %c0_24 = arith.constant 0 : index
    %18 = vector.load %arg6[%c0_22, %c1_23, %c0_24] : memref<10x10x128xf32, #tpu.memory_space<vmem>>, vector<8x8x128xf32>
    %19 = vector.shape_cast %18 : vector<8x8x128xf32> to vector<64x128xf32>
    %c1_25 = arith.constant 1 : index
    %c0_26 = arith.constant 0 : index
    %c0_27 = arith.constant 0 : index
    %20 = vector.load %arg2[%c1_25, %c0_26, %c0_27] : memref<9x128x128xf32, #tpu.memory_space<vmem>>, vector<1x128x128xf32>
    %21 = vector.shape_cast %20 : vector<1x128x128xf32> to vector<128x128xf32>
    %cst_28 = arith.constant dense<0.000000e+00> : vector<64x128xf32>
    %22 = tpu.matmul %19, %21, %cst_28 {dimension_numbers = #tpu.dot_dimension_numbers<[1], [0], [0], [1], [0, 0, 1, 1], [], []>} : vector<64x128xf32>, vector<128x128xf32>, vector<64x128xf32> -> vector<64x128xf32>
    %23 = arith.addf %17, %22 : vector<64x128xf32>
    %c0_29 = arith.constant 0 : index
    %c2 = arith.constant 2 : index
    %c0_30 = arith.constant 0 : index
    %24 = vector.load %arg6[%c0_29, %c2, %c0_30] : memref<10x10x128xf32, #tpu.memory_space<vmem>>, vector<8x8x128xf32>
    %25 = vector.shape_cast %24 : vector<8x8x128xf32> to vector<64x128xf32>
    %c2_31 = arith.constant 2 : index
    %c0_32 = arith.constant 0 : index
    %c0_33 = arith.constant 0 : index
    %26 = vector.load %arg2[%c2_31, %c0_32, %c0_33] : memref<9x128x128xf32, #tpu.memory_space<vmem>>, vector<1x128x128xf32>
    %27 = vector.shape_cast %26 : vector<1x128x128xf32> to vector<128x128xf32>
    %cst_34 = arith.constant dense<0.000000e+00> : vector<64x128xf32>
    %28 = tpu.matmul %25, %27, %cst_34 {dimension_numbers = #tpu.dot_dimension_numbers<[1], [0], [0], [1], [0, 0, 1, 1], [], []>} : vector<64x128xf32>, vector<128x128xf32>, vector<64x128xf32> -> vector<64x128xf32>
    %29 = arith.addf %23, %28 : vector<64x128xf32>
    %c1_35 = arith.constant 1 : index
    %c0_36 = arith.constant 0 : index
    %c0_37 = arith.constant 0 : index
    %30 = vector.load %arg6[%c1_35, %c0_36, %c0_37] : memref<10x10x128xf32, #tpu.memory_space<vmem>>, vector<8x8x128xf32>
    %31 = vector.shape_cast %30 : vector<8x8x128xf32> to vector<64x128xf32>
    %c3 = arith.constant 3 : index
    %c0_38 = arith.constant 0 : index
    %c0_39 = arith.constant 0 : index
    %32 = vector.load %arg2[%c3, %c0_38, %c0_39] : memref<9x128x128xf32, #tpu.memory_space<vmem>>, vector<1x128x128xf32>
    %33 = vector.shape_cast %32 : vector<1x128x128xf32> to vector<128x128xf32>
    %cst_40 = arith.constant dense<0.000000e+00> : vector<64x128xf32>
    %34 = tpu.matmul %31, %33, %cst_40 {dimension_numbers = #tpu.dot_dimension_numbers<[1], [0], [0], [1], [0, 0, 1, 1], [], []>} : vector<64x128xf32>, vector<128x128xf32>, vector<64x128xf32> -> vector<64x128xf32>
    %35 = arith.addf %29, %34 : vector<64x128xf32>
    %c1_41 = arith.constant 1 : index
    %c1_42 = arith.constant 1 : index
    %c0_43 = arith.constant 0 : index
    %36 = vector.load %arg6[%c1_41, %c1_42, %c0_43] : memref<10x10x128xf32, #tpu.memory_space<vmem>>, vector<8x8x128xf32>
    %37 = vector.shape_cast %36 : vector<8x8x128xf32> to vector<64x128xf32>
    %c4 = arith.constant 4 : index
    %c0_44 = arith.constant 0 : index
    %c0_45 = arith.constant 0 : index
    %38 = vector.load %arg2[%c4, %c0_44, %c0_45] : memref<9x128x128xf32, #tpu.memory_space<vmem>>, vector<1x128x128xf32>
    %39 = vector.shape_cast %38 : vector<1x128x128xf32> to vector<128x128xf32>
    %cst_46 = arith.constant dense<0.000000e+00> : vector<64x128xf32>
    %40 = tpu.matmul %37, %39, %cst_46 {dimension_numbers = #tpu.dot_dimension_numbers<[1], [0], [0], [1], [0, 0, 1, 1], [], []>} : vector<64x128xf32>, vector<128x128xf32>, vector<64x128xf32> -> vector<64x128xf32>
    %41 = arith.addf %35, %40 : vector<64x128xf32>
    %c1_47 = arith.constant 1 : index
    %c2_48 = arith.constant 2 : index
    %c0_49 = arith.constant 0 : index
    %42 = vector.load %arg6[%c1_47, %c2_48, %c0_49] : memref<10x10x128xf32, #tpu.memory_space<vmem>>, vector<8x8x128xf32>
    %43 = vector.shape_cast %42 : vector<8x8x128xf32> to vector<64x128xf32>
    %c5 = arith.constant 5 : index
    %c0_50 = arith.constant 0 : index
    %c0_51 = arith.constant 0 : index
    %44 = vector.load %arg2[%c5, %c0_50, %c0_51] : memref<9x128x128xf32, #tpu.memory_space<vmem>>, vector<1x128x128xf32>
    %45 = vector.shape_cast %44 : vector<1x128x128xf32> to vector<128x128xf32>
    %cst_52 = arith.constant dense<0.000000e+00> : vector<64x128xf32>
    %46 = tpu.matmul %43, %45, %cst_52 {dimension_numbers = #tpu.dot_dimension_numbers<[1], [0], [0], [1], [0, 0, 1, 1], [], []>} : vector<64x128xf32>, vector<128x128xf32>, vector<64x128xf32> -> vector<64x128xf32>
    %47 = arith.addf %41, %46 : vector<64x128xf32>
    %c2_53 = arith.constant 2 : index
    %c0_54 = arith.constant 0 : index
    %c0_55 = arith.constant 0 : index
    %48 = vector.load %arg6[%c2_53, %c0_54, %c0_55] : memref<10x10x128xf32, #tpu.memory_space<vmem>>, vector<8x8x128xf32>
    %49 = vector.shape_cast %48 : vector<8x8x128xf32> to vector<64x128xf32>
    %c6 = arith.constant 6 : index
    %c0_56 = arith.constant 0 : index
    %c0_57 = arith.constant 0 : index
    %50 = vector.load %arg2[%c6, %c0_56, %c0_57] : memref<9x128x128xf32, #tpu.memory_space<vmem>>, vector<1x128x128xf32>
    %51 = vector.shape_cast %50 : vector<1x128x128xf32> to vector<128x128xf32>
    %cst_58 = arith.constant dense<0.000000e+00> : vector<64x128xf32>
    %52 = tpu.matmul %49, %51, %cst_58 {dimension_numbers = #tpu.dot_dimension_numbers<[1], [0], [0], [1], [0, 0, 1, 1], [], []>} : vector<64x128xf32>, vector<128x128xf32>, vector<64x128xf32> -> vector<64x128xf32>
    %53 = arith.addf %47, %52 : vector<64x128xf32>
    %c2_59 = arith.constant 2 : index
    %c1_60 = arith.constant 1 : index
    %c0_61 = arith.constant 0 : index
    %54 = vector.load %arg6[%c2_59, %c1_60, %c0_61] : memref<10x10x128xf32, #tpu.memory_space<vmem>>, vector<8x8x128xf32>
    %55 = vector.shape_cast %54 : vector<8x8x128xf32> to vector<64x128xf32>
    %c7 = arith.constant 7 : index
    %c0_62 = arith.constant 0 : index
    %c0_63 = arith.constant 0 : index
    %56 = vector.load %arg2[%c7, %c0_62, %c0_63] : memref<9x128x128xf32, #tpu.memory_space<vmem>>, vector<1x128x128xf32>
    %57 = vector.shape_cast %56 : vector<1x128x128xf32> to vector<128x128xf32>
    %cst_64 = arith.constant dense<0.000000e+00> : vector<64x128xf32>
    %58 = tpu.matmul %55, %57, %cst_64 {dimension_numbers = #tpu.dot_dimension_numbers<[1], [0], [0], [1], [0, 0, 1, 1], [], []>} : vector<64x128xf32>, vector<128x128xf32>, vector<64x128xf32> -> vector<64x128xf32>
    %59 = arith.addf %53, %58 : vector<64x128xf32>
    %c2_65 = arith.constant 2 : index
    %c2_66 = arith.constant 2 : index
    %c0_67 = arith.constant 0 : index
    %60 = vector.load %arg6[%c2_65, %c2_66, %c0_67] : memref<10x10x128xf32, #tpu.memory_space<vmem>>, vector<8x8x128xf32>
    %61 = vector.shape_cast %60 : vector<8x8x128xf32> to vector<64x128xf32>
    %c8 = arith.constant 8 : index
    %c0_68 = arith.constant 0 : index
    %c0_69 = arith.constant 0 : index
    %62 = vector.load %arg2[%c8, %c0_68, %c0_69] : memref<9x128x128xf32, #tpu.memory_space<vmem>>, vector<1x128x128xf32>
    %63 = vector.shape_cast %62 : vector<1x128x128xf32> to vector<128x128xf32>
    %cst_70 = arith.constant dense<0.000000e+00> : vector<64x128xf32>
    %64 = tpu.matmul %61, %63, %cst_70 {dimension_numbers = #tpu.dot_dimension_numbers<[1], [0], [0], [1], [0, 0, 1, 1], [], []>} : vector<64x128xf32>, vector<128x128xf32>, vector<64x128xf32> -> vector<64x128xf32>
    %65 = arith.addf %59, %64 : vector<64x128xf32>
    %66 = vector.shape_cast %65 : vector<64x128xf32> to vector<1x8x8x128xf32>
    %c0_71 = arith.constant 0 : index
    %c0_72 = arith.constant 0 : index
    %c0_73 = arith.constant 0 : index
    %c0_74 = arith.constant 0 : index
    %67 = vector.load %arg3[%c0_71, %c0_72, %c0_73, %c0_74] : memref<1x8x8x128xf32, #tpu.memory_space<vmem>>, vector<1x8x8x128xf32>
    tpu.vector_store %arg3[%c0_71, %c0_72, %c0_73, %c0_74], %66 {strides = array<i32>} : memref<1x8x8x128xf32, #tpu.memory_space<vmem>>, vector<1x8x8x128xf32>,
    %cst_75 = arith.constant dense<0.000000e+00> : vector<128xf32>
    %68 = vector.multi_reduction <add>, %65, %cst_75 [0] : vector<64x128xf32> to vector<128xf32>
    %69 = vector.shape_cast %68 : vector<128xf32> to vector<1x128xf32>
    %70 = vector.shape_cast %69 : vector<1x128xf32> to vector<1x1x128xf32>
    %c0_76 = arith.constant 0 : index
    %c0_77 = arith.constant 0 : index
    %c0_78 = arith.constant 0 : index
    %71 = vector.load %arg4[%c0_76, %c0_77, %c0_78] : memref<1x1x128xf32, #tpu.memory_space<vmem>>, vector<1x1x128xf32>
    tpu.vector_store %arg4[%c0_76, %c0_77, %c0_78], %70 {strides = array<i32>} : memref<1x1x128xf32, #tpu.memory_space<vmem>>, vector<1x1x128xf32>,
    %72 = arith.mulf %65, %65 : vector<64x128xf32>
    %cst_79 = arith.constant dense<0.000000e+00> : vector<128xf32>
    %73 = vector.multi_reduction <add>, %72, %cst_79 [0] : vector<64x128xf32> to vector<128xf32>
    %74 = vector.shape_cast %73 : vector<128xf32> to vector<1x128xf32>
    %75 = vector.shape_cast %74 : vector<1x128xf32> to vector<1x1x128xf32>
    %c0_80 = arith.constant 0 : index
    %c0_81 = arith.constant 0 : index
    %c0_82 = arith.constant 0 : index
    %76 = vector.load %arg5[%c0_80, %c0_81, %c0_82] : memref<1x1x128xf32, #tpu.memory_space<vmem>>, vector<1x1x128xf32>
    tpu.vector_store %arg5[%c0_80, %c0_81, %c0_82], %75 {strides = array<i32>} : memref<1x1x128xf32, #tpu.memory_space<vmem>>, vector<1x1x128xf32>,
    return
  }
  func.func @transform_0(%arg0: i32) -> (i32, i32, i32, i32, i32) {
    %c0_i32 = arith.constant 0 : i32
    %c0_i32_0 = arith.constant 0 : i32
    %c0_i32_1 = arith.constant 0 : i32
    %c0_i32_2 = arith.constant 0 : i32
    %c0_i32_3 = arith.constant 0 : i32
    return %arg0, %c0_i32, %c0_i32_0, %c0_i32_1, %c0_i32_2 : i32, i32, i32, i32, i32
  }
  func.func @transform_1(%arg0: i32) -> (i32, i32, i32) {
    %c0_i32 = arith.constant 0 : i32
    %c0_i32_0 = arith.constant 0 : i32
    %c0_i32_1 = arith.constant 0 : i32
    %c0_i32_2 = arith.constant 0 : i32
    return %c0_i32, %c0_i32_0, %c0_i32_1 : i32, i32, i32
  }
  func.func @transform_2(%arg0: i32) -> (i32, i32, i32, i32) {
    %c0_i32 = arith.constant 0 : i32
    %c0_i32_0 = arith.constant 0 : i32
    %c0_i32_1 = arith.constant 0 : i32
    %c0_i32_2 = arith.constant 0 : i32
    return %arg0, %c0_i32, %c0_i32_0, %c0_i32_1 : i32, i32, i32, i32
  }
  func.func @transform_3(%arg0: i32) -> (i32, i32, i32) {
    %c0_i32 = arith.constant 0 : i32
    %c0_i32_0 = arith.constant 0 : i32
    %c0_i32_1 = arith.constant 0 : i32
    return %arg0, %c0_i32, %c0_i32_0 : i32, i32, i32
  }
  func.func @transform_4(%arg0: i32) -> (i32, i32, i32) {
    %c0_i32 = arith.constant 0 : i32
    %c0_i32_0 = arith.constant 0 : i32
    %c0_i32_1 = arith.constant 0 : i32
    return %arg0, %c0_i32, %c0_i32_0 : i32, i32, i32
  }
}

module attributes {stable_mosaic.version = 11 : i64} {
  func.func @_bn_relu_kernel(%arg0: i32, %arg1: memref<128x128xf32, #tpu.memory_space<vmem>>, %arg2: memref<1x128xf32, #tpu.memory_space<vmem>>, %arg3: memref<1x128xf32, #tpu.memory_space<vmem>>, %arg4: memref<128x128xf32, #tpu.memory_space<vmem>>) attributes {dimension_semantics = [#tpu.dimension_semantics<parallel>], iteration_bounds = array<i64: 1>, scalar_prefetch = 0 : i64, scratch_operands = 0 : i64, tpu.core_type = #tpu.core_type<tc>, window_params = [{transform_indices = @transform_0, window_bounds = array<i64: 128, 128>}, {pipeline_mode = #tpu.pipeline_mode<synchronous>, transform_indices = @transform_1, window_bounds = array<i64: 1, 128>}, {pipeline_mode = #tpu.pipeline_mode<synchronous>, transform_indices = @transform_2, window_bounds = array<i64: 1, 128>}, {transform_indices = @transform_3, window_bounds = array<i64: 128, 128>}]} {
    %c0 = arith.constant 0 : index
    %c0_0 = arith.constant 0 : index
    %0 = vector.load %arg1[%c0, %c0_0] : memref<128x128xf32, #tpu.memory_space<vmem>>, vector<128x128xf32>
    %c0_1 = arith.constant 0 : index
    %c0_2 = arith.constant 0 : index
    %1 = vector.load %arg2[%c0_1, %c0_2] : memref<1x128xf32, #tpu.memory_space<vmem>>, vector<1x128xf32>
    %2 = vector.broadcast %1 : vector<1x128xf32> to vector<128x128xf32>
    %3 = arith.mulf %0, %2 : vector<128x128xf32>
    %c0_3 = arith.constant 0 : index
    %c0_4 = arith.constant 0 : index
    %4 = vector.load %arg3[%c0_3, %c0_4] : memref<1x128xf32, #tpu.memory_space<vmem>>, vector<1x128xf32>
    %5 = vector.broadcast %4 : vector<1x128xf32> to vector<128x128xf32>
    %6 = arith.addf %3, %5 : vector<128x128xf32>
    %cst = arith.constant 0.000000e+00 : f32
    %7 = vector.broadcast %cst : f32 to vector<128x128xf32>
    %8 = arith.maximumf %6, %7 : vector<128x128xf32>
    %c0_5 = arith.constant 0 : index
    %c0_6 = arith.constant 0 : index
    %9 = vector.load %arg4[%c0_5, %c0_6] : memref<128x128xf32, #tpu.memory_space<vmem>>, vector<128x128xf32>
    tpu.vector_store %arg4[%c0_5, %c0_6], %8 {strides = array<i32>} : memref<128x128xf32, #tpu.memory_space<vmem>>, vector<128x128xf32>,
    return
  }
  func.func @transform_0(%arg0: i32) -> (i32, i32) {
    %c0_i32 = arith.constant 0 : i32
    %c0_i32_0 = arith.constant 0 : i32
    return %arg0, %c0_i32 : i32, i32
  }
  func.func @transform_1(%arg0: i32) -> (i32, i32) {
    %c0_i32 = arith.constant 0 : i32
    %c0_i32_0 = arith.constant 0 : i32
    %c0_i32_1 = arith.constant 0 : i32
    return %c0_i32, %c0_i32_0 : i32, i32
  }
  func.func @transform_2(%arg0: i32) -> (i32, i32) {
    %c0_i32 = arith.constant 0 : i32
    %c0_i32_0 = arith.constant 0 : i32
    %c0_i32_1 = arith.constant 0 : i32
    return %c0_i32, %c0_i32_0 : i32, i32
  }
  func.func @transform_3(%arg0: i32) -> (i32, i32) {
    %c0_i32 = arith.constant 0 : i32
    %c0_i32_0 = arith.constant 0 : i32
    return %arg0, %c0_i32 : i32, i32
  }
}

module attributes {stable_mosaic.version = 11 : i64} {
  func.func @_bn_relu_conv_kernel(%arg0: i32, %arg1: memref<1x8x8x128xf32, #tpu.memory_space<vmem>>, %arg2: memref<1x128xf32, #tpu.memory_space<vmem>>, %arg3: memref<1x128xf32, #tpu.memory_space<vmem>>, %arg4: memref<9x128x128xf32, #tpu.memory_space<vmem>>, %arg5: memref<1x8x8x128xf32, #tpu.memory_space<vmem>>, %arg6: memref<1x1x128xf32, #tpu.memory_space<vmem>>, %arg7: memref<1x1x128xf32, #tpu.memory_space<vmem>>, %arg8: memref<10x10x128xf32, #tpu.memory_space<vmem>>) attributes {dimension_semantics = [#tpu.dimension_semantics<parallel>], iteration_bounds = array<i64: 2>, scalar_prefetch = 0 : i64, scratch_operands = 1 : i64, tpu.core_type = #tpu.core_type<tc>, window_params = [{transform_indices = @transform_0, window_bounds = array<i64: 1, 8, 8, 128>}, {pipeline_mode = #tpu.pipeline_mode<synchronous>, transform_indices = @transform_1, window_bounds = array<i64: 1, 128>}, {pipeline_mode = #tpu.pipeline_mode<synchronous>, transform_indices = @transform_2, window_bounds = array<i64: 1, 128>}, {pipeline_mode = #tpu.pipeline_mode<synchronous>, transform_indices = @transform_3, window_bounds = array<i64: 9, 128, 128>}, {transform_indices = @transform_4, window_bounds = array<i64: 1, 8, 8, 128>}, {transform_indices = @transform_5, window_bounds = array<i64: 1, 1, 128>}, {transform_indices = @transform_6, window_bounds = array<i64: 1, 1, 128>}]} {
    %c0 = arith.constant 0 : index
    %c0_0 = arith.constant 0 : index
    %0 = vector.load %arg2[%c0, %c0_0] : memref<1x128xf32, #tpu.memory_space<vmem>>, vector<1x128xf32>
    %1 = vector.shape_cast %0 : vector<1x128xf32> to vector<1x1x128xf32>
    %c0_1 = arith.constant 0 : index
    %c0_2 = arith.constant 0 : index
    %2 = vector.load %arg3[%c0_1, %c0_2] : memref<1x128xf32, #tpu.memory_space<vmem>>, vector<1x128xf32>
    %3 = vector.shape_cast %2 : vector<1x128xf32> to vector<1x1x128xf32>
    %c0_3 = arith.constant 0 : index
    %c0_4 = arith.constant 0 : index
    %c0_5 = arith.constant 0 : index
    %c0_6 = arith.constant 0 : index
    %4 = vector.load %arg1[%c0_3, %c0_4, %c0_5, %c0_6] : memref<1x8x8x128xf32, #tpu.memory_space<vmem>>, vector<1x8x8x128xf32>
    %5 = vector.shape_cast %4 : vector<1x8x8x128xf32> to vector<8x8x128xf32>
    %6 = vector.broadcast %1 : vector<1x1x128xf32> to vector<8x8x128xf32>
    %7 = arith.mulf %5, %6 : vector<8x8x128xf32>
    %8 = vector.broadcast %3 : vector<1x1x128xf32> to vector<8x8x128xf32>
    %9 = arith.addf %7, %8 : vector<8x8x128xf32>
    %cst = arith.constant 0.000000e+00 : f32
    %10 = vector.broadcast %cst : f32 to vector<8x8x128xf32>
    %11 = arith.maximumf %9, %10 : vector<8x8x128xf32>
    %cst_7 = arith.constant 0.000000e+00 : f32
    %12 = vector.broadcast %cst_7 : f32 to vector<10x10x128xf32>
    %c0_8 = arith.constant 0 : index
    %c0_9 = arith.constant 0 : index
    %c0_10 = arith.constant 0 : index
    %13 = vector.load %arg8[%c0_8, %c0_9, %c0_10] : memref<10x10x128xf32, #tpu.memory_space<vmem>>, vector<10x10x128xf32>
    tpu.vector_store %arg8[%c0_8, %c0_9, %c0_10], %12 {strides = array<i32>} : memref<10x10x128xf32, #tpu.memory_space<vmem>>, vector<10x10x128xf32>,
    %c1 = arith.constant 1 : index
    %c1_11 = arith.constant 1 : index
    %c0_12 = arith.constant 0 : index
    %14 = vector.load %arg8[%c1, %c1_11, %c0_12] : memref<10x10x128xf32, #tpu.memory_space<vmem>>, vector<8x8x128xf32>
    tpu.vector_store %arg8[%c1, %c1_11, %c0_12], %11 {strides = array<i32>} : memref<10x10x128xf32, #tpu.memory_space<vmem>>, vector<8x8x128xf32>,
    %cst_13 = arith.constant 0.000000e+00 : f32
    %15 = vector.broadcast %cst_13 : f32 to vector<64x128xf32>
    %c0_14 = arith.constant 0 : index
    %c0_15 = arith.constant 0 : index
    %c0_16 = arith.constant 0 : index
    %16 = vector.load %arg8[%c0_14, %c0_15, %c0_16] : memref<10x10x128xf32, #tpu.memory_space<vmem>>, vector<8x8x128xf32>
    %17 = vector.shape_cast %16 : vector<8x8x128xf32> to vector<64x128xf32>
    %c0_17 = arith.constant 0 : index
    %c0_18 = arith.constant 0 : index
    %c0_19 = arith.constant 0 : index
    %18 = vector.load %arg4[%c0_17, %c0_18, %c0_19] : memref<9x128x128xf32, #tpu.memory_space<vmem>>, vector<1x128x128xf32>
    %19 = vector.shape_cast %18 : vector<1x128x128xf32> to vector<128x128xf32>
    %cst_20 = arith.constant dense<0.000000e+00> : vector<64x128xf32>
    %20 = tpu.matmul %17, %19, %cst_20 {dimension_numbers = #tpu.dot_dimension_numbers<[1], [0], [0], [1], [0, 0, 1, 1], [], []>} : vector<64x128xf32>, vector<128x128xf32>, vector<64x128xf32> -> vector<64x128xf32>
    %21 = arith.addf %15, %20 : vector<64x128xf32>
    %c0_21 = arith.constant 0 : index
    %c1_22 = arith.constant 1 : index
    %c0_23 = arith.constant 0 : index
    %22 = vector.load %arg8[%c0_21, %c1_22, %c0_23] : memref<10x10x128xf32, #tpu.memory_space<vmem>>, vector<8x8x128xf32>
    %23 = vector.shape_cast %22 : vector<8x8x128xf32> to vector<64x128xf32>
    %c1_24 = arith.constant 1 : index
    %c0_25 = arith.constant 0 : index
    %c0_26 = arith.constant 0 : index
    %24 = vector.load %arg4[%c1_24, %c0_25, %c0_26] : memref<9x128x128xf32, #tpu.memory_space<vmem>>, vector<1x128x128xf32>
    %25 = vector.shape_cast %24 : vector<1x128x128xf32> to vector<128x128xf32>
    %cst_27 = arith.constant dense<0.000000e+00> : vector<64x128xf32>
    %26 = tpu.matmul %23, %25, %cst_27 {dimension_numbers = #tpu.dot_dimension_numbers<[1], [0], [0], [1], [0, 0, 1, 1], [], []>} : vector<64x128xf32>, vector<128x128xf32>, vector<64x128xf32> -> vector<64x128xf32>
    %27 = arith.addf %21, %26 : vector<64x128xf32>
    %c0_28 = arith.constant 0 : index
    %c2 = arith.constant 2 : index
    %c0_29 = arith.constant 0 : index
    %28 = vector.load %arg8[%c0_28, %c2, %c0_29] : memref<10x10x128xf32, #tpu.memory_space<vmem>>, vector<8x8x128xf32>
    %29 = vector.shape_cast %28 : vector<8x8x128xf32> to vector<64x128xf32>
    %c2_30 = arith.constant 2 : index
    %c0_31 = arith.constant 0 : index
    %c0_32 = arith.constant 0 : index
    %30 = vector.load %arg4[%c2_30, %c0_31, %c0_32] : memref<9x128x128xf32, #tpu.memory_space<vmem>>, vector<1x128x128xf32>
    %31 = vector.shape_cast %30 : vector<1x128x128xf32> to vector<128x128xf32>
    %cst_33 = arith.constant dense<0.000000e+00> : vector<64x128xf32>
    %32 = tpu.matmul %29, %31, %cst_33 {dimension_numbers = #tpu.dot_dimension_numbers<[1], [0], [0], [1], [0, 0, 1, 1], [], []>} : vector<64x128xf32>, vector<128x128xf32>, vector<64x128xf32> -> vector<64x128xf32>
    %33 = arith.addf %27, %32 : vector<64x128xf32>
    %c1_34 = arith.constant 1 : index
    %c0_35 = arith.constant 0 : index
    %c0_36 = arith.constant 0 : index
    %34 = vector.load %arg8[%c1_34, %c0_35, %c0_36] : memref<10x10x128xf32, #tpu.memory_space<vmem>>, vector<8x8x128xf32>
    %35 = vector.shape_cast %34 : vector<8x8x128xf32> to vector<64x128xf32>
    %c3 = arith.constant 3 : index
    %c0_37 = arith.constant 0 : index
    %c0_38 = arith.constant 0 : index
    %36 = vector.load %arg4[%c3, %c0_37, %c0_38] : memref<9x128x128xf32, #tpu.memory_space<vmem>>, vector<1x128x128xf32>
    %37 = vector.shape_cast %36 : vector<1x128x128xf32> to vector<128x128xf32>
    %cst_39 = arith.constant dense<0.000000e+00> : vector<64x128xf32>
    %38 = tpu.matmul %35, %37, %cst_39 {dimension_numbers = #tpu.dot_dimension_numbers<[1], [0], [0], [1], [0, 0, 1, 1], [], []>} : vector<64x128xf32>, vector<128x128xf32>, vector<64x128xf32> -> vector<64x128xf32>
    %39 = arith.addf %33, %38 : vector<64x128xf32>
    %c1_40 = arith.constant 1 : index
    %c1_41 = arith.constant 1 : index
    %c0_42 = arith.constant 0 : index
    %40 = vector.load %arg8[%c1_40, %c1_41, %c0_42] : memref<10x10x128xf32, #tpu.memory_space<vmem>>, vector<8x8x128xf32>
    %41 = vector.shape_cast %40 : vector<8x8x128xf32> to vector<64x128xf32>
    %c4 = arith.constant 4 : index
    %c0_43 = arith.constant 0 : index
    %c0_44 = arith.constant 0 : index
    %42 = vector.load %arg4[%c4, %c0_43, %c0_44] : memref<9x128x128xf32, #tpu.memory_space<vmem>>, vector<1x128x128xf32>
    %43 = vector.shape_cast %42 : vector<1x128x128xf32> to vector<128x128xf32>
    %cst_45 = arith.constant dense<0.000000e+00> : vector<64x128xf32>
    %44 = tpu.matmul %41, %43, %cst_45 {dimension_numbers = #tpu.dot_dimension_numbers<[1], [0], [0], [1], [0, 0, 1, 1], [], []>} : vector<64x128xf32>, vector<128x128xf32>, vector<64x128xf32> -> vector<64x128xf32>
    %45 = arith.addf %39, %44 : vector<64x128xf32>
    %c1_46 = arith.constant 1 : index
    %c2_47 = arith.constant 2 : index
    %c0_48 = arith.constant 0 : index
    %46 = vector.load %arg8[%c1_46, %c2_47, %c0_48] : memref<10x10x128xf32, #tpu.memory_space<vmem>>, vector<8x8x128xf32>
    %47 = vector.shape_cast %46 : vector<8x8x128xf32> to vector<64x128xf32>
    %c5 = arith.constant 5 : index
    %c0_49 = arith.constant 0 : index
    %c0_50 = arith.constant 0 : index
    %48 = vector.load %arg4[%c5, %c0_49, %c0_50] : memref<9x128x128xf32, #tpu.memory_space<vmem>>, vector<1x128x128xf32>
    %49 = vector.shape_cast %48 : vector<1x128x128xf32> to vector<128x128xf32>
    %cst_51 = arith.constant dense<0.000000e+00> : vector<64x128xf32>
    %50 = tpu.matmul %47, %49, %cst_51 {dimension_numbers = #tpu.dot_dimension_numbers<[1], [0], [0], [1], [0, 0, 1, 1], [], []>} : vector<64x128xf32>, vector<128x128xf32>, vector<64x128xf32> -> vector<64x128xf32>
    %51 = arith.addf %45, %50 : vector<64x128xf32>
    %c2_52 = arith.constant 2 : index
    %c0_53 = arith.constant 0 : index
    %c0_54 = arith.constant 0 : index
    %52 = vector.load %arg8[%c2_52, %c0_53, %c0_54] : memref<10x10x128xf32, #tpu.memory_space<vmem>>, vector<8x8x128xf32>
    %53 = vector.shape_cast %52 : vector<8x8x128xf32> to vector<64x128xf32>
    %c6 = arith.constant 6 : index
    %c0_55 = arith.constant 0 : index
    %c0_56 = arith.constant 0 : index
    %54 = vector.load %arg4[%c6, %c0_55, %c0_56] : memref<9x128x128xf32, #tpu.memory_space<vmem>>, vector<1x128x128xf32>
    %55 = vector.shape_cast %54 : vector<1x128x128xf32> to vector<128x128xf32>
    %cst_57 = arith.constant dense<0.000000e+00> : vector<64x128xf32>
    %56 = tpu.matmul %53, %55, %cst_57 {dimension_numbers = #tpu.dot_dimension_numbers<[1], [0], [0], [1], [0, 0, 1, 1], [], []>} : vector<64x128xf32>, vector<128x128xf32>, vector<64x128xf32> -> vector<64x128xf32>
    %57 = arith.addf %51, %56 : vector<64x128xf32>
    %c2_58 = arith.constant 2 : index
    %c1_59 = arith.constant 1 : index
    %c0_60 = arith.constant 0 : index
    %58 = vector.load %arg8[%c2_58, %c1_59, %c0_60] : memref<10x10x128xf32, #tpu.memory_space<vmem>>, vector<8x8x128xf32>
    %59 = vector.shape_cast %58 : vector<8x8x128xf32> to vector<64x128xf32>
    %c7 = arith.constant 7 : index
    %c0_61 = arith.constant 0 : index
    %c0_62 = arith.constant 0 : index
    %60 = vector.load %arg4[%c7, %c0_61, %c0_62] : memref<9x128x128xf32, #tpu.memory_space<vmem>>, vector<1x128x128xf32>
    %61 = vector.shape_cast %60 : vector<1x128x128xf32> to vector<128x128xf32>
    %cst_63 = arith.constant dense<0.000000e+00> : vector<64x128xf32>
    %62 = tpu.matmul %59, %61, %cst_63 {dimension_numbers = #tpu.dot_dimension_numbers<[1], [0], [0], [1], [0, 0, 1, 1], [], []>} : vector<64x128xf32>, vector<128x128xf32>, vector<64x128xf32> -> vector<64x128xf32>
    %63 = arith.addf %57, %62 : vector<64x128xf32>
    %c2_64 = arith.constant 2 : index
    %c2_65 = arith.constant 2 : index
    %c0_66 = arith.constant 0 : index
    %64 = vector.load %arg8[%c2_64, %c2_65, %c0_66] : memref<10x10x128xf32, #tpu.memory_space<vmem>>, vector<8x8x128xf32>
    %65 = vector.shape_cast %64 : vector<8x8x128xf32> to vector<64x128xf32>
    %c8 = arith.constant 8 : index
    %c0_67 = arith.constant 0 : index
    %c0_68 = arith.constant 0 : index
    %66 = vector.load %arg4[%c8, %c0_67, %c0_68] : memref<9x128x128xf32, #tpu.memory_space<vmem>>, vector<1x128x128xf32>
    %67 = vector.shape_cast %66 : vector<1x128x128xf32> to vector<128x128xf32>
    %cst_69 = arith.constant dense<0.000000e+00> : vector<64x128xf32>
    %68 = tpu.matmul %65, %67, %cst_69 {dimension_numbers = #tpu.dot_dimension_numbers<[1], [0], [0], [1], [0, 0, 1, 1], [], []>} : vector<64x128xf32>, vector<128x128xf32>, vector<64x128xf32> -> vector<64x128xf32>
    %69 = arith.addf %63, %68 : vector<64x128xf32>
    %70 = vector.shape_cast %69 : vector<64x128xf32> to vector<1x8x8x128xf32>
    %c0_70 = arith.constant 0 : index
    %c0_71 = arith.constant 0 : index
    %c0_72 = arith.constant 0 : index
    %c0_73 = arith.constant 0 : index
    %71 = vector.load %arg5[%c0_70, %c0_71, %c0_72, %c0_73] : memref<1x8x8x128xf32, #tpu.memory_space<vmem>>, vector<1x8x8x128xf32>
    tpu.vector_store %arg5[%c0_70, %c0_71, %c0_72, %c0_73], %70 {strides = array<i32>} : memref<1x8x8x128xf32, #tpu.memory_space<vmem>>, vector<1x8x8x128xf32>,
    %cst_74 = arith.constant dense<0.000000e+00> : vector<128xf32>
    %72 = vector.multi_reduction <add>, %69, %cst_74 [0] : vector<64x128xf32> to vector<128xf32>
    %73 = vector.shape_cast %72 : vector<128xf32> to vector<1x128xf32>
    %74 = vector.shape_cast %73 : vector<1x128xf32> to vector<1x1x128xf32>
    %c0_75 = arith.constant 0 : index
    %c0_76 = arith.constant 0 : index
    %c0_77 = arith.constant 0 : index
    %75 = vector.load %arg6[%c0_75, %c0_76, %c0_77] : memref<1x1x128xf32, #tpu.memory_space<vmem>>, vector<1x1x128xf32>
    tpu.vector_store %arg6[%c0_75, %c0_76, %c0_77], %74 {strides = array<i32>} : memref<1x1x128xf32, #tpu.memory_space<vmem>>, vector<1x1x128xf32>,
    %76 = arith.mulf %69, %69 : vector<64x128xf32>
    %cst_78 = arith.constant dense<0.000000e+00> : vector<128xf32>
    %77 = vector.multi_reduction <add>, %76, %cst_78 [0] : vector<64x128xf32> to vector<128xf32>
    %78 = vector.shape_cast %77 : vector<128xf32> to vector<1x128xf32>
    %79 = vector.shape_cast %78 : vector<1x128xf32> to vector<1x1x128xf32>
    %c0_79 = arith.constant 0 : index
    %c0_80 = arith.constant 0 : index
    %c0_81 = arith.constant 0 : index
    %80 = vector.load %arg7[%c0_79, %c0_80, %c0_81] : memref<1x1x128xf32, #tpu.memory_space<vmem>>, vector<1x1x128xf32>
    tpu.vector_store %arg7[%c0_79, %c0_80, %c0_81], %79 {strides = array<i32>} : memref<1x1x128xf32, #tpu.memory_space<vmem>>, vector<1x1x128xf32>,
    return
  }
  func.func @transform_0(%arg0: i32) -> (i32, i32, i32, i32) {
    %c0_i32 = arith.constant 0 : i32
    %c0_i32_0 = arith.constant 0 : i32
    %c0_i32_1 = arith.constant 0 : i32
    %c0_i32_2 = arith.constant 0 : i32
    return %arg0, %c0_i32, %c0_i32_0, %c0_i32_1 : i32, i32, i32, i32
  }
  func.func @transform_1(%arg0: i32) -> (i32, i32) {
    %c0_i32 = arith.constant 0 : i32
    %c0_i32_0 = arith.constant 0 : i32
    %c0_i32_1 = arith.constant 0 : i32
    return %c0_i32, %c0_i32_0 : i32, i32
  }
  func.func @transform_2(%arg0: i32) -> (i32, i32) {
    %c0_i32 = arith.constant 0 : i32
    %c0_i32_0 = arith.constant 0 : i32
    %c0_i32_1 = arith.constant 0 : i32
    return %c0_i32, %c0_i32_0 : i32, i32
  }
  func.func @transform_3(%arg0: i32) -> (i32, i32, i32) {
    %c0_i32 = arith.constant 0 : i32
    %c0_i32_0 = arith.constant 0 : i32
    %c0_i32_1 = arith.constant 0 : i32
    %c0_i32_2 = arith.constant 0 : i32
    return %c0_i32, %c0_i32_0, %c0_i32_1 : i32, i32, i32
  }
  func.func @transform_4(%arg0: i32) -> (i32, i32, i32, i32) {
    %c0_i32 = arith.constant 0 : i32
    %c0_i32_0 = arith.constant 0 : i32
    %c0_i32_1 = arith.constant 0 : i32
    %c0_i32_2 = arith.constant 0 : i32
    return %arg0, %c0_i32, %c0_i32_0, %c0_i32_1 : i32, i32, i32, i32
  }
  func.func @transform_5(%arg0: i32) -> (i32, i32, i32) {
    %c0_i32 = arith.constant 0 : i32
    %c0_i32_0 = arith.constant 0 : i32
    %c0_i32_1 = arith.constant 0 : i32
    return %arg0, %c0_i32, %c0_i32_0 : i32, i32, i32
  }
  func.func @transform_6(%arg0: i32) -> (i32, i32, i32) {
    %c0_i32 = arith.constant 0 : i32
    %c0_i32_0 = arith.constant 0 : i32
    %c0_i32_1 = arith.constant 0 : i32
    return %arg0, %c0_i32, %c0_i32_0 : i32, i32, i32
  }
}

</mosaic_0001>

<llo_original>
// kernel: down_forward.5
$region0: #{down_forward.5}
  #allocation0 [shape = 'u32[]', space=smem, size = 0x4, offset = 0x4, fixed_abs, tag = 'smem constant byte address 0x4 - core index']
  #allocation1 [shape = 'u32[144,128]{1,0:T(1,128)}', space=vmem, size = 0x12000, scoped, tag = 'internal scratch']
  %s0 = inlined_call_operand.hbm [shape: f32[128,128], index: 0, kind: input, shape index: {}]
  %s1 = inlined_call_operand.hbm [shape: f32[1,128], index: 1, kind: input, shape index: {}]
  %s2 = inlined_call_operand.hbm [shape: f32[1,128], index: 2, kind: input, shape index: {}]
  %s3 = inlined_call_operand.hbm [shape: f32[128,128], index: 3, kind: output, shape index: {}]
  %s4 = sld [smem:[#allocation0]]
  $region34: #{down_forward.5} parent=0
    _
  %s6 = ssub.s32 1, %s4
  %s7 = scalar_select 0, %s6, %s4
  $region1: #{down_forward.5} parent=0
    #allocation2 [shape = 'u8[65536]{0}', space=vmem, size = 0x10000, scoped, tag = 'input window, operand 0, single buffered']
    #allocation3 [shape = 's32[1]{0}', space=sflag, size = 0x4, scoped, tag = 'scoped memory for down_forward.5']
    #allocation4 [shape = 's32[1]{0}', space=sflag, size = 0x4, scoped, tag = 'scoped memory for down_forward.5']
    #allocation5 [shape = 'u8[512]{0}', space=vmem, size = 0x400, scoped, tag = 'input window, operand 1, single buffered']
    #allocation6 [shape = 's32[1]{0}', space=sflag, size = 0x4, scoped, tag = 'scoped memory for down_forward.5']
    #allocation7 [shape = 'u8[512]{0}', space=vmem, size = 0x400, scoped, tag = 'input window, operand 2, single buffered']
    #allocation8 [shape = 'u8[65536]{0}', space=vmem, size = 0x10000, scoped, tag = 'output window, operand 0, single buffered']
    %8 = vsyncpa [#allocation3], 0
    %9 = vsyncpa [#allocation6], 0
    %10 = vsyncpa [#allocation4], 0
    // Predicated region
    $region2: #{down_forward.5} parent=1 // pred_check
      _
    $region3: #{down_forward.5} parent=1 // pred_check_branch
      %12 = sbr.rel (0) target = $region5
    $region4: #{down_forward.5} parent=1 // pred_region
      %s14 = ssub.s32 2048, 2048
      %15 = vsyncadd [#allocation3], %s14
      %s16 = sshll.u32 [#allocation2], 4
      %s17 = int_to_ptr.vmem [resolvable:$true] %s16
      %22 = dma.hbm_to_vmem [thread:$0]  %s0, 2048, %s17, [#allocation3], 128, 128, 8
    $region5: #{down_forward.5} parent=1 // pred_fallthru
      _
    // Predicated region
    $region6: #{down_forward.5} parent=1 // pred_check
      _
    $region7: #{down_forward.5} parent=1 // pred_check_branch
      %24 = sbr.rel (0) target = $region9
    $region8: #{down_forward.5} parent=1 // pred_region
      %s26 = ssub.s32 16, 16
      %27 = vsyncadd [#allocation6], %s26
      %s29 = sshll.u32 [#allocation5], 4
      %s30 = int_to_ptr.vmem [resolvable:$true] %s29
      %32 = dma.hbm_to_vmem [thread:$0]  %s1, 16, %s30, [#allocation6]
    $region9: #{down_forward.5} parent=1 // pred_fallthru
      _
    // Predicated region
    $region10: #{down_forward.5} parent=1 // pred_check
      _
    $region11: #{down_forward.5} parent=1 // pred_check_branch
      %34 = sbr.rel (0) target = $region13
    $region12: #{down_forward.5} parent=1 // pred_region
      %s36 = ssub.s32 16, 16
      %37 = vsyncadd [#allocation6], %s36
      %s39 = sshll.u32 [#allocation7], 4
      %s40 = int_to_ptr.vmem [resolvable:$true] %s39
      %42 = dma.hbm_to_vmem [thread:$0]  %s2, 16, %s40, [#allocation6]
    $region13: #{down_forward.5} parent=1 // pred_fallthru
      _
    // Predicated region
    $region14: #{down_forward.5} parent=1 // pred_check
      _
    $region15: #{down_forward.5} parent=1 // pred_check_branch
      %44 = sbr.rel (0) target = $region17
    $region16: #{down_forward.5} parent=1 // pred_region
      %45 = dma.done [#allocation3], 2048
    $region17: #{down_forward.5} parent=1 // pred_fallthru
      _
    // Predicated region
    $region18: #{down_forward.5} parent=1 // pred_check
      _
    $region19: #{down_forward.5} parent=1 // pred_check_branch
      %47 = sbr.rel (0) target = $region21
    $region20: #{down_forward.5} parent=1 // pred_region
      %48 = dma.done [#allocation6], 16
    $region21: #{down_forward.5} parent=1 // pred_fallthru
      _
    // Predicated region
    $region22: #{down_forward.5} parent=1 // pred_check
      _
    $region23: #{down_forward.5} parent=1 // pred_check_branch
      %50 = sbr.rel (0) target = $region25
    $region24: #{down_forward.5} parent=1 // pred_region
      %51 = dma.done [#allocation6], 16
    $region25: #{down_forward.5} parent=1 // pred_fallthru
      _
    %v52 = vld [vmem:[#allocation2] sm:$0xff]
    %v53 = vld [vmem:[#allocation2 + $0x8] sm:$0xff]
    %v54 = vld [vmem:[#allocation2 + $0x10] sm:$0xff]
    %v55 = vld [vmem:[#allocation2 + $0x18] sm:$0xff]
    %v56 = vld [vmem:[#allocation2 + $0x20] sm:$0xff]
    %v57 = vld [vmem:[#allocation2 + $0x28] sm:$0xff]
    %v58 = vld [vmem:[#allocation2 + $0x30] sm:$0xff]
    %v59 = vld [vmem:[#allocation2 + $0x38] sm:$0xff]
    %v60 = vld [vmem:[#allocation2 + $0x40] sm:$0xff]
    %v61 = vld [vmem:[#allocation2 + $0x48] sm:$0xff]
    %v62 = vld [vmem:[#allocation2 + $0x50] sm:$0xff]
    %v63 = vld [vmem:[#allocation2 + $0x58] sm:$0xff]
    %v64 = vld [vmem:[#allocation2 + $0x60] sm:$0xff]
    %v65 = vld [vmem:[#allocation2 + $0x68] sm:$0xff]
    %v66 = vld [vmem:[#allocation2 + $0x70] sm:$0xff]
    %v67 = vld [vmem:[#allocation2 + $0x78] sm:$0xff]
    %v68 = vld [vmem:[#allocation5] sm:$0x1]
    %v70 = vlaneseq
    %v71 = vshrl.u32 %v70, 7
    %v72 = vsub.s32 0, %v71
    %v73 = vrot.slane %v68, %v72
    %v75 = vmul.f32 %v52, %v73
    %v76 = vmul.f32 %v53, %v73
    %v77 = vmul.f32 %v54, %v73
    %v78 = vmul.f32 %v55, %v73
    %v79 = vmul.f32 %v56, %v73
    %v80 = vmul.f32 %v57, %v73
    %v81 = vmul.f32 %v58, %v73
    %v82 = vmul.f32 %v59, %v73
    %v83 = vmul.f32 %v60, %v73
    %v84 = vmul.f32 %v61, %v73
    %v85 = vmul.f32 %v62, %v73
    %v86 = vmul.f32 %v63, %v73
    %v87 = vmul.f32 %v64, %v73
    %v88 = vmul.f32 %v65, %v73
    %v89 = vmul.f32 %v66, %v73
    %v90 = vmul.f32 %v67, %v73
    %v91 = vld [vmem:[#allocation7] sm:$0x1]
    %v93 = vlaneseq
    %v94 = vshrl.u32 %v93, 7
    %v95 = vsub.s32 0, %v94
    %v96 = vrot.slane %v91, %v95
    %v98 = vadd.f32 %v75, %v96
    %v99 = vadd.f32 %v76, %v96
    %v100 = vadd.f32 %v77, %v96
    %v101 = vadd.f32 %v78, %v96
    %v102 = vadd.f32 %v79, %v96
    %v103 = vadd.f32 %v80, %v96
    %v104 = vadd.f32 %v81, %v96
    %v105 = vadd.f32 %v82, %v96
    %v106 = vadd.f32 %v83, %v96
    %v107 = vadd.f32 %v84, %v96
    %v108 = vadd.f32 %v85, %v96
    %v109 = vadd.f32 %v86, %v96
    %v110 = vadd.f32 %v87, %v96
    %v111 = vadd.f32 %v88, %v96
    %v112 = vadd.f32 %v89, %v96
    %v113 = vadd.f32 %v90, %v96
    %v114 = vmax.f32 %v98, 0.0
    %v115 = vmax.f32 %v99, 0.0
    %v116 = vmax.f32 %v100, 0.0
    %v117 = vmax.f32 %v101, 0.0
    %v118 = vmax.f32 %v102, 0.0
    %v119 = vmax.f32 %v103, 0.0
    %v120 = vmax.f32 %v104, 0.0
    %v121 = vmax.f32 %v105, 0.0
    %v122 = vmax.f32 %v106, 0.0
    %v123 = vmax.f32 %v107, 0.0
    %v124 = vmax.f32 %v108, 0.0
    %v125 = vmax.f32 %v109, 0.0
    %v126 = vmax.f32 %v110, 0.0
    %v127 = vmax.f32 %v111, 0.0
    %v128 = vmax.f32 %v112, 0.0
    %v129 = vmax.f32 %v113, 0.0
    %130 = vst [vmem:[#allocation8] sm:$0xff] %v114
    %131 = vst [vmem:[#allocation8 + $0x8] sm:$0xff] %v115
    %132 = vst [vmem:[#allocation8 + $0x10] sm:$0xff] %v116
    %133 = vst [vmem:[#allocation8 + $0x18] sm:$0xff] %v117
    %134 = vst [vmem:[#allocation8 + $0x20] sm:$0xff] %v118
    %135 = vst [vmem:[#allocation8 + $0x28] sm:$0xff] %v119
    %136 = vst [vmem:[#allocation8 + $0x30] sm:$0xff] %v120
    %137 = vst [vmem:[#allocation8 + $0x38] sm:$0xff] %v121
    %138 = vst [vmem:[#allocation8 + $0x40] sm:$0xff] %v122
    %139 = vst [vmem:[#allocation8 + $0x48] sm:$0xff] %v123
    %140 = vst [vmem:[#allocation8 + $0x50] sm:$0xff] %v124
    %141 = vst [vmem:[#allocation8 + $0x58] sm:$0xff] %v125
    %142 = vst [vmem:[#allocation8 + $0x60] sm:$0xff] %v126
    %143 = vst [vmem:[#allocation8 + $0x68] sm:$0xff] %v127
    %144 = vst [vmem:[#allocation8 + $0x70] sm:$0xff] %v128
    %145 = vst [vmem:[#allocation8 + $0x78] sm:$0xff] %v129
    // Predicated region
    $region26: #{down_forward.5} parent=1 // pred_check
      _
    $region27: #{down_forward.5} parent=1 // pred_check_branch
      %147 = sbr.rel (0) target = $region29
    $region28: #{down_forward.5} parent=1 // pred_region
      %s149 = ssub.s32 2048, 2048
      %150 = vsyncadd [#allocation4], %s149
      %s151 = sshll.u32 [#allocation8], 4
      %s152 = int_to_ptr.vmem [resolvable:$true] %s151
      %157 = dma.vmem_to_hbm [thread:$0]  %s152, 2048, %s3, [#allocation4], 128, 128, 8
    $region29: #{down_forward.5} parent=1 // pred_fallthru
      _
    // Predicated region
    $region30: #{down_forward.5} parent=1 // pred_check
      _
    $region31: #{down_forward.5} parent=1 // pred_check_branch
      %159 = sbr.rel (0) target = $region33
    $region32: #{down_forward.5} parent=1 // pred_region
      %160 = dma.done [#allocation4], 2048
    $region33: #{down_forward.5} parent=1 // pred_fallthru
      _
    %161 = vsyncpa [#allocation3], 1
    %162 = vsyncpa [#allocation6], 1
    %163 = vsyncpa [#allocation4], 1

// kernel: down_forward.3
$region0: #{down_forward.3}
  #allocation0 [shape = 'u32[]', space=smem, size = 0x4, offset = 0x4, fixed_abs, tag = 'smem constant byte address 0x4 - core index']
  #allocation1 [shape = 'u32[144,128]{1,0:T(1,128)}', space=vmem, size = 0x12000, scoped, tag = 'internal scratch']
  #allocation2 [shape = 'f32[10,10,128]{2,1,0:T(8,128)}', space=vmem, size = 0x14000, scoped, tag = 'scratch operand']
  %s0 = inlined_call_operand.hbm [shape: f32[2,8,2,8,256], index: 0, kind: input, shape index: {}]
  %s1 = inlined_call_operand.hbm [shape: f32[9,128,128], index: 1, kind: input, shape index: {}]
  %s2 = inlined_call_operand.hbm [shape: f32[2,8,8,128], index: 2, kind: output, shape index: {0}]
  %s3 = inlined_call_operand.hbm [shape: f32[2,1,128], index: 3, kind: output, shape index: {1}]
  %s4 = inlined_call_operand.hbm [shape: f32[2,1,128], index: 4, kind: output, shape index: {2}]
  %5 = xla_tuple %s2, %s3, %s4
  %s6 = sld [smem:[#allocation0]]
  $region65: #{down_forward.3} parent=0
    _
  %s8 = ssub.s32 1, %s6
  %s9 = scalar_select 0, %s8, %s6
  $region1: #{down_forward.3} parent=0
    #allocation3 [shape = 'u8[262144]{0}', space=vmem, size = 0x40000, scoped, tag = 'input window, operand 0']
    #allocation4 [shape = 's32[2]{0}', space=sflag, size = 0x8, scoped, tag = 'scoped memory for down_forward.3']
    #allocation5 [shape = 's32[2]{0}', space=sflag, size = 0x8, scoped, tag = 'scoped memory for down_forward.3']
    #allocation6 [shape = 'u8[589824]{0}', space=vmem, size = 0x90000, scoped, tag = 'input window, operand 1, single buffered']
    #allocation7 [shape = 's32[1]{0}', space=sflag, size = 0x4, scoped, tag = 'scoped memory for down_forward.3']
    #allocation8 [shape = 'u8[65536]{0}', space=vmem, size = 0x10000, scoped, tag = 'output window, operand 0']
    #allocation9 [shape = 'u8[1024]{0}', space=vmem, size = 0x400, scoped, tag = 'output window, operand 1']
    #allocation10 [shape = 's32[2]{0}', space=sflag, size = 0x8, scoped, tag = 'scoped memory for down_forward.3']
    #allocation11 [shape = 'u8[1024]{0}', space=vmem, size = 0x400, scoped, tag = 'output window, operand 2']
    %10 = vsyncpa [#allocation4], 0
    %s11 = scalar_lea.sflag [#allocation4], 1
    %12 = vsyncpa %s11, 0
    %13 = vsyncpa [#allocation7], 0
    %14 = vsyncpa [#allocation5], 0
    %s15 = scalar_lea.sflag [#allocation5], 1
    %16 = vsyncpa %s15, 0
    %17 = vsyncpa [#allocation10], 0
    %s18 = scalar_lea.sflag [#allocation10], 1
    %19 = vsyncpa %s18, 0
    loop: start=0, step=1, limit=4
    $region2: #{down_forward.3} parent=1 // loop_pre_header
      _
    $region3: #{down_forward.3} parent=1 // loop_header
      %s21 = sphi 0, %s25
      %p22 = scmp.ge.s32.totalorder %s21, 4
      %s31 = sphi 0, %s33
      %s34 = sphi 0, %s31
      %s35 = sphi 0, %s34
      %s51 = sphi 0, %s35
      %s55 = sphi 0, %s55
      %s57 = sphi 0, %s55
      %s58 = sphi 0, %s57
      %s72 = sphi 0, %s58
      %s78 = sphi 0, %s80
      %s81 = sphi 0, %s78
      %s82 = sphi 0, %s81
      %s98 = sphi 0, %s82
      %s104 = sphi 0, %s106
      %s107 = sphi 0, %s104
      %s108 = sphi 0, %s107
      %s124 = sphi 0, %s108
      %s130 = sphi 0, %s132
      %s133 = sphi 0, %s130
      %s134 = sphi 0, %s133
      %s150 = sphi 0, %s134
    $region4: #{down_forward.3} parent=1 // loop_header_branch
      %24 = sbr.rel (%p22) target = $region8
    $region5: #{down_forward.3} parent=1 // loop_body
      %s26 = ssub.s32 %s21, 1
      %s27 = ssub.s32 %s21, 2
      %s28 = sadd.s32 %s21, 1
      %s29 = ssub.s32 %s21, %s28
      %p30 = scmp.eq.s32.totalorder %s29, 0
      %s32 = sadd.s32 %s31, 1
      %s33 = scalar_select %p30, %s31, %s32
      %p36 = pneg %p30
      %p37 = scmp.eq.s32.totalorder %s21, 1
      %p38 = por %p36, %p37
      %p39 = scmp.ne.s32.totalorder %s31, %s34
      %p40 = scmp.eq.s32.totalorder %s21, 0
      %p41 = por %p39, %p40
      %p42 = scmp.ne.s32.totalorder %s31, %s34
      %p43 = scmp.eq.s32.totalorder %s26, 1
      %p44 = por %p42, %p43
      %p45 = scmp.ne.s32.totalorder %s34, %s35
      %p46 = scmp.eq.s32.totalorder %s26, 0
      %p47 = por %p45, %p46
      %p48 = scmp.ne.s32.totalorder %s34, %s35
      %p49 = scmp.eq.s32.totalorder %s27, 1
      %p50 = por %p48, %p49
      %p52 = scmp.ne.s32.totalorder %s35, %s51
      %p53 = scmp.eq.s32.totalorder %s27, 0
      %p54 = por %p52, %p53
      %s56 = sadd.s32 %s55, 1
      %p59 = scmp.eq.s32.totalorder %s21, 1
      %p60 = scmp.ne.s32.totalorder %s55, %s57
      %p61 = scmp.eq.s32.totalorder %s21, 0
      %p62 = por %p60, %p61
      %p63 = scmp.ne.s32.totalorder %s55, %s57
      %p64 = scmp.eq.s32.totalorder %s26, 1
      %p65 = por %p63, %p64
      %p66 = scmp.ne.s32.totalorder %s57, %s58
      %p67 = scmp.eq.s32.totalorder %s26, 0
      %p68 = por %p66, %p67
      %p69 = scmp.ne.s32.totalorder %s57, %s58
      %p70 = scmp.eq.s32.totalorder %s27, 1
      %p71 = por %p69, %p70
      %p73 = scmp.ne.s32.totalorder %s58, %s72
      %p74 = scmp.eq.s32.totalorder %s27, 0
      %p75 = por %p73, %p74
      %s76 = ssub.s32 %s21, %s28
      %p77 = scmp.eq.s32.totalorder %s76, 0
      %s79 = sadd.s32 %s78, 1
      %s80 = scalar_select %p77, %s78, %s79
      %p83 = pneg %p77
      %p84 = scmp.eq.s32.totalorder %s21, 1
      %p85 = por %p83, %p84
      %p86 = scmp.ne.s32.totalorder %s78, %s81
      %p87 = scmp.eq.s32.totalorder %s21, 0
      %p88 = por %p86, %p87
      %p89 = scmp.ne.s32.totalorder %s78, %s81
      %p90 = scmp.eq.s32.totalorder %s26, 1
      %p91 = por %p89, %p90
      %p92 = scmp.ne.s32.totalorder %s81, %s82
      %p93 = scmp.eq.s32.totalorder %s26, 0
      %p94 = por %p92, %p93
      %p95 = scmp.ne.s32.totalorder %s81, %s82
      %p96 = scmp.eq.s32.totalorder %s27, 1
      %p97 = por %p95, %p96
      %p99 = scmp.ne.s32.totalorder %s82, %s98
      %p100 = scmp.eq.s32.totalorder %s27, 0
      %p101 = por %p99, %p100
      %s102 = ssub.s32 %s21, %s28
      %p103 = scmp.eq.s32.totalorder %s102, 0
      %s105 = sadd.s32 %s104, 1
      %s106 = scalar_select %p103, %s104, %s105
      %p109 = pneg %p103
      %p110 = scmp.eq.s32.totalorder %s21, 1
      %p111 = por %p109, %p110
      %p112 = scmp.ne.s32.totalorder %s104, %s107
      %p113 = scmp.eq.s32.totalorder %s21, 0
      %p114 = por %p112, %p113
      %p115 = scmp.ne.s32.totalorder %s104, %s107
      %p116 = scmp.eq.s32.totalorder %s26, 1
      %p117 = por %p115, %p116
      %p118 = scmp.ne.s32.totalorder %s107, %s108
      %p119 = scmp.eq.s32.totalorder %s26, 0
      %p120 = por %p118, %p119
      %p121 = scmp.ne.s32.totalorder %s107, %s108
      %p122 = scmp.eq.s32.totalorder %s27, 1
      %p123 = por %p121, %p122
      %p125 = scmp.ne.s32.totalorder %s108, %s124
      %p126 = scmp.eq.s32.totalorder %s27, 0
      %p127 = por %p125, %p126
      %s128 = ssub.s32 %s21, %s28
      %p129 = scmp.eq.s32.totalorder %s128, 0
      %s131 = sadd.s32 %s130, 1
      %s132 = scalar_select %p129, %s130, %s131
      %p135 = pneg %p129
      %p136 = scmp.eq.s32.totalorder %s21, 1
      %p137 = por %p135, %p136
      %p138 = scmp.ne.s32.totalorder %s130, %s133
      %p139 = scmp.eq.s32.totalorder %s21, 0
      %p140 = por %p138, %p139
      %p141 = scmp.ne.s32.totalorder %s130, %s133
      %p142 = scmp.eq.s32.totalorder %s26, 1
      %p143 = por %p141, %p142
      %p144 = scmp.ne.s32.totalorder %s133, %s134
      %p145 = scmp.eq.s32.totalorder %s26, 0
      %p146 = por %p144, %p145
      %p147 = scmp.ne.s32.totalorder %s133, %s134
      %p148 = scmp.eq.s32.totalorder %s27, 1
      %p149 = por %p147, %p148
      %p151 = scmp.ne.s32.totalorder %s134, %s150
      %p152 = scmp.eq.s32.totalorder %s27, 0
      %p153 = por %p151, %p152
      %p154 = scmp.le.s32.totalorder 1, %s21
      %p155 = scmp.lt.s32.totalorder %s21, 3
      %p156 = pnand %p154, %p155
      %p157 = pneg %p156
      // Predicated region
      $region9: #{down_forward.3} parent=5 // pred_check
        _
      $region10: #{down_forward.3} parent=5 // pred_check_branch
        %159 = sbr.rel (%p156) target = $region12
      $region11: #{down_forward.3} parent=5 // pred_region
        %s160 = ssub.s32 %s21, 1
        // Predicated region
        $region13: #{down_forward.3} parent=11 // pred_check
          %p161 = pneg %p68
        $region14: #{down_forward.3} parent=11 // pred_check_branch
          %163 = sbr.rel (%p161) target = $region16
        $region15: #{down_forward.3} parent=11 // pred_region
          %s165 = ssub.s32 18432, 18432
          %166 = vsyncadd [#allocation7], %s165
          %s167 = sshll.u32 [#allocation6], 4
          %s168 = int_to_ptr.vmem [resolvable:$true] %s167
          %173 = dma.hbm_to_vmem [thread:$0]  %s1, 18432, %s168, [#allocation7], 128, 128, 8
        $region16: #{down_forward.3} parent=11 // pred_fallthru
          _
      $region12: #{down_forward.3} parent=5 // pred_fallthru
        _
      %p174 = scmp.lt.s32.totalorder %s21, 2
      // Predicated region
      $region17: #{down_forward.3} parent=5 // pred_check
        %p175 = pneg %p174
      $region18: #{down_forward.3} parent=5 // pred_check_branch
        %177 = sbr.rel (%p175) target = $region20
      $region19: #{down_forward.3} parent=5 // pred_region
        // Predicated region
        $region21: #{down_forward.3} parent=19 // pred_check
          %p178 = pneg %p41
        $region22: #{down_forward.3} parent=19 // pred_check_branch
          %180 = sbr.rel (%p178) target = $region24
        $region23: #{down_forward.3} parent=19 // pred_region
          %s181 = sand.u32 %s31, 1
          %s182 = scalar_lea.sflag [#allocation4], %s181
          %s183 = sand.u32 %s31, 1
          %s184 = smul.addr %s183, 256
          %s185 = scalar_lea.vmem [#allocation3], %s184
          %s187 = ssub.s32 4096, 4096
          %188 = vsyncadd %s182, %s187
          %s189 = smul.addr %s21, 32
          %s190 = smul.addr %s189, 128
          %s191 = scalar_lea.hbm %s0, %s190
          %s192 = sshll.u32 %s185, 4
          %s193 = int_to_ptr.vmem [resolvable:$true] %s192
          %198 = dma.hbm_to_vmem [thread:$0]  %s191, 4096, %s193, %s182, 256, 256, 16
        $region24: #{down_forward.3} parent=19 // pred_fallthru
          _
      $region20: #{down_forward.3} parent=5 // pred_fallthru
        _
      %p199 = scmp.le.s32.totalorder 1, %s21
      %p200 = scmp.lt.s32.totalorder %s21, 3
      %p201 = pnand %p199, %p200
      %p202 = pneg %p201
      // Predicated region
      $region25: #{down_forward.3} parent=5 // pred_check
        _
      $region26: #{down_forward.3} parent=5 // pred_check_branch
        %204 = sbr.rel (%p201) target = $region28
      $region27: #{down_forward.3} parent=5 // pred_region
        %s205 = ssub.s32 %s21, 1
        %s206 = sand.u32 %s34, 1
        %s207 = scalar_lea.sflag [#allocation4], %s206
        %s208 = sand.u32 %s34, 1
        %s209 = smul.addr %s208, 256
        %s210 = scalar_lea.vmem [#allocation3], %s209
        // Predicated region
        $region29: #{down_forward.3} parent=27 // pred_check
          %p211 = pneg %p47
        $region30: #{down_forward.3} parent=27 // pred_check_branch
          %213 = sbr.rel (%p211) target = $region32
        $region31: #{down_forward.3} parent=27 // pred_region
          %214 = dma.done %s207, 4096
        $region32: #{down_forward.3} parent=27 // pred_fallthru
          _
        // Predicated region
        $region33: #{down_forward.3} parent=27 // pred_check
          %p215 = pneg %p68
        $region34: #{down_forward.3} parent=27 // pred_check_branch
          %217 = sbr.rel (%p215) target = $region36
        $region35: #{down_forward.3} parent=27 // pred_region
          %218 = dma.done [#allocation7], 18432
        $region36: #{down_forward.3} parent=27 // pred_fallthru
          _
        %s219 = sand.u32 %s34, 1
        %s220 = scalar_lea.sflag [#allocation4], %s219
        %s221 = sand.u32 %s34, 1
        %s222 = smul.addr %s221, 256
        %s223 = scalar_lea.vmem [#allocation3], %s222
        %p224 = pneg %p47
        %p225 = pneg %p44
        %p226 = pneg %p68
        %p227 = pneg %p65
        %p228 = pneg %p94
        %p229 = pneg %p91
        %s230 = sand.u32 %s81, 1
        %s231 = scalar_lea.sflag [#allocation5], %s230
        %s232 = sand.u32 %s81, 1
        %s233 = smul.addr %s232, 64
        %s234 = scalar_lea.vmem [#allocation8], %s233
        %p235 = pneg %p120
        %p236 = pneg %p117
        %s237 = sand.u32 %s26, 1
        %s238 = scalar_lea.sflag [#allocation10], %s237
        %s239 = sand.u32 %s107, 1
        %s240 = scalar_lea.vmem [#allocation9], %s239
        %p241 = pneg %p146
        %p242 = pneg %p143
        %s243 = sand.u32 %s26, 1
        %s244 = scalar_lea.sflag [#allocation10], %s243
        %s245 = sand.u32 %s133, 1
        %s246 = scalar_lea.vmem [#allocation11], %s245
        %v247 = vld [vmem:[%s210] sm:$0xff]
        %v248 = vld [vmem:[%s210 + $0x8] sm:$0xff]
        %v249 = vld [vmem:[%s210 + $0x20] sm:$0xff]
        %v250 = vld [vmem:[%s210 + $0x28] sm:$0xff]
        %v251 = vld [vmem:[%s210 + $0x40] sm:$0xff]
        %v252 = vld [vmem:[%s210 + $0x48] sm:$0xff]
        %v253 = vld [vmem:[%s210 + $0x60] sm:$0xff]
        %v254 = vld [vmem:[%s210 + $0x68] sm:$0xff]
        %v255 = vld [vmem:[%s210 + $0x80] sm:$0xff]
        %v256 = vld [vmem:[%s210 + $0x88] sm:$0xff]
        %v257 = vld [vmem:[%s210 + $0xa0] sm:$0xff]
        %v258 = vld [vmem:[%s210 + $0xa8] sm:$0xff]
        %v259 = vld [vmem:[%s210 + $0xc0] sm:$0xff]
        %v260 = vld [vmem:[%s210 + $0xc8] sm:$0xff]
        %v261 = vld [vmem:[%s210 + $0xe0] sm:$0xff]
        %v262 = vld [vmem:[%s210 + $0xe8] sm:$0xff]
        %s263 = scalar_lea.vmem %s210, 16 [#allocation3]
        %v264 = vld [vmem:[%s263] sm:$0xff]
        %v265 = vld [vmem:[%s263 + $0x8] sm:$0xff]
        %v266 = vld [vmem:[%s263 + $0x20] sm:$0xff]
        %v267 = vld [vmem:[%s263 + $0x28] sm:$0xff]
        %v268 = vld [vmem:[%s263 + $0x40] sm:$0xff]
        %v269 = vld [vmem:[%s263 + $0x48] sm:$0xff]
        %v270 = vld [vmem:[%s263 + $0x60] sm:$0xff]
        %v271 = vld [vmem:[%s263 + $0x68] sm:$0xff]
        %v272 = vld [vmem:[%s263 + $0x80] sm:$0xff]
        %v273 = vld [vmem:[%s263 + $0x88] sm:$0xff]
        %v274 = vld [vmem:[%s263 + $0xa0] sm:$0xff]
        %v275 = vld [vmem:[%s263 + $0xa8] sm:$0xff]
        %v276 = vld [vmem:[%s263 + $0xc0] sm:$0xff]
        %v277 = vld [vmem:[%s263 + $0xc8] sm:$0xff]
        %v278 = vld [vmem:[%s263 + $0xe0] sm:$0xff]
        %v279 = vld [vmem:[%s263 + $0xe8] sm:$0xff]
        %v280 = vmax.f32 %v247, %v264
        %v281 = vmax.f32 %v248, %v265
        %v282 = vmax.f32 %v249, %v266
        %v283 = vmax.f32 %v250, %v267
        %v284 = vmax.f32 %v251, %v268
        %v285 = vmax.f32 %v252, %v269
        %v286 = vmax.f32 %v253, %v270
        %v287 = vmax.f32 %v254, %v271
        %v288 = vmax.f32 %v255, %v272
        %v289 = vmax.f32 %v256, %v273
        %v290 = vmax.f32 %v257, %v274
        %v291 = vmax.f32 %v258, %v275
        %v292 = vmax.f32 %v259, %v276
        %v293 = vmax.f32 %v260, %v277
        %v294 = vmax.f32 %v261, %v278
        %v295 = vmax.f32 %v262, %v279
        %v296 = vmax.f32 %v280, %v281
        %v297 = vmax.f32 %v282, %v283
        %v298 = vmax.f32 %v284, %v285
        %v299 = vmax.f32 %v286, %v287
        %v300 = vmax.f32 %v288, %v289
        %v301 = vmax.f32 %v290, %v291
        %v302 = vmax.f32 %v292, %v293
        %v303 = vmax.f32 %v294, %v295
        %304 = vst [vmem:[#allocation2] sm:$0xff] 0.0
        %305 = vst [vmem:[#allocation2 + $0x8] sm:$0x3] 0.0
        %306 = vst [vmem:[#allocation2 + $0x10] sm:$0xff] 0.0
        %307 = vst [vmem:[#allocation2 + $0x18] sm:$0x3] 0.0
        %308 = vst [vmem:[#allocation2 + $0x20] sm:$0xff] 0.0
        %309 = vst [vmem:[#allocation2 + $0x28] sm:$0x3] 0.0
        %310 = vst [vmem:[#allocation2 + $0x30] sm:$0xff] 0.0
        %311 = vst [vmem:[#allocation2 + $0x38] sm:$0x3] 0.0
        %312 = vst [vmem:[#allocation2 + $0x40] sm:$0xff] 0.0
        %313 = vst [vmem:[#allocation2 + $0x48] sm:$0x3] 0.0
        %314 = vst [vmem:[#allocation2 + $0x50] sm:$0xff] 0.0
        %315 = vst [vmem:[#allocation2 + $0x58] sm:$0x3] 0.0
        %316 = vst [vmem:[#allocation2 + $0x60] sm:$0xff] 0.0
        %317 = vst [vmem:[#allocation2 + $0x68] sm:$0x3] 0.0
        %318 = vst [vmem:[#allocation2 + $0x70] sm:$0xff] 0.0
        %319 = vst [vmem:[#allocation2 + $0x78] sm:$0x3] 0.0
        %320 = vst [vmem:[#allocation2 + $0x80] sm:$0xff] 0.0
        %321 = vst [vmem:[#allocation2 + $0x88] sm:$0x3] 0.0
        %322 = vst [vmem:[#allocation2 + $0x90] sm:$0xff] 0.0
        %323 = vst [vmem:[#allocation2 + $0x98] sm:$0x3] 0.0
        %s324 = scalar_lea.vmem [#allocation2], 16
        %325 = vst [vmem:[%s324 + $0x1] sm:$0xff] %v296
        %326 = vst [vmem:[%s324 + $0x11] sm:$0xff] %v297
        %327 = vst [vmem:[%s324 + $0x21] sm:$0xff] %v298
        %328 = vst [vmem:[%s324 + $0x31] sm:$0xff] %v299
        %329 = vst [vmem:[%s324 + $0x41] sm:$0xff] %v300
        %330 = vst [vmem:[%s324 + $0x51] sm:$0xff] %v301
        %331 = vst [vmem:[%s324 + $0x61] sm:$0xff] %v302
        %332 = vst [vmem:[%s324 + $0x71] sm:$0xff] %v303
        %v333 = vld [vmem:[#allocation2] sm:$0xff]
        %v334 = vld [vmem:[#allocation2 + $0x10] sm:$0xff]
        %v335 = vld [vmem:[#allocation2 + $0x20] sm:$0xff]
        %v336 = vld [vmem:[#allocation2 + $0x30] sm:$0xff]
        %v337 = vld [vmem:[#allocation2 + $0x40] sm:$0xff]
        %v338 = vld [vmem:[#allocation2 + $0x50] sm:$0xff]
        %v339 = vld [vmem:[#allocation2 + $0x60] sm:$0xff]
        %v340 = vld [vmem:[#allocation2 + $0x70] sm:$0xff]
        %v341 = vld [vmem:[#allocation6] sm:$0xff]
        %v342 = vld [vmem:[#allocation6 + $0x8] sm:$0xff]
        %v343 = vld [vmem:[#allocation6 + $0x10] sm:$0xff]
        %v344 = vld [vmem:[#allocation6 + $0x18] sm:$0xff]
        %v345 = vld [vmem:[#allocation6 + $0x20] sm:$0xff]
        %v346 = vld [vmem:[#allocation6 + $0x28] sm:$0xff]
        %v347 = vld [vmem:[#allocation6 + $0x30] sm:$0xff]
        %v348 = vld [vmem:[#allocation6 + $0x38] sm:$0xff]
        %v349 = vld [vmem:[#allocation6 + $0x40] sm:$0xff]
        %v350 = vld [vmem:[#allocation6 + $0x48] sm:$0xff]
        %v351 = vld [vmem:[#allocation6 + $0x50] sm:$0xff]
        %v352 = vld [vmem:[#allocation6 + $0x58] sm:$0xff]
        %v353 = vld [vmem:[#allocation6 + $0x60] sm:$0xff]
        %v354 = vld [vmem:[#allocation6 + $0x68] sm:$0xff]
        %v355 = vld [vmem:[#allocation6 + $0x70] sm:$0xff]
        %v356 = vld [vmem:[#allocation6 + $0x78] sm:$0xff]
        %v357 = vld [vmem:[#allocation2 + $0x1] sm:$0xff]
        %v358 = vld [vmem:[#allocation2 + $0x11] sm:$0xff]
        %v359 = vld [vmem:[#allocation2 + $0x21] sm:$0xff]
        %v360 = vld [vmem:[#allocation2 + $0x31] sm:$0xff]
        %v361 = vld [vmem:[#allocation2 + $0x41] sm:$0xff]
        %v362 = vld [vmem:[#allocation2 + $0x51] sm:$0xff]
        %v363 = vld [vmem:[#allocation2 + $0x61] sm:$0xff]
        %v364 = vld [vmem:[#allocation2 + $0x71] sm:$0xff]
        %s365 = scalar_lea.vmem [#allocation6], 128
        %v366 = vld [vmem:[%s365] sm:$0xff]
        %v367 = vld [vmem:[%s365 + $0x8] sm:$0xff]
        %v368 = vld [vmem:[%s365 + $0x10] sm:$0xff]
        %v369 = vld [vmem:[%s365 + $0x18] sm:$0xff]
        %v370 = vld [vmem:[%s365 + $0x20] sm:$0xff]
        %v371 = vld [vmem:[%s365 + $0x28] sm:$0xff]
        %v372 = vld [vmem:[%s365 + $0x30] sm:$0xff]
        %v373 = vld [vmem:[%s365 + $0x38] sm:$0xff]
        %v374 = vld [vmem:[%s365 + $0x40] sm:$0xff]
        %v375 = vld [vmem:[%s365 + $0x48] sm:$0xff]
        %v376 = vld [vmem:[%s365 + $0x50] sm:$0xff]
        %v377 = vld [vmem:[%s365 + $0x58] sm:$0xff]
        %v378 = vld [vmem:[%s365 + $0x60] sm:$0xff]
        %v379 = vld [vmem:[%s365 + $0x68] sm:$0xff]
        %v380 = vld [vmem:[%s365 + $0x70] sm:$0xff]
        %v381 = vld [vmem:[%s365 + $0x78] sm:$0xff]
        %382 = vmatprep.subr.mxu0 0.0
        %383 = vmatpush1.msra.mxu0 %v366
        %384 = vmatprep.subr.mxu0 0.0
        %385 = vmatpush1.msra.mxu0 %v367
        %386 = vmatprep.subr.mxu0 0.0
        %387 = vmatpush1.msra.mxu0 %v368
        %388 = vmatprep.subr.mxu0 0.0
        %389 = vmatpush1.msra.mxu0 %v369
        %390 = vmatprep.subr.mxu0 0.0
        %391 = vmatpush1.msra.mxu0 %v370
        %392 = vmatprep.subr.mxu0 0.0
        %393 = vmatpush1.msra.mxu0 %v371
        %394 = vmatprep.subr.mxu0 0.0
        %395 = vmatpush1.msra.mxu0 %v372
        %396 = vmatprep.subr.mxu0 0.0
        %397 = vmatpush1.msra.mxu0 %v373
        %398 = vmatprep.subr.mxu0 0.0
        %399 = vmatpush1.msra.mxu0 %v374
        %400 = vmatprep.subr.mxu0 0.0
        %401 = vmatpush1.msra.mxu0 %v375
        %402 = vmatprep.subr.mxu0 0.0
        %403 = vmatpush1.msra.mxu0 %v376
        %404 = vmatprep.subr.mxu0 0.0
        %405 = vmatpush1.msra.mxu0 %v377
        %406 = vmatprep.subr.mxu0 0.0
        %407 = vmatpush1.msra.mxu0 %v378
        %408 = vmatprep.subr.mxu0 0.0
        %409 = vmatpush1.msra.mxu0 %v379
        %410 = vmatprep.subr.mxu0 0.0
        %411 = vmatpush1.msra.mxu0 %v380
        %412 = vmatprep.subr.mxu0 0.0
        %413 = vmatpush1.msra.mxu0 %v381
        %414 = vmatprep.subr.mxu0 0.0
        %415 = vmatpush1.msra.mxu0 0.0
        %416 = vmatprep.subr.mxu0 0.0
        %417 = vmatpush1.msra.mxu0 0.0
        %418 = vmatprep.subr.mxu0 0.0
        %419 = vmatpush1.msra.mxu0 0.0
        %420 = vmatprep.subr.mxu0 0.0
        %421 = vmatpush1.msra.mxu0 0.0
        %422 = vmatprep.subr.mxu0 0.0
        %423 = vmatpush1.msra.mxu0 0.0
        %424 = vmatprep.subr.mxu0 0.0
        %425 = vmatpush1.msra.mxu0 0.0
        %426 = vmatprep.subr.mxu0 0.0
        %427 = vmatpush1.msra.mxu0 0.0
        %428 = vmatprep.subr.mxu0 0.0
        %429 = vmatpush1.msra.mxu0 0.0
        %430 = vmatprep.subr.mxu0 0.0
        %431 = vmatpush1.msra.mxu0 0.0
        %432 = vmatprep.subr.mxu0 0.0
        %433 = vmatpush1.msra.mxu0 0.0
        %434 = vmatprep.subr.mxu0 0.0
        %435 = vmatpush1.msra.mxu0 0.0
        %436 = vmatprep.subr.mxu0 0.0
        %437 = vmatpush1.msra.mxu0 0.0
        %438 = vmatprep.subr.mxu0 0.0
        %439 = vmatpush1.msra.mxu0 0.0
        %440 = vmatprep.subr.mxu0 0.0
        %441 = vmatpush1.msra.mxu0 0.0
        %442 = vmatprep.subr.mxu0 0.0
        %443 = vmatpush1.msra.mxu0 0.0
        %444 = vmatprep.subr.mxu0 0.0
        %445 = vmatpush1.msra.mxu0 0.0
        %446 = vmatprep.mubr.f32.mxu0 0.0
        %447 = vmatmul.mubr.f32.gmra.mrb[0].mxu0 %v357
        %v448 = vpop.f32.mrb[0].mxu0
        %v449 = vadd.f32 0.0, %v448
        %v450 = vpop.f32.mrb[0].mxu0
        %451 = vmatprep.mubr.f32.mxu0 0.0
        %452 = vmatmul.mubr.f32.gmra.mrb[0].mxu0 %v358
        %v453 = vpop.f32.mrb[0].mxu0
        %v454 = vadd.f32 0.0, %v453
        %v455 = vpop.f32.mrb[0].mxu0
        %456 = vmatprep.mubr.f32.mxu0 0.0
        %457 = vmatmul.mubr.f32.gmra.mrb[0].mxu0 %v359
        %v458 = vpop.f32.mrb[0].mxu0
        %v459 = vadd.f32 0.0, %v458
        %v460 = vpop.f32.mrb[0].mxu0
        %461 = vmatprep.mubr.f32.mxu0 0.0
        %462 = vmatmul.mubr.f32.gmra.mrb[0].mxu0 %v360
        %v463 = vpop.f32.mrb[0].mxu0
        %v464 = vadd.f32 0.0, %v463
        %v465 = vpop.f32.mrb[0].mxu0
        %466 = vmatprep.mubr.f32.mxu0 0.0
        %467 = vmatmul.mubr.f32.gmra.mrb[0].mxu0 %v361
        %v468 = vpop.f32.mrb[0].mxu0
        %v469 = vadd.f32 0.0, %v468
        %v470 = vpop.f32.mrb[0].mxu0
        %471 = vmatprep.mubr.f32.mxu0 0.0
        %472 = vmatmul.mubr.f32.gmra.mrb[0].mxu0 %v362
        %v473 = vpop.f32.mrb[0].mxu0
        %v474 = vadd.f32 0.0, %v473
        %v475 = vpop.f32.mrb[0].mxu0
        %476 = vmatprep.mubr.f32.mxu0 0.0
        %477 = vmatmul.mubr.f32.gmra.mrb[0].mxu0 %v363
        %v478 = vpop.f32.mrb[0].mxu0
        %v479 = vadd.f32 0.0, %v478
        %v480 = vpop.f32.mrb[0].mxu0
        %481 = vmatprep.mubr.f32.mxu0 0.0
        %482 = vmatmul.mubr.f32.gmra.mrb[0].mxu0 %v364
        %v483 = vpop.f32.mrb[0].mxu0
        %v484 = vadd.f32 0.0, %v483
        %v485 = vpop.f32.mrb[0].mxu0
        %486 = vdwg.mxu0
        %487 = vmatprep.subr.mxu0 0.0
        %488 = vmatpush1.msra.mxu0 %v341
        %489 = vmatprep.subr.mxu0 0.0
        %490 = vmatpush1.msra.mxu0 %v342
        %491 = vmatprep.subr.mxu0 0.0
        %492 = vmatpush1.msra.mxu0 %v343
        %493 = vmatprep.subr.mxu0 0.0
        %494 = vmatpush1.msra.mxu0 %v344
        %495 = vmatprep.subr.mxu0 0.0
        %496 = vmatpush1.msra.mxu0 %v345
        %497 = vmatprep.subr.mxu0 0.0
        %498 = vmatpush1.msra.mxu0 %v346
        %499 = vmatprep.subr.mxu0 0.0
        %500 = vmatpush1.msra.mxu0 %v347
        %501 = vmatprep.subr.mxu0 0.0
        %502 = vmatpush1.msra.mxu0 %v348
        %503 = vmatprep.subr.mxu0 0.0
        %504 = vmatpush1.msra.mxu0 %v349
        %505 = vmatprep.subr.mxu0 0.0
        %506 = vmatpush1.msra.mxu0 %v350
        %507 = vmatprep.subr.mxu0 0.0
        %508 = vmatpush1.msra.mxu0 %v351
        %509 = vmatprep.subr.mxu0 0.0
        %510 = vmatpush1.msra.mxu0 %v352
        %511 = vmatprep.subr.mxu0 0.0
        %512 = vmatpush1.msra.mxu0 %v353
        %513 = vmatprep.subr.mxu0 0.0
        %514 = vmatpush1.msra.mxu0 %v354
        %515 = vmatprep.subr.mxu0 0.0
        %516 = vmatpush1.msra.mxu0 %v355
        %517 = vmatprep.subr.mxu0 0.0
        %518 = vmatpush1.msra.mxu0 %v356
        %519 = vmatprep.subr.mxu0 0.0
        %520 = vmatpush1.msra.mxu0 0.0
        %521 = vmatprep.subr.mxu0 0.0
        %522 = vmatpush1.msra.mxu0 0.0
        %523 = vmatprep.subr.mxu0 0.0
        %524 = vmatpush1.msra.mxu0 0.0
        %525 = vmatprep.subr.mxu0 0.0
        %526 = vmatpush1.msra.mxu0 0.0
        %527 = vmatprep.subr.mxu0 0.0
        %528 = vmatpush1.msra.mxu0 0.0
        %529 = vmatprep.subr.mxu0 0.0
        %530 = vmatpush1.msra.mxu0 0.0
        %531 = vmatprep.subr.mxu0 0.0
        %532 = vmatpush1.msra.mxu0 0.0
        %533 = vmatprep.subr.mxu0 0.0
        %534 = vmatpush1.msra.mxu0 0.0
        %535 = vmatprep.subr.mxu0 0.0
        %536 = vmatpush1.msra.mxu0 0.0
        %537 = vmatprep.subr.mxu0 0.0
        %538 = vmatpush1.msra.mxu0 0.0
        %539 = vmatprep.subr.mxu0 0.0
        %540 = vmatpush1.msra.mxu0 0.0
        %541 = vmatprep.subr.mxu0 0.0
        %542 = vmatpush1.msra.mxu0 0.0
        %543 = vmatprep.subr.mxu0 0.0
        %544 = vmatpush1.msra.mxu0 0.0
        %545 = vmatprep.subr.mxu0 0.0
        %546 = vmatpush1.msra.mxu0 0.0
        %547 = vmatprep.subr.mxu0 0.0
        %548 = vmatpush1.msra.mxu0 0.0
        %549 = vmatprep.subr.mxu0 0.0
        %550 = vmatpush1.msra.mxu0 0.0
        %551 = vmatprep.mubr.f32.mxu0 0.0
        %552 = vmatmul.mubr.f32.gmra.mrb[0].mxu0 %v333
        %v553 = vpop.f32.mrb[0].mxu0
        %v554 = vadd.f32 %v449, %v553
        %v555 = vpop.f32.mrb[0].mxu0
        %556 = vmatprep.mubr.f32.mxu0 0.0
        %557 = vmatmul.mubr.f32.gmra.mrb[0].mxu0 %v334
        %v558 = vpop.f32.mrb[0].mxu0
        %v559 = vadd.f32 %v454, %v558
        %v560 = vpop.f32.mrb[0].mxu0
        %561 = vmatprep.mubr.f32.mxu0 0.0
        %562 = vmatmul.mubr.f32.gmra.mrb[0].mxu0 %v335
        %v563 = vpop.f32.mrb[0].mxu0
        %v564 = vadd.f32 %v459, %v563
        %v565 = vpop.f32.mrb[0].mxu0
        %566 = vmatprep.mubr.f32.mxu0 0.0
        %567 = vmatmul.mubr.f32.gmra.mrb[0].mxu0 %v336
        %v568 = vpop.f32.mrb[0].mxu0
        %v569 = vadd.f32 %v464, %v568
        %v570 = vpop.f32.mrb[0].mxu0
        %571 = vmatprep.mubr.f32.mxu0 0.0
        %572 = vmatmul.mubr.f32.gmra.mrb[0].mxu0 %v337
        %v573 = vpop.f32.mrb[0].mxu0
        %v574 = vadd.f32 %v469, %v573
        %v575 = vpop.f32.mrb[0].mxu0
        %576 = vmatprep.mubr.f32.mxu0 0.0
        %577 = vmatmul.mubr.f32.gmra.mrb[0].mxu0 %v338
        %v578 = vpop.f32.mrb[0].mxu0
        %v579 = vadd.f32 %v474, %v578
        %v580 = vpop.f32.mrb[0].mxu0
        %581 = vmatprep.mubr.f32.mxu0 0.0
        %582 = vmatmul.mubr.f32.gmra.mrb[0].mxu0 %v339
        %v583 = vpop.f32.mrb[0].mxu0
        %v584 = vadd.f32 %v479, %v583
        %v585 = vpop.f32.mrb[0].mxu0
        %586 = vmatprep.mubr.f32.mxu0 0.0
        %587 = vmatmul.mubr.f32.gmra.mrb[0].mxu0 %v340
        %v588 = vpop.f32.mrb[0].mxu0
        %v589 = vadd.f32 %v484, %v588
        %v590 = vpop.f32.mrb[0].mxu0
        %591 = vdwg.mxu0
        %v592 = vld [vmem:[#allocation2 + $0x2] sm:$0xff]
        %v593 = vld [vmem:[#allocation2 + $0x12] sm:$0xff]
        %v594 = vld [vmem:[#allocation2 + $0x22] sm:$0xff]
        %v595 = vld [vmem:[#allocation2 + $0x32] sm:$0xff]
        %v596 = vld [vmem:[#allocation2 + $0x42] sm:$0xff]
        %v597 = vld [vmem:[#allocation2 + $0x52] sm:$0xff]
        %v598 = vld [vmem:[#allocation2 + $0x62] sm:$0xff]
        %v599 = vld [vmem:[#allocation2 + $0x72] sm:$0xff]
        %s600 = scalar_lea.vmem [#allocation6], 256
        %v601 = vld [vmem:[%s600] sm:$0xff]
        %v602 = vld [vmem:[%s600 + $0x8] sm:$0xff]
        %v603 = vld [vmem:[%s600 + $0x10] sm:$0xff]
        %v604 = vld [vmem:[%s600 + $0x18] sm:$0xff]
        %v605 = vld [vmem:[%s600 + $0x20] sm:$0xff]
        %v606 = vld [vmem:[%s600 + $0x28] sm:$0xff]
        %v607 = vld [vmem:[%s600 + $0x30] sm:$0xff]
        %v608 = vld [vmem:[%s600 + $0x38] sm:$0xff]
        %v609 = vld [vmem:[%s600 + $0x40] sm:$0xff]
        %v610 = vld [vmem:[%s600 + $0x48] sm:$0xff]
        %v611 = vld [vmem:[%s600 + $0x50] sm:$0xff]
        %v612 = vld [vmem:[%s600 + $0x58] sm:$0xff]
        %v613 = vld [vmem:[%s600 + $0x60] sm:$0xff]
        %v614 = vld [vmem:[%s600 + $0x68] sm:$0xff]
        %v615 = vld [vmem:[%s600 + $0x70] sm:$0xff]
        %v616 = vld [vmem:[%s600 + $0x78] sm:$0xff]
        %617 = vmatprep.subr.mxu0 0.0
        %618 = vmatpush1.msra.mxu0 %v601
        %619 = vmatprep.subr.mxu0 0.0
        %620 = vmatpush1.msra.mxu0 %v602
        %621 = vmatprep.subr.mxu0 0.0
        %622 = vmatpush1.msra.mxu0 %v603
        %623 = vmatprep.subr.mxu0 0.0
        %624 = vmatpush1.msra.mxu0 %v604
        %625 = vmatprep.subr.mxu0 0.0
        %626 = vmatpush1.msra.mxu0 %v605
        %627 = vmatprep.subr.mxu0 0.0
        %628 = vmatpush1.msra.mxu0 %v606
        %629 = vmatprep.subr.mxu0 0.0
        %630 = vmatpush1.msra.mxu0 %v607
        %631 = vmatprep.subr.mxu0 0.0
        %632 = vmatpush1.msra.mxu0 %v608
        %633 = vmatprep.subr.mxu0 0.0
        %634 = vmatpush1.msra.mxu0 %v609
        %635 = vmatprep.subr.mxu0 0.0
        %636 = vmatpush1.msra.mxu0 %v610
        %637 = vmatprep.subr.mxu0 0.0
        %638 = vmatpush1.msra.mxu0 %v611
        %639 = vmatprep.subr.mxu0 0.0
        %640 = vmatpush1.msra.mxu0 %v612
        %641 = vmatprep.subr.mxu0 0.0
        %642 = vmatpush1.msra.mxu0 %v613
        %643 = vmatprep.subr.mxu0 0.0
        %644 = vmatpush1.msra.mxu0 %v614
        %645 = vmatprep.subr.mxu0 0.0
        %646 = vmatpush1.msra.mxu0 %v615
        %647 = vmatprep.subr.mxu0 0.0
        %648 = vmatpush1.msra.mxu0 %v616
        %649 = vmatprep.subr.mxu0 0.0
        %650 = vmatpush1.msra.mxu0 0.0
        %651 = vmatprep.subr.mxu0 0.0
        %652 = vmatpush1.msra.mxu0 0.0
        %653 = vmatprep.subr.mxu0 0.0
        %654 = vmatpush1.msra.mxu0 0.0
        %655 = vmatprep.subr.mxu0 0.0
        %656 = vmatpush1.msra.mxu0 0.0
        %657 = vmatprep.subr.mxu0 0.0
        %658 = vmatpush1.msra.mxu0 0.0
        %659 = vmatprep.subr.mxu0 0.0
        %660 = vmatpush1.msra.mxu0 0.0
        %661 = vmatprep.subr.mxu0 0.0
        %662 = vmatpush1.msra.mxu0 0.0
        %663 = vmatprep.subr.mxu0 0.0
        %664 = vmatpush1.msra.mxu0 0.0
        %665 = vmatprep.subr.mxu0 0.0
        %666 = vmatpush1.msra.mxu0 0.0
        %667 = vmatprep.subr.mxu0 0.0
        %668 = vmatpush1.msra.mxu0 0.0
        %669 = vmatprep.subr.mxu0 0.0
        %670 = vmatpush1.msra.mxu0 0.0
        %671 = vmatprep.subr.mxu0 0.0
        %672 = vmatpush1.msra.mxu0 0.0
        %673 = vmatprep.subr.mxu0 0.0
        %674 = vmatpush1.msra.mxu0 0.0
        %675 = vmatprep.subr.mxu0 0.0
        %676 = vmatpush1.msra.mxu0 0.0
        %677 = vmatprep.subr.mxu0 0.0
        %678 = vmatpush1.msra.mxu0 0.0
        %679 = vmatprep.subr.mxu0 0.0
        %680 = vmatpush1.msra.mxu0 0.0
        %681 = vmatprep.mubr.f32.mxu0 0.0
        %682 = vmatmul.mubr.f32.gmra.mrb[0].mxu0 %v592
        %v683 = vpop.f32.mrb[0].mxu0
        %v684 = vadd.f32 0.0, %v683
        %v685 = vpop.f32.mrb[0].mxu0
        %686 = vmatprep.mubr.f32.mxu0 0.0
        %687 = vmatmul.mubr.f32.gmra.mrb[0].mxu0 %v593
        %v688 = vpop.f32.mrb[0].mxu0
        %v689 = vadd.f32 0.0, %v688
        %v690 = vpop.f32.mrb[0].mxu0
        %691 = vmatprep.mubr.f32.mxu0 0.0
        %692 = vmatmul.mubr.f32.gmra.mrb[0].mxu0 %v594
        %v693 = vpop.f32.mrb[0].mxu0
        %v694 = vadd.f32 0.0, %v693
        %v695 = vpop.f32.mrb[0].mxu0
        %696 = vmatprep.mubr.f32.mxu0 0.0
        %697 = vmatmul.mubr.f32.gmra.mrb[0].mxu0 %v595
        %v698 = vpop.f32.mrb[0].mxu0
        %v699 = vadd.f32 0.0, %v698
        %v700 = vpop.f32.mrb[0].mxu0
        %701 = vmatprep.mubr.f32.mxu0 0.0
        %702 = vmatmul.mubr.f32.gmra.mrb[0].mxu0 %v596
        %v703 = vpop.f32.mrb[0].mxu0
        %v704 = vadd.f32 0.0, %v703
        %v705 = vpop.f32.mrb[0].mxu0
        %706 = vmatprep.mubr.f32.mxu0 0.0
        %707 = vmatmul.mubr.f32.gmra.mrb[0].mxu0 %v597
        %v708 = vpop.f32.mrb[0].mxu0
        %v709 = vadd.f32 0.0, %v708
        %v710 = vpop.f32.mrb[0].mxu0
        %711 = vmatprep.mubr.f32.mxu0 0.0
        %712 = vmatmul.mubr.f32.gmra.mrb[0].mxu0 %v598
        %v713 = vpop.f32.mrb[0].mxu0
        %v714 = vadd.f32 0.0, %v713
        %v715 = vpop.f32.mrb[0].mxu0
        %716 = vmatprep.mubr.f32.mxu0 0.0
        %717 = vmatmul.mubr.f32.gmra.mrb[0].mxu0 %v599
        %v718 = vpop.f32.mrb[0].mxu0
        %v719 = vadd.f32 0.0, %v718
        %v720 = vpop.f32.mrb[0].mxu0
        %721 = vdwg.mxu0
        %v722 = vadd.f32 %v554, %v684
        %v723 = vadd.f32 %v559, %v689
        %v724 = vadd.f32 %v564, %v694
        %v725 = vadd.f32 %v569, %v699
        %v726 = vadd.f32 %v574, %v704
        %v727 = vadd.f32 %v579, %v709
        %v728 = vadd.f32 %v584, %v714
        %v729 = vadd.f32 %v589, %v719
        %v730 = vld [vmem:[%s324] sm:$0xff]
        %v731 = vld [vmem:[%s324 + $0x10] sm:$0xff]
        %v732 = vld [vmem:[%s324 + $0x20] sm:$0xff]
        %v733 = vld [vmem:[%s324 + $0x30] sm:$0xff]
        %v734 = vld [vmem:[%s324 + $0x40] sm:$0xff]
        %v735 = vld [vmem:[%s324 + $0x50] sm:$0xff]
        %v736 = vld [vmem:[%s324 + $0x60] sm:$0xff]
        %v737 = vld [vmem:[%s324 + $0x70] sm:$0xff]
        %s738 = scalar_lea.vmem [#allocation6], 384
        %v739 = vld [vmem:[%s738] sm:$0xff]
        %v740 = vld [vmem:[%s738 + $0x8] sm:$0xff]
        %v741 = vld [vmem:[%s738 + $0x10] sm:$0xff]
        %v742 = vld [vmem:[%s738 + $0x18] sm:$0xff]
        %v743 = vld [vmem:[%s738 + $0x20] sm:$0xff]
        %v744 = vld [vmem:[%s738 + $0x28] sm:$0xff]
        %v745 = vld [vmem:[%s738 + $0x30] sm:$0xff]
        %v746 = vld [vmem:[%s738 + $0x38] sm:$0xff]
        %v747 = vld [vmem:[%s738 + $0x40] sm:$0xff]
        %v748 = vld [vmem:[%s738 + $0x48] sm:$0xff]
        %v749 = vld [vmem:[%s738 + $0x50] sm:$0xff]
        %v750 = vld [vmem:[%s738 + $0x58] sm:$0xff]
        %v751 = vld [vmem:[%s738 + $0x60] sm:$0xff]
        %v752 = vld [vmem:[%s738 + $0x68] sm:$0xff]
        %v753 = vld [vmem:[%s738 + $0x70] sm:$0xff]
        %v754 = vld [vmem:[%s738 + $0x78] sm:$0xff]
        %755 = vmatprep.subr.mxu0 0.0
        %756 = vmatpush1.msra.mxu0 %v739
        %757 = vmatprep.subr.mxu0 0.0
        %758 = vmatpush1.msra.mxu0 %v740
        %759 = vmatprep.subr.mxu0 0.0
        %760 = vmatpush1.msra.mxu0 %v741
        %761 = vmatprep.subr.mxu0 0.0
        %762 = vmatpush1.msra.mxu0 %v742
        %763 = vmatprep.subr.mxu0 0.0
        %764 = vmatpush1.msra.mxu0 %v743
        %765 = vmatprep.subr.mxu0 0.0
        %766 = vmatpush1.msra.mxu0 %v744
        %767 = vmatprep.subr.mxu0 0.0
        %768 = vmatpush1.msra.mxu0 %v745
        %769 = vmatprep.subr.mxu0 0.0
        %770 = vmatpush1.msra.mxu0 %v746
        %771 = vmatprep.subr.mxu0 0.0
        %772 = vmatpush1.msra.mxu0 %v747
        %773 = vmatprep.subr.mxu0 0.0
        %774 = vmatpush1.msra.mxu0 %v748
        %775 = vmatprep.subr.mxu0 0.0
        %776 = vmatpush1.msra.mxu0 %v749
        %777 = vmatprep.subr.mxu0 0.0
        %778 = vmatpush1.msra.mxu0 %v750
        %779 = vmatprep.subr.mxu0 0.0
        %780 = vmatpush1.msra.mxu0 %v751
        %781 = vmatprep.subr.mxu0 0.0
        %782 = vmatpush1.msra.mxu0 %v752
        %783 = vmatprep.subr.mxu0 0.0
        %784 = vmatpush1.msra.mxu0 %v753
        %785 = vmatprep.subr.mxu0 0.0
        %786 = vmatpush1.msra.mxu0 %v754
        %787 = vmatprep.subr.mxu0 0.0
        %788 = vmatpush1.msra.mxu0 0.0
        %789 = vmatprep.subr.mxu0 0.0
        %790 = vmatpush1.msra.mxu0 0.0
        %791 = vmatprep.subr.mxu0 0.0
        %792 = vmatpush1.msra.mxu0 0.0
        %793 = vmatprep.subr.mxu0 0.0
        %794 = vmatpush1.msra.mxu0 0.0
        %795 = vmatprep.subr.mxu0 0.0
        %796 = vmatpush1.msra.mxu0 0.0
        %797 = vmatprep.subr.mxu0 0.0
        %798 = vmatpush1.msra.mxu0 0.0
        %799 = vmatprep.subr.mxu0 0.0
        %800 = vmatpush1.msra.mxu0 0.0
        %801 = vmatprep.subr.mxu0 0.0
        %802 = vmatpush1.msra.mxu0 0.0
        %803 = vmatprep.subr.mxu0 0.0
        %804 = vmatpush1.msra.mxu0 0.0
        %805 = vmatprep.subr.mxu0 0.0
        %806 = vmatpush1.msra.mxu0 0.0
        %807 = vmatprep.subr.mxu0 0.0
        %808 = vmatpush1.msra.mxu0 0.0
        %809 = vmatprep.subr.mxu0 0.0
        %810 = vmatpush1.msra.mxu0 0.0
        %811 = vmatprep.subr.mxu0 0.0
        %812 = vmatpush1.msra.mxu0 0.0
        %813 = vmatprep.subr.mxu0 0.0
        %814 = vmatpush1.msra.mxu0 0.0
        %815 = vmatprep.subr.mxu0 0.0
        %816 = vmatpush1.msra.mxu0 0.0
        %817 = vmatprep.subr.mxu0 0.0
        %818 = vmatpush1.msra.mxu0 0.0
        %819 = vmatprep.mubr.f32.mxu0 0.0
        %820 = vmatmul.mubr.f32.gmra.mrb[0].mxu0 %v730
        %v821 = vpop.f32.mrb[0].mxu0
        %v822 = vadd.f32 0.0, %v821
        %v823 = vpop.f32.mrb[0].mxu0
        %824 = vmatprep.mubr.f32.mxu0 0.0
        %825 = vmatmul.mubr.f32.gmra.mrb[0].mxu0 %v731
        %v826 = vpop.f32.mrb[0].mxu0
        %v827 = vadd.f32 0.0, %v826
        %v828 = vpop.f32.mrb[0].mxu0
        %829 = vmatprep.mubr.f32.mxu0 0.0
        %830 = vmatmul.mubr.f32.gmra.mrb[0].mxu0 %v732
        %v831 = vpop.f32.mrb[0].mxu0
        %v832 = vadd.f32 0.0, %v831
        %v833 = vpop.f32.mrb[0].mxu0
        %834 = vmatprep.mubr.f32.mxu0 0.0
        %835 = vmatmul.mubr.f32.gmra.mrb[0].mxu0 %v733
        %v836 = vpop.f32.mrb[0].mxu0
        %v837 = vadd.f32 0.0, %v836
        %v838 = vpop.f32.mrb[0].mxu0
        %839 = vmatprep.mubr.f32.mxu0 0.0
        %840 = vmatmul.mubr.f32.gmra.mrb[0].mxu0 %v734
        %v841 = vpop.f32.mrb[0].mxu0
        %v842 = vadd.f32 0.0, %v841
        %v843 = vpop.f32.mrb[0].mxu0
        %844 = vmatprep.mubr.f32.mxu0 0.0
        %845 = vmatmul.mubr.f32.gmra.mrb[0].mxu0 %v735
        %v846 = vpop.f32.mrb[0].mxu0
        %v847 = vadd.f32 0.0, %v846
        %v848 = vpop.f32.mrb[0].mxu0
        %849 = vmatprep.mubr.f32.mxu0 0.0
        %850 = vmatmul.mubr.f32.gmra.mrb[0].mxu0 %v736
        %v851 = vpop.f32.mrb[0].mxu0
        %v852 = vadd.f32 0.0, %v851
        %v853 = vpop.f32.mrb[0].mxu0
        %854 = vmatprep.mubr.f32.mxu0 0.0
        %855 = vmatmul.mubr.f32.gmra.mrb[0].mxu0 %v737
        %v856 = vpop.f32.mrb[0].mxu0
        %v857 = vadd.f32 0.0, %v856
        %v858 = vpop.f32.mrb[0].mxu0
        %859 = vdwg.mxu0
        %v860 = vadd.f32 %v722, %v822
        %v861 = vadd.f32 %v723, %v827
        %v862 = vadd.f32 %v724, %v832
        %v863 = vadd.f32 %v725, %v837
        %v864 = vadd.f32 %v726, %v842
        %v865 = vadd.f32 %v727, %v847
        %v866 = vadd.f32 %v728, %v852
        %v867 = vadd.f32 %v729, %v857
        %v868 = vld [vmem:[%s324 + $0x1] sm:$0xff]
        %v869 = vld [vmem:[%s324 + $0x11] sm:$0xff]
        %v870 = vld [vmem:[%s324 + $0x21] sm:$0xff]
        %v871 = vld [vmem:[%s324 + $0x31] sm:$0xff]
        %v872 = vld [vmem:[%s324 + $0x41] sm:$0xff]
        %v873 = vld [vmem:[%s324 + $0x51] sm:$0xff]
        %v874 = vld [vmem:[%s324 + $0x61] sm:$0xff]
        %v875 = vld [vmem:[%s324 + $0x71] sm:$0xff]
        %s876 = scalar_lea.vmem [#allocation6], 512
        %v877 = vld [vmem:[%s876] sm:$0xff]
        %v878 = vld [vmem:[%s876 + $0x8] sm:$0xff]
        %v879 = vld [vmem:[%s876 + $0x10] sm:$0xff]
        %v880 = vld [vmem:[%s876 + $0x18] sm:$0xff]
        %v881 = vld [vmem:[%s876 + $0x20] sm:$0xff]
        %v882 = vld [vmem:[%s876 + $0x28] sm:$0xff]
        %v883 = vld [vmem:[%s876 + $0x30] sm:$0xff]
        %v884 = vld [vmem:[%s876 + $0x38] sm:$0xff]
        %v885 = vld [vmem:[%s876 + $0x40] sm:$0xff]
        %v886 = vld [vmem:[%s876 + $0x48] sm:$0xff]
        %v887 = vld [vmem:[%s876 + $0x50] sm:$0xff]
        %v888 = vld [vmem:[%s876 + $0x58] sm:$0xff]
        %v889 = vld [vmem:[%s876 + $0x60] sm:$0xff]
        %v890 = vld [vmem:[%s876 + $0x68] sm:$0xff]
        %v891 = vld [vmem:[%s876 + $0x70] sm:$0xff]
        %v892 = vld [vmem:[%s876 + $0x78] sm:$0xff]
        %893 = vmatprep.subr.mxu0 0.0
        %894 = vmatpush1.msra.mxu0 %v877
        %895 = vmatprep.subr.mxu0 0.0
        %896 = vmatpush1.msra.mxu0 %v878
        %897 = vmatprep.subr.mxu0 0.0
        %898 = vmatpush1.msra.mxu0 %v879
        %899 = vmatprep.subr.mxu0 0.0
        %900 = vmatpush1.msra.mxu0 %v880
        %901 = vmatprep.subr.mxu0 0.0
        %902 = vmatpush1.msra.mxu0 %v881
        %903 = vmatprep.subr.mxu0 0.0
        %904 = vmatpush1.msra.mxu0 %v882
        %905 = vmatprep.subr.mxu0 0.0
        %906 = vmatpush1.msra.mxu0 %v883
        %907 = vmatprep.subr.mxu0 0.0
        %908 = vmatpush1.msra.mxu0 %v884
        %909 = vmatprep.subr.mxu0 0.0
        %910 = vmatpush1.msra.mxu0 %v885
        %911 = vmatprep.subr.mxu0 0.0
        %912 = vmatpush1.msra.mxu0 %v886
        %913 = vmatprep.subr.mxu0 0.0
        %914 = vmatpush1.msra.mxu0 %v887
        %915 = vmatprep.subr.mxu0 0.0
        %916 = vmatpush1.msra.mxu0 %v888
        %917 = vmatprep.subr.mxu0 0.0
        %918 = vmatpush1.msra.mxu0 %v889
        %919 = vmatprep.subr.mxu0 0.0
        %920 = vmatpush1.msra.mxu0 %v890
        %921 = vmatprep.subr.mxu0 0.0
        %922 = vmatpush1.msra.mxu0 %v891
        %923 = vmatprep.subr.mxu0 0.0
        %924 = vmatpush1.msra.mxu0 %v892
        %925 = vmatprep.subr.mxu0 0.0
        %926 = vmatpush1.msra.mxu0 0.0
        %927 = vmatprep.subr.mxu0 0.0
        %928 = vmatpush1.msra.mxu0 0.0
        %929 = vmatprep.subr.mxu0 0.0
        %930 = vmatpush1.msra.mxu0 0.0
        %931 = vmatprep.subr.mxu0 0.0
        %932 = vmatpush1.msra.mxu0 0.0
        %933 = vmatprep.subr.mxu0 0.0
        %934 = vmatpush1.msra.mxu0 0.0
        %935 = vmatprep.subr.mxu0 0.0
        %936 = vmatpush1.msra.mxu0 0.0
        %937 = vmatprep.subr.mxu0 0.0
        %938 = vmatpush1.msra.mxu0 0.0
        %939 = vmatprep.subr.mxu0 0.0
        %940 = vmatpush1.msra.mxu0 0.0
        %941 = vmatprep.subr.mxu0 0.0
        %942 = vmatpush1.msra.mxu0 0.0
        %943 = vmatprep.subr.mxu0 0.0
        %944 = vmatpush1.msra.mxu0 0.0
        %945 = vmatprep.subr.mxu0 0.0
        %946 = vmatpush1.msra.mxu0 0.0
        %947 = vmatprep.subr.mxu0 0.0
        %948 = vmatpush1.msra.mxu0 0.0
        %949 = vmatprep.subr.mxu0 0.0
        %950 = vmatpush1.msra.mxu0 0.0
        %951 = vmatprep.subr.mxu0 0.0
        %952 = vmatpush1.msra.mxu0 0.0
        %953 = vmatprep.subr.mxu0 0.0
        %954 = vmatpush1.msra.mxu0 0.0
        %955 = vmatprep.subr.mxu0 0.0
        %956 = vmatpush1.msra.mxu0 0.0
        %957 = vmatprep.mubr.f32.mxu0 0.0
        %958 = vmatmul.mubr.f32.gmra.mrb[0].mxu0 %v868
        %v959 = vpop.f32.mrb[0].mxu0
        %v960 = vadd.f32 0.0, %v959
        %v961 = vpop.f32.mrb[0].mxu0
        %962 = vmatprep.mubr.f32.mxu0 0.0
        %963 = vmatmul.mubr.f32.gmra.mrb[0].mxu0 %v869
        %v964 = vpop.f32.mrb[0].mxu0
        %v965 = vadd.f32 0.0, %v964
        %v966 = vpop.f32.mrb[0].mxu0
        %967 = vmatprep.mubr.f32.mxu0 0.0
        %968 = vmatmul.mubr.f32.gmra.mrb[0].mxu0 %v870
        %v969 = vpop.f32.mrb[0].mxu0
        %v970 = vadd.f32 0.0, %v969
        %v971 = vpop.f32.mrb[0].mxu0
        %972 = vmatprep.mubr.f32.mxu0 0.0
        %973 = vmatmul.mubr.f32.gmra.mrb[0].mxu0 %v871
        %v974 = vpop.f32.mrb[0].mxu0
        %v975 = vadd.f32 0.0, %v974
        %v976 = vpop.f32.mrb[0].mxu0
        %977 = vmatprep.mubr.f32.mxu0 0.0
        %978 = vmatmul.mubr.f32.gmra.mrb[0].mxu0 %v872
        %v979 = vpop.f32.mrb[0].mxu0
        %v980 = vadd.f32 0.0, %v979
        %v981 = vpop.f32.mrb[0].mxu0
        %982 = vmatprep.mubr.f32.mxu0 0.0
        %983 = vmatmul.mubr.f32.gmra.mrb[0].mxu0 %v873
        %v984 = vpop.f32.mrb[0].mxu0
        %v985 = vadd.f32 0.0, %v984
        %v986 = vpop.f32.mrb[0].mxu0
        %987 = vmatprep.mubr.f32.mxu0 0.0
        %988 = vmatmul.mubr.f32.gmra.mrb[0].mxu0 %v874
        %v989 = vpop.f32.mrb[0].mxu0
        %v990 = vadd.f32 0.0, %v989
        %v991 = vpop.f32.mrb[0].mxu0
        %992 = vmatprep.mubr.f32.mxu0 0.0
        %993 = vmatmul.mubr.f32.gmra.mrb[0].mxu0 %v875
        %v994 = vpop.f32.mrb[0].mxu0
        %v995 = vadd.f32 0.0, %v994
        %v996 = vpop.f32.mrb[0].mxu0
        %997 = vdwg.mxu0
        %v998 = vadd.f32 %v860, %v960
        %v999 = vadd.f32 %v861, %v965
        %v1000 = vadd.f32 %v862, %v970
        %v1001 = vadd.f32 %v863, %v975
        %v1002 = vadd.f32 %v864, %v980
        %v1003 = vadd.f32 %v865, %v985
        %v1004 = vadd.f32 %v866, %v990
        %v1005 = vadd.f32 %v867, %v995
        %v1006 = vld [vmem:[%s324 + $0x2] sm:$0xff]
        %v1007 = vld [vmem:[%s324 + $0x12] sm:$0xff]
        %v1008 = vld [vmem:[%s324 + $0x22] sm:$0xff]
        %v1009 = vld [vmem:[%s324 + $0x32] sm:$0xff]
        %v1010 = vld [vmem:[%s324 + $0x42] sm:$0xff]
        %v1011 = vld [vmem:[%s324 + $0x52] sm:$0xff]
        %v1012 = vld [vmem:[%s324 + $0x62] sm:$0xff]
        %v1013 = vld [vmem:[%s324 + $0x72] sm:$0xff]
        %s1014 = scalar_lea.vmem [#allocation6], 640
        %v1015 = vld [vmem:[%s1014] sm:$0xff]
        %v1016 = vld [vmem:[%s1014 + $0x8] sm:$0xff]
        %v1017 = vld [vmem:[%s1014 + $0x10] sm:$0xff]
        %v1018 = vld [vmem:[%s1014 + $0x18] sm:$0xff]
        %v1019 = vld [vmem:[%s1014 + $0x20] sm:$0xff]
        %v1020 = vld [vmem:[%s1014 + $0x28] sm:$0xff]
        %v1021 = vld [vmem:[%s1014 + $0x30] sm:$0xff]
        %v1022 = vld [vmem:[%s1014 + $0x38] sm:$0xff]
        %v1023 = vld [vmem:[%s1014 + $0x40] sm:$0xff]
        %v1024 = vld [vmem:[%s1014 + $0x48] sm:$0xff]
        %v1025 = vld [vmem:[%s1014 + $0x50] sm:$0xff]
        %v1026 = vld [vmem:[%s1014 + $0x58] sm:$0xff]
        %v1027 = vld [vmem:[%s1014 + $0x60] sm:$0xff]
        %v1028 = vld [vmem:[%s1014 + $0x68] sm:$0xff]
        %v1029 = vld [vmem:[%s1014 + $0x70] sm:$0xff]
        %v1030 = vld [vmem:[%s1014 + $0x78] sm:$0xff]
        %1031 = vmatprep.subr.mxu0 0.0
        %1032 = vmatpush1.msra.mxu0 %v1015
        %1033 = vmatprep.subr.mxu0 0.0
        %1034 = vmatpush1.msra.mxu0 %v1016
        %1035 = vmatprep.subr.mxu0 0.0
        %1036 = vmatpush1.msra.mxu0 %v1017
        %1037 = vmatprep.subr.mxu0 0.0
        %1038 = vmatpush1.msra.mxu0 %v1018
        %1039 = vmatprep.subr.mxu0 0.0
        %1040 = vmatpush1.msra.mxu0 %v1019
        %1041 = vmatprep.subr.mxu0 0.0
        %1042 = vmatpush1.msra.mxu0 %v1020
        %1043 = vmatprep.subr.mxu0 0.0
        %1044 = vmatpush1.msra.mxu0 %v1021
        %1045 = vmatprep.subr.mxu0 0.0
        %1046 = vmatpush1.msra.mxu0 %v1022
        %1047 = vmatprep.subr.mxu0 0.0
        %1048 = vmatpush1.msra.mxu0 %v1023
        %1049 = vmatprep.subr.mxu0 0.0
        %1050 = vmatpush1.msra.mxu0 %v1024
        %1051 = vmatprep.subr.mxu0 0.0
        %1052 = vmatpush1.msra.mxu0 %v1025
        %1053 = vmatprep.subr.mxu0 0.0
        %1054 = vmatpush1.msra.mxu0 %v1026
        %1055 = vmatprep.subr.mxu0 0.0
        %1056 = vmatpush1.msra.mxu0 %v1027
        %1057 = vmatprep.subr.mxu0 0.0
        %1058 = vmatpush1.msra.mxu0 %v1028
        %1059 = vmatprep.subr.mxu0 0.0
        %1060 = vmatpush1.msra.mxu0 %v1029
        %1061 = vmatprep.subr.mxu0 0.0
        %1062 = vmatpush1.msra.mxu0 %v1030
        %1063 = vmatprep.subr.mxu0 0.0
        %1064 = vmatpush1.msra.mxu0 0.0
        %1065 = vmatprep.subr.mxu0 0.0
        %1066 = vmatpush1.msra.mxu0 0.0
        %1067 = vmatprep.subr.mxu0 0.0
        %1068 = vmatpush1.msra.mxu0 0.0
        %1069 = vmatprep.subr.mxu0 0.0
        %1070 = vmatpush1.msra.mxu0 0.0
        %1071 = vmatprep.subr.mxu0 0.0
        %1072 = vmatpush1.msra.mxu0 0.0
        %1073 = vmatprep.subr.mxu0 0.0
        %1074 = vmatpush1.msra.mxu0 0.0
        %1075 = vmatprep.subr.mxu0 0.0
        %1076 = vmatpush1.msra.mxu0 0.0
        %1077 = vmatprep.subr.mxu0 0.0
        %1078 = vmatpush1.msra.mxu0 0.0
        %1079 = vmatprep.subr.mxu0 0.0
        %1080 = vmatpush1.msra.mxu0 0.0
        %1081 = vmatprep.subr.mxu0 0.0
        %1082 = vmatpush1.msra.mxu0 0.0
        %1083 = vmatprep.subr.mxu0 0.0
        %1084 = vmatpush1.msra.mxu0 0.0
        %1085 = vmatprep.subr.mxu0 0.0
        %1086 = vmatpush1.msra.mxu0 0.0
        %1087 = vmatprep.subr.mxu0 0.0
        %1088 = vmatpush1.msra.mxu0 0.0
        %1089 = vmatprep.subr.mxu0 0.0
        %1090 = vmatpush1.msra.mxu0 0.0
        %1091 = vmatprep.subr.mxu0 0.0
        %1092 = vmatpush1.msra.mxu0 0.0
        %1093 = vmatprep.subr.mxu0 0.0
        %1094 = vmatpush1.msra.mxu0 0.0
        %1095 = vmatprep.mubr.f32.mxu0 0.0
        %1096 = vmatmul.mubr.f32.gmra.mrb[0].mxu0 %v1006
        %v1097 = vpop.f32.mrb[0].mxu0
        %v1098 = vadd.f32 0.0, %v1097
        %v1099 = vpop.f32.mrb[0].mxu0
        %1100 = vmatprep.mubr.f32.mxu0 0.0
        %1101 = vmatmul.mubr.f32.gmra.mrb[0].mxu0 %v1007
        %v1102 = vpop.f32.mrb[0].mxu0
        %v1103 = vadd.f32 0.0, %v1102
        %v1104 = vpop.f32.mrb[0].mxu0
        %1105 = vmatprep.mubr.f32.mxu0 0.0
        %1106 = vmatmul.mubr.f32.gmra.mrb[0].mxu0 %v1008
        %v1107 = vpop.f32.mrb[0].mxu0
        %v1108 = vadd.f32 0.0, %v1107
        %v1109 = vpop.f32.mrb[0].mxu0
        %1110 = vmatprep.mubr.f32.mxu0 0.0
        %1111 = vmatmul.mubr.f32.gmra.mrb[0].mxu0 %v1009
        %v1112 = vpop.f32.mrb[0].mxu0
        %v1113 = vadd.f32 0.0, %v1112
        %v1114 = vpop.f32.mrb[0].mxu0
        %1115 = vmatprep.mubr.f32.mxu0 0.0
        %1116 = vmatmul.mubr.f32.gmra.mrb[0].mxu0 %v1010
        %v1117 = vpop.f32.mrb[0].mxu0
        %v1118 = vadd.f32 0.0, %v1117
        %v1119 = vpop.f32.mrb[0].mxu0
        %1120 = vmatprep.mubr.f32.mxu0 0.0
        %1121 = vmatmul.mubr.f32.gmra.mrb[0].mxu0 %v1011
        %v1122 = vpop.f32.mrb[0].mxu0
        %v1123 = vadd.f32 0.0, %v1122
        %v1124 = vpop.f32.mrb[0].mxu0
        %1125 = vmatprep.mubr.f32.mxu0 0.0
        %1126 = vmatmul.mubr.f32.gmra.mrb[0].mxu0 %v1012
        %v1127 = vpop.f32.mrb[0].mxu0
        %v1128 = vadd.f32 0.0, %v1127
        %v1129 = vpop.f32.mrb[0].mxu0
        %1130 = vmatprep.mubr.f32.mxu0 0.0
        %1131 = vmatmul.mubr.f32.gmra.mrb[0].mxu0 %v1013
        %v1132 = vpop.f32.mrb[0].mxu0
        %v1133 = vadd.f32 0.0, %v1132
        %v1134 = vpop.f32.mrb[0].mxu0
        %1135 = vdwg.mxu0
        %v1136 = vadd.f32 %v998, %v1098
        %v1137 = vadd.f32 %v999, %v1103
        %v1138 = vadd.f32 %v1000, %v1108
        %v1139 = vadd.f32 %v1001, %v1113
        %v1140 = vadd.f32 %v1002, %v1118
        %v1141 = vadd.f32 %v1003, %v1123
        %v1142 = vadd.f32 %v1004, %v1128
        %v1143 = vadd.f32 %v1005, %v1133
        %s1144 = scalar_lea.vmem [#allocation2], 32
        %v1145 = vld [vmem:[%s1144] sm:$0xff]
        %v1146 = vld [vmem:[%s1144 + $0x10] sm:$0xff]
        %v1147 = vld [vmem:[%s1144 + $0x20] sm:$0xff]
        %v1148 = vld [vmem:[%s1144 + $0x30] sm:$0xff]
        %v1149 = vld [vmem:[%s1144 + $0x40] sm:$0xff]
        %v1150 = vld [vmem:[%s1144 + $0x50] sm:$0xff]
        %v1151 = vld [vmem:[%s1144 + $0x60] sm:$0xff]
        %v1152 = vld [vmem:[%s1144 + $0x70] sm:$0xff]
        %s1153 = scalar_lea.vmem [#allocation6], 768
        %v1154 = vld [vmem:[%s1153] sm:$0xff]
        %v1155 = vld [vmem:[%s1153 + $0x8] sm:$0xff]
        %v1156 = vld [vmem:[%s1153 + $0x10] sm:$0xff]
        %v1157 = vld [vmem:[%s1153 + $0x18] sm:$0xff]
        %v1158 = vld [vmem:[%s1153 + $0x20] sm:$0xff]
        %v1159 = vld [vmem:[%s1153 + $0x28] sm:$0xff]
        %v1160 = vld [vmem:[%s1153 + $0x30] sm:$0xff]
        %v1161 = vld [vmem:[%s1153 + $0x38] sm:$0xff]
        %v1162 = vld [vmem:[%s1153 + $0x40] sm:$0xff]
        %v1163 = vld [vmem:[%s1153 + $0x48] sm:$0xff]
        %v1164 = vld [vmem:[%s1153 + $0x50] sm:$0xff]
        %v1165 = vld [vmem:[%s1153 + $0x58] sm:$0xff]
        %v1166 = vld [vmem:[%s1153 + $0x60] sm:$0xff]
        %v1167 = vld [vmem:[%s1153 + $0x68] sm:$0xff]
        %v1168 = vld [vmem:[%s1153 + $0x70] sm:$0xff]
        %v1169 = vld [vmem:[%s1153 + $0x78] sm:$0xff]
        %1170 = vmatprep.subr.mxu0 0.0
        %1171 = vmatpush1.msra.mxu0 %v1154
        %1172 = vmatprep.subr.mxu0 0.0
        %1173 = vmatpush1.msra.mxu0 %v1155
        %1174 = vmatprep.subr.mxu0 0.0
        %1175 = vmatpush1.msra.mxu0 %v1156
        %1176 = vmatprep.subr.mxu0 0.0
        %1177 = vmatpush1.msra.mxu0 %v1157
        %1178 = vmatprep.subr.mxu0 0.0
        %1179 = vmatpush1.msra.mxu0 %v1158
        %1180 = vmatprep.subr.mxu0 0.0
        %1181 = vmatpush1.msra.mxu0 %v1159
        %1182 = vmatprep.subr.mxu0 0.0
        %1183 = vmatpush1.msra.mxu0 %v1160
        %1184 = vmatprep.subr.mxu0 0.0
        %1185 = vmatpush1.msra.mxu0 %v1161
        %1186 = vmatprep.subr.mxu0 0.0
        %1187 = vmatpush1.msra.mxu0 %v1162
        %1188 = vmatprep.subr.mxu0 0.0
        %1189 = vmatpush1.msra.mxu0 %v1163
        %1190 = vmatprep.subr.mxu0 0.0
        %1191 = vmatpush1.msra.mxu0 %v1164
        %1192 = vmatprep.subr.mxu0 0.0
        %1193 = vmatpush1.msra.mxu0 %v1165
        %1194 = vmatprep.subr.mxu0 0.0
        %1195 = vmatpush1.msra.mxu0 %v1166
        %1196 = vmatprep.subr.mxu0 0.0
        %1197 = vmatpush1.msra.mxu0 %v1167
        %1198 = vmatprep.subr.mxu0 0.0
        %1199 = vmatpush1.msra.mxu0 %v1168
        %1200 = vmatprep.subr.mxu0 0.0
        %1201 = vmatpush1.msra.mxu0 %v1169
        %1202 = vmatprep.subr.mxu0 0.0
        %1203 = vmatpush1.msra.mxu0 0.0
        %1204 = vmatprep.subr.mxu0 0.0
        %1205 = vmatpush1.msra.mxu0 0.0
        %1206 = vmatprep.subr.mxu0 0.0
        %1207 = vmatpush1.msra.mxu0 0.0
        %1208 = vmatprep.subr.mxu0 0.0
        %1209 = vmatpush1.msra.mxu0 0.0
        %1210 = vmatprep.subr.mxu0 0.0
        %1211 = vmatpush1.msra.mxu0 0.0
        %1212 = vmatprep.subr.mxu0 0.0
        %1213 = vmatpush1.msra.mxu0 0.0
        %1214 = vmatprep.subr.mxu0 0.0
        %1215 = vmatpush1.msra.mxu0 0.0
        %1216 = vmatprep.subr.mxu0 0.0
        %1217 = vmatpush1.msra.mxu0 0.0
        %1218 = vmatprep.subr.mxu0 0.0
        %1219 = vmatpush1.msra.mxu0 0.0
        %1220 = vmatprep.subr.mxu0 0.0
        %1221 = vmatpush1.msra.mxu0 0.0
        %1222 = vmatprep.subr.mxu0 0.0
        %1223 = vmatpush1.msra.mxu0 0.0
        %1224 = vmatprep.subr.mxu0 0.0
        %1225 = vmatpush1.msra.mxu0 0.0
        %1226 = vmatprep.subr.mxu0 0.0
        %1227 = vmatpush1.msra.mxu0 0.0
        %1228 = vmatprep.subr.mxu0 0.0
        %1229 = vmatpush1.msra.mxu0 0.0
        %1230 = vmatprep.subr.mxu0 0.0
        %1231 = vmatpush1.msra.mxu0 0.0
        %1232 = vmatprep.subr.mxu0 0.0
        %1233 = vmatpush1.msra.mxu0 0.0
        %1234 = vmatprep.mubr.f32.mxu0 0.0
        %1235 = vmatmul.mubr.f32.gmra.mrb[0].mxu0 %v1145
        %v1236 = vpop.f32.mrb[0].mxu0
        %v1237 = vadd.f32 0.0, %v1236
        %v1238 = vpop.f32.mrb[0].mxu0
        %1239 = vmatprep.mubr.f32.mxu0 0.0
        %1240 = vmatmul.mubr.f32.gmra.mrb[0].mxu0 %v1146
        %v1241 = vpop.f32.mrb[0].mxu0
        %v1242 = vadd.f32 0.0, %v1241
        %v1243 = vpop.f32.mrb[0].mxu0
        %1244 = vmatprep.mubr.f32.mxu0 0.0
        %1245 = vmatmul.mubr.f32.gmra.mrb[0].mxu0 %v1147
        %v1246 = vpop.f32.mrb[0].mxu0
        %v1247 = vadd.f32 0.0, %v1246
        %v1248 = vpop.f32.mrb[0].mxu0
        %1249 = vmatprep.mubr.f32.mxu0 0.0
        %1250 = vmatmul.mubr.f32.gmra.mrb[0].mxu0 %v1148
        %v1251 = vpop.f32.mrb[0].mxu0
        %v1252 = vadd.f32 0.0, %v1251
        %v1253 = vpop.f32.mrb[0].mxu0
        %1254 = vmatprep.mubr.f32.mxu0 0.0
        %1255 = vmatmul.mubr.f32.gmra.mrb[0].mxu0 %v1149
        %v1256 = vpop.f32.mrb[0].mxu0
        %v1257 = vadd.f32 0.0, %v1256
        %v1258 = vpop.f32.mrb[0].mxu0
        %1259 = vmatprep.mubr.f32.mxu0 0.0
        %1260 = vmatmul.mubr.f32.gmra.mrb[0].mxu0 %v1150
        %v1261 = vpop.f32.mrb[0].mxu0
        %v1262 = vadd.f32 0.0, %v1261
        %v1263 = vpop.f32.mrb[0].mxu0
        %1264 = vmatprep.mubr.f32.mxu0 0.0
        %1265 = vmatmul.mubr.f32.gmra.mrb[0].mxu0 %v1151
        %v1266 = vpop.f32.mrb[0].mxu0
        %v1267 = vadd.f32 0.0, %v1266
        %v1268 = vpop.f32.mrb[0].mxu0
        %1269 = vmatprep.mubr.f32.mxu0 0.0
        %1270 = vmatmul.mubr.f32.gmra.mrb[0].mxu0 %v1152
        %v1271 = vpop.f32.mrb[0].mxu0
        %v1272 = vadd.f32 0.0, %v1271
        %v1273 = vpop.f32.mrb[0].mxu0
        %1274 = vdwg.mxu0
        %v1275 = vadd.f32 %v1136, %v1237
        %v1276 = vadd.f32 %v1137, %v1242
        %v1277 = vadd.f32 %v1138, %v1247
        %v1278 = vadd.f32 %v1139, %v1252
        %v1279 = vadd.f32 %v1140, %v1257
        %v1280 = vadd.f32 %v1141, %v1262
        %v1281 = vadd.f32 %v1142, %v1267
        %v1282 = vadd.f32 %v1143, %v1272
        %v1283 = vld [vmem:[%s1144 + $0x1] sm:$0xff]
        %v1284 = vld [vmem:[%s1144 + $0x11] sm:$0xff]
        %v1285 = vld [vmem:[%s1144 + $0x21] sm:$0xff]
        %v1286 = vld [vmem:[%s1144 + $0x31] sm:$0xff]
        %v1287 = vld [vmem:[%s1144 + $0x41] sm:$0xff]
        %v1288 = vld [vmem:[%s1144 + $0x51] sm:$0xff]
        %v1289 = vld [vmem:[%s1144 + $0x61] sm:$0xff]
        %v1290 = vld [vmem:[%s1144 + $0x71] sm:$0xff]
        %s1291 = scalar_lea.vmem [#allocation6], 896
        %v1292 = vld [vmem:[%s1291] sm:$0xff]
        %v1293 = vld [vmem:[%s1291 + $0x8] sm:$0xff]
        %v1294 = vld [vmem:[%s1291 + $0x10] sm:$0xff]
        %v1295 = vld [vmem:[%s1291 + $0x18] sm:$0xff]
        %v1296 = vld [vmem:[%s1291 + $0x20] sm:$0xff]
        %v1297 = vld [vmem:[%s1291 + $0x28] sm:$0xff]
        %v1298 = vld [vmem:[%s1291 + $0x30] sm:$0xff]
        %v1299 = vld [vmem:[%s1291 + $0x38] sm:$0xff]
        %v1300 = vld [vmem:[%s1291 + $0x40] sm:$0xff]
        %v1301 = vld [vmem:[%s1291 + $0x48] sm:$0xff]
        %v1302 = vld [vmem:[%s1291 + $0x50] sm:$0xff]
        %v1303 = vld [vmem:[%s1291 + $0x58] sm:$0xff]
        %v1304 = vld [vmem:[%s1291 + $0x60] sm:$0xff]
        %v1305 = vld [vmem:[%s1291 + $0x68] sm:$0xff]
        %v1306 = vld [vmem:[%s1291 + $0x70] sm:$0xff]
        %v1307 = vld [vmem:[%s1291 + $0x78] sm:$0xff]
        %1308 = vmatprep.subr.mxu0 0.0
        %1309 = vmatpush1.msra.mxu0 %v1292
        %1310 = vmatprep.subr.mxu0 0.0
        %1311 = vmatpush1.msra.mxu0 %v1293
        %1312 = vmatprep.subr.mxu0 0.0
        %1313 = vmatpush1.msra.mxu0 %v1294
        %1314 = vmatprep.subr.mxu0 0.0
        %1315 = vmatpush1.msra.mxu0 %v1295
        %1316 = vmatprep.subr.mxu0 0.0
        %1317 = vmatpush1.msra.mxu0 %v1296
        %1318 = vmatprep.subr.mxu0 0.0
        %1319 = vmatpush1.msra.mxu0 %v1297
        %1320 = vmatprep.subr.mxu0 0.0
        %1321 = vmatpush1.msra.mxu0 %v1298
        %1322 = vmatprep.subr.mxu0 0.0
        %1323 = vmatpush1.msra.mxu0 %v1299
        %1324 = vmatprep.subr.mxu0 0.0
        %1325 = vmatpush1.msra.mxu0 %v1300
        %1326 = vmatprep.subr.mxu0 0.0
        %1327 = vmatpush1.msra.mxu0 %v1301
        %1328 = vmatprep.subr.mxu0 0.0
        %1329 = vmatpush1.msra.mxu0 %v1302
        %1330 = vmatprep.subr.mxu0 0.0
        %1331 = vmatpush1.msra.mxu0 %v1303
        %1332 = vmatprep.subr.mxu0 0.0
        %1333 = vmatpush1.msra.mxu0 %v1304
        %1334 = vmatprep.subr.mxu0 0.0
        %1335 = vmatpush1.msra.mxu0 %v1305
        %1336 = vmatprep.subr.mxu0 0.0
        %1337 = vmatpush1.msra.mxu0 %v1306
        %1338 = vmatprep.subr.mxu0 0.0
        %1339 = vmatpush1.msra.mxu0 %v1307
        %1340 = vmatprep.subr.mxu0 0.0
        %1341 = vmatpush1.msra.mxu0 0.0
        %1342 = vmatprep.subr.mxu0 0.0
        %1343 = vmatpush1.msra.mxu0 0.0
        %1344 = vmatprep.subr.mxu0 0.0
        %1345 = vmatpush1.msra.mxu0 0.0
        %1346 = vmatprep.subr.mxu0 0.0
        %1347 = vmatpush1.msra.mxu0 0.0
        %1348 = vmatprep.subr.mxu0 0.0
        %1349 = vmatpush1.msra.mxu0 0.0
        %1350 = vmatprep.subr.mxu0 0.0
        %1351 = vmatpush1.msra.mxu0 0.0
        %1352 = vmatprep.subr.mxu0 0.0
        %1353 = vmatpush1.msra.mxu0 0.0
        %1354 = vmatprep.subr.mxu0 0.0
        %1355 = vmatpush1.msra.mxu0 0.0
        %1356 = vmatprep.subr.mxu0 0.0
        %1357 = vmatpush1.msra.mxu0 0.0
        %1358 = vmatprep.subr.mxu0 0.0
        %1359 = vmatpush1.msra.mxu0 0.0
        %1360 = vmatprep.subr.mxu0 0.0
        %1361 = vmatpush1.msra.mxu0 0.0
        %1362 = vmatprep.subr.mxu0 0.0
        %1363 = vmatpush1.msra.mxu0 0.0
        %1364 = vmatprep.subr.mxu0 0.0
        %1365 = vmatpush1.msra.mxu0 0.0
        %1366 = vmatprep.subr.mxu0 0.0
        %1367 = vmatpush1.msra.mxu0 0.0
        %1368 = vmatprep.subr.mxu0 0.0
        %1369 = vmatpush1.msra.mxu0 0.0
        %1370 = vmatprep.subr.mxu0 0.0
        %1371 = vmatpush1.msra.mxu0 0.0
        %1372 = vmatprep.mubr.f32.mxu0 0.0
        %1373 = vmatmul.mubr.f32.gmra.mrb[0].mxu0 %v1283
        %v1374 = vpop.f32.mrb[0].mxu0
        %v1375 = vadd.f32 0.0, %v1374
        %v1376 = vpop.f32.mrb[0].mxu0
        %1377 = vmatprep.mubr.f32.mxu0 0.0
        %1378 = vmatmul.mubr.f32.gmra.mrb[0].mxu0 %v1284
        %v1379 = vpop.f32.mrb[0].mxu0
        %v1380 = vadd.f32 0.0, %v1379
        %v1381 = vpop.f32.mrb[0].mxu0
        %1382 = vmatprep.mubr.f32.mxu0 0.0
        %1383 = vmatmul.mubr.f32.gmra.mrb[0].mxu0 %v1285
        %v1384 = vpop.f32.mrb[0].mxu0
        %v1385 = vadd.f32 0.0, %v1384
        %v1386 = vpop.f32.mrb[0].mxu0
        %1387 = vmatprep.mubr.f32.mxu0 0.0
        %1388 = vmatmul.mubr.f32.gmra.mrb[0].mxu0 %v1286
        %v1389 = vpop.f32.mrb[0].mxu0
        %v1390 = vadd.f32 0.0, %v1389
        %v1391 = vpop.f32.mrb[0].mxu0
        %1392 = vmatprep.mubr.f32.mxu0 0.0
        %1393 = vmatmul.mubr.f32.gmra.mrb[0].mxu0 %v1287
        %v1394 = vpop.f32.mrb[0].mxu0
        %v1395 = vadd.f32 0.0, %v1394
        %v1396 = vpop.f32.mrb[0].mxu0
        %1397 = vmatprep.mubr.f32.mxu0 0.0
        %1398 = vmatmul.mubr.f32.gmra.mrb[0].mxu0 %v1288
        %v1399 = vpop.f32.mrb[0].mxu0
        %v1400 = vadd.f32 0.0, %v1399
        %v1401 = vpop.f32.mrb[0].mxu0
        %1402 = vmatprep.mubr.f32.mxu0 0.0
        %1403 = vmatmul.mubr.f32.gmra.mrb[0].mxu0 %v1289
        %v1404 = vpop.f32.mrb[0].mxu0
        %v1405 = vadd.f32 0.0, %v1404
        %v1406 = vpop.f32.mrb[0].mxu0
        %1407 = vmatprep.mubr.f32.mxu0 0.0
        %1408 = vmatmul.mubr.f32.gmra.mrb[0].mxu0 %v1290
        %v1409 = vpop.f32.mrb[0].mxu0
        %v1410 = vadd.f32 0.0, %v1409
        %v1411 = vpop.f32.mrb[0].mxu0
        %1412 = vdwg.mxu0
        %v1413 = vadd.f32 %v1275, %v1375
        %v1414 = vadd.f32 %v1276, %v1380
        %v1415 = vadd.f32 %v1277, %v1385
        %v1416 = vadd.f32 %v1278, %v1390
        %v1417 = vadd.f32 %v1279, %v1395
        %v1418 = vadd.f32 %v1280, %v1400
        %v1419 = vadd.f32 %v1281, %v1405
        %v1420 = vadd.f32 %v1282, %v1410
        %v1421 = vld [vmem:[%s1144 + $0x2] sm:$0xff]
        %v1422 = vld [vmem:[%s1144 + $0x12] sm:$0xff]
        %v1423 = vld [vmem:[%s1144 + $0x22] sm:$0xff]
        %v1424 = vld [vmem:[%s1144 + $0x32] sm:$0xff]
        %v1425 = vld [vmem:[%s1144 + $0x42] sm:$0xff]
        %v1426 = vld [vmem:[%s1144 + $0x52] sm:$0xff]
        %v1427 = vld [vmem:[%s1144 + $0x62] sm:$0xff]
        %v1428 = vld [vmem:[%s1144 + $0x72] sm:$0xff]
        %s1429 = scalar_lea.vmem [#allocation6], 1024
        %v1430 = vld [vmem:[%s1429] sm:$0xff]
        %v1431 = vld [vmem:[%s1429 + $0x8] sm:$0xff]
        %v1432 = vld [vmem:[%s1429 + $0x10] sm:$0xff]
        %v1433 = vld [vmem:[%s1429 + $0x18] sm:$0xff]
        %v1434 = vld [vmem:[%s1429 + $0x20] sm:$0xff]
        %v1435 = vld [vmem:[%s1429 + $0x28] sm:$0xff]
        %v1436 = vld [vmem:[%s1429 + $0x30] sm:$0xff]
        %v1437 = vld [vmem:[%s1429 + $0x38] sm:$0xff]
        %v1438 = vld [vmem:[%s1429 + $0x40] sm:$0xff]
        %v1439 = vld [vmem:[%s1429 + $0x48] sm:$0xff]
        %v1440 = vld [vmem:[%s1429 + $0x50] sm:$0xff]
        %v1441 = vld [vmem:[%s1429 + $0x58] sm:$0xff]
        %v1442 = vld [vmem:[%s1429 + $0x60] sm:$0xff]
        %v1443 = vld [vmem:[%s1429 + $0x68] sm:$0xff]
        %v1444 = vld [vmem:[%s1429 + $0x70] sm:$0xff]
        %v1445 = vld [vmem:[%s1429 + $0x78] sm:$0xff]
        %1446 = vmatprep.subr.mxu0 0.0
        %1447 = vmatpush1.msra.mxu0 %v1430
        %1448 = vmatprep.subr.mxu0 0.0
        %1449 = vmatpush1.msra.mxu0 %v1431
        %1450 = vmatprep.subr.mxu0 0.0
        %1451 = vmatpush1.msra.mxu0 %v1432
        %1452 = vmatprep.subr.mxu0 0.0
        %1453 = vmatpush1.msra.mxu0 %v1433
        %1454 = vmatprep.subr.mxu0 0.0
        %1455 = vmatpush1.msra.mxu0 %v1434
        %1456 = vmatprep.subr.mxu0 0.0
        %1457 = vmatpush1.msra.mxu0 %v1435
        %1458 = vmatprep.subr.mxu0 0.0
        %1459 = vmatpush1.msra.mxu0 %v1436
        %1460 = vmatprep.subr.mxu0 0.0
        %1461 = vmatpush1.msra.mxu0 %v1437
        %1462 = vmatprep.subr.mxu0 0.0
        %1463 = vmatpush1.msra.mxu0 %v1438
        %1464 = vmatprep.subr.mxu0 0.0
        %1465 = vmatpush1.msra.mxu0 %v1439
        %1466 = vmatprep.subr.mxu0 0.0
        %1467 = vmatpush1.msra.mxu0 %v1440
        %1468 = vmatprep.subr.mxu0 0.0
        %1469 = vmatpush1.msra.mxu0 %v1441
        %1470 = vmatprep.subr.mxu0 0.0
        %1471 = vmatpush1.msra.mxu0 %v1442
        %1472 = vmatprep.subr.mxu0 0.0
        %1473 = vmatpush1.msra.mxu0 %v1443
        %1474 = vmatprep.subr.mxu0 0.0
        %1475 = vmatpush1.msra.mxu0 %v1444
        %1476 = vmatprep.subr.mxu0 0.0
        %1477 = vmatpush1.msra.mxu0 %v1445
        %1478 = vmatprep.subr.mxu0 0.0
        %1479 = vmatpush1.msra.mxu0 0.0
        %1480 = vmatprep.subr.mxu0 0.0
        %1481 = vmatpush1.msra.mxu0 0.0
        %1482 = vmatprep.subr.mxu0 0.0
        %1483 = vmatpush1.msra.mxu0 0.0
        %1484 = vmatprep.subr.mxu0 0.0
        %1485 = vmatpush1.msra.mxu0 0.0
        %1486 = vmatprep.subr.mxu0 0.0
        %1487 = vmatpush1.msra.mxu0 0.0
        %1488 = vmatprep.subr.mxu0 0.0
        %1489 = vmatpush1.msra.mxu0 0.0
        %1490 = vmatprep.subr.mxu0 0.0
        %1491 = vmatpush1.msra.mxu0 0.0
        %1492 = vmatprep.subr.mxu0 0.0
        %1493 = vmatpush1.msra.mxu0 0.0
        %1494 = vmatprep.subr.mxu0 0.0
        %1495 = vmatpush1.msra.mxu0 0.0
        %1496 = vmatprep.subr.mxu0 0.0
        %1497 = vmatpush1.msra.mxu0 0.0
        %1498 = vmatprep.subr.mxu0 0.0
        %1499 = vmatpush1.msra.mxu0 0.0
        %1500 = vmatprep.subr.mxu0 0.0
        %1501 = vmatpush1.msra.mxu0 0.0
        %1502 = vmatprep.subr.mxu0 0.0
        %1503 = vmatpush1.msra.mxu0 0.0
        %1504 = vmatprep.subr.mxu0 0.0
        %1505 = vmatpush1.msra.mxu0 0.0
        %1506 = vmatprep.subr.mxu0 0.0
        %1507 = vmatpush1.msra.mxu0 0.0
        %1508 = vmatprep.subr.mxu0 0.0
        %1509 = vmatpush1.msra.mxu0 0.0
        %1510 = vmatprep.mubr.f32.mxu0 0.0
        %1511 = vmatmul.mubr.f32.gmra.mrb[0].mxu0 %v1421
        %v1512 = vpop.f32.mrb[0].mxu0
        %v1513 = vadd.f32 0.0, %v1512
        %v1514 = vpop.f32.mrb[0].mxu0
        %1515 = vmatprep.mubr.f32.mxu0 0.0
        %1516 = vmatmul.mubr.f32.gmra.mrb[0].mxu0 %v1422
        %v1517 = vpop.f32.mrb[0].mxu0
        %v1518 = vadd.f32 0.0, %v1517
        %v1519 = vpop.f32.mrb[0].mxu0
        %1520 = vmatprep.mubr.f32.mxu0 0.0
        %1521 = vmatmul.mubr.f32.gmra.mrb[0].mxu0 %v1423
        %v1522 = vpop.f32.mrb[0].mxu0
        %v1523 = vadd.f32 0.0, %v1522
        %v1524 = vpop.f32.mrb[0].mxu0
        %1525 = vmatprep.mubr.f32.mxu0 0.0
        %1526 = vmatmul.mubr.f32.gmra.mrb[0].mxu0 %v1424
        %v1527 = vpop.f32.mrb[0].mxu0
        %v1528 = vadd.f32 0.0, %v1527
        %v1529 = vpop.f32.mrb[0].mxu0
        %1530 = vmatprep.mubr.f32.mxu0 0.0
        %1531 = vmatmul.mubr.f32.gmra.mrb[0].mxu0 %v1425
        %v1532 = vpop.f32.mrb[0].mxu0
        %v1533 = vadd.f32 0.0, %v1532
        %v1534 = vpop.f32.mrb[0].mxu0
        %1535 = vmatprep.mubr.f32.mxu0 0.0
        %1536 = vmatmul.mubr.f32.gmra.mrb[0].mxu0 %v1426
        %v1537 = vpop.f32.mrb[0].mxu0
        %v1538 = vadd.f32 0.0, %v1537
        %v1539 = vpop.f32.mrb[0].mxu0
        %1540 = vmatprep.mubr.f32.mxu0 0.0
        %1541 = vmatmul.mubr.f32.gmra.mrb[0].mxu0 %v1427
        %v1542 = vpop.f32.mrb[0].mxu0
        %v1543 = vadd.f32 0.0, %v1542
        %v1544 = vpop.f32.mrb[0].mxu0
        %1545 = vmatprep.mubr.f32.mxu0 0.0
        %1546 = vmatmul.mubr.f32.gmra.mrb[0].mxu0 %v1428
        %v1547 = vpop.f32.mrb[0].mxu0
        %v1548 = vadd.f32 0.0, %v1547
        %v1549 = vpop.f32.mrb[0].mxu0
        %1550 = vdwg.mxu0
        %v1551 = vadd.f32 %v1413, %v1513
        %v1552 = vadd.f32 %v1414, %v1518
        %v1553 = vadd.f32 %v1415, %v1523
        %v1554 = vadd.f32 %v1416, %v1528
        %v1555 = vadd.f32 %v1417, %v1533
        %v1556 = vadd.f32 %v1418, %v1538
        %v1557 = vadd.f32 %v1419, %v1543
        %v1558 = vadd.f32 %v1420, %v1548
        %1559 = vst [vmem:[%s234] sm:$0xff] %v1551
        %1560 = vst [vmem:[%s234 + $0x8] sm:$0xff] %v1552
        %1561 = vst [vmem:[%s234 + $0x10] sm:$0xff] %v1553
        %1562 = vst [vmem:[%s234 + $0x18] sm:$0xff] %v1554
        %1563 = vst [vmem:[%s234 + $0x20] sm:$0xff] %v1555
        %1564 = vst [vmem:[%s234 + $0x28] sm:$0xff] %v1556
        %1565 = vst [vmem:[%s234 + $0x30] sm:$0xff] %v1557
        %1566 = vst [vmem:[%s234 + $0x38] sm:$0xff] %v1558
        %v1567 = vadd.f32 %v1551, %v1552
        %v1568 = vadd.f32 %v1567, %v1553
        %v1569 = vadd.f32 %v1568, %v1554
        %v1570 = vadd.f32 %v1569, %v1555
        %v1571 = vadd.f32 %v1570, %v1556
        %v1572 = vadd.f32 %v1571, %v1557
        %v1573 = vadd.f32 %v1572, %v1558
        %v1574 = vrot.slane %v1573, 4
        %v1575 = vadd.f32 %v1573, %v1574
        %v1576 = vrot.slane %v1575, 2
        %v1577 = vadd.f32 %v1575, %v1576
        %v1578 = vrot.slane %v1577, 1
        %v1579 = vadd.f32 %v1577, %v1578
        %1580 = vst [vmem:[%s240] sm:$0x1] %v1579
        %v1581 = vmul.f32 %v1551, %v1551
        %v1582 = vmul.f32 %v1552, %v1552
        %v1583 = vmul.f32 %v1553, %v1553
        %v1584 = vmul.f32 %v1554, %v1554
        %v1585 = vmul.f32 %v1555, %v1555
        %v1586 = vmul.f32 %v1556, %v1556
        %v1587 = vmul.f32 %v1557, %v1557
        %v1588 = vmul.f32 %v1558, %v1558
        %v1589 = vadd.f32 %v1581, %v1582
        %v1590 = vadd.f32 %v1589, %v1583
        %v1591 = vadd.f32 %v1590, %v1584
        %v1592 = vadd.f32 %v1591, %v1585
        %v1593 = vadd.f32 %v1592, %v1586
        %v1594 = vadd.f32 %v1593, %v1587
        %v1595 = vadd.f32 %v1594, %v1588
        %v1596 = vrot.slane %v1595, 4
        %v1597 = vadd.f32 %v1595, %v1596
        %v1598 = vrot.slane %v1597, 2
        %v1599 = vadd.f32 %v1597, %v1598
        %v1600 = vrot.slane %v1599, 1
        %v1601 = vadd.f32 %v1599, %v1600
        %1602 = vst [vmem:[%s246] sm:$0x1] %v1601
        %s1603 = sand.u32 %s81, 1
        %s1604 = scalar_lea.sflag [#allocation5], %s1603
        %s1605 = sand.u32 %s81, 1
        %s1606 = smul.addr %s1605, 64
        %s1607 = scalar_lea.vmem [#allocation8], %s1606
        %s1608 = sand.u32 %s26, 1
        %s1609 = scalar_lea.sflag [#allocation10], %s1608
        %s1610 = sand.u32 %s107, 1
        %s1611 = scalar_lea.vmem [#allocation9], %s1610
        %s1612 = sand.u32 %s26, 1
        %s1613 = scalar_lea.sflag [#allocation10], %s1612
        %s1614 = sand.u32 %s133, 1
        %s1615 = scalar_lea.vmem [#allocation11], %s1614
        // Predicated region
        $region37: #{down_forward.3} parent=27 // pred_check
          %p1616 = pneg %p91
        $region38: #{down_forward.3} parent=27 // pred_check_branch
          %1618 = sbr.rel (%p1616) target = $region40
        $region39: #{down_forward.3} parent=27 // pred_region
          %s1620 = ssub.s32 1024, 1024
          %1621 = vsyncadd %s1604, %s1620
          %s1622 = smul.addr %s26, 8
          %s1623 = smul.addr %s1622, 128
          %s1624 = scalar_lea.hbm %s2, %s1623
          %s1625 = sshll.u32 %s1607, 4
          %s1626 = int_to_ptr.vmem [resolvable:$true] %s1625
          %1631 = dma.vmem_to_hbm [thread:$0]  %s1626, 1024, %s1624, %s1604, 128, 128, 8
        $region40: #{down_forward.3} parent=27 // pred_fallthru
          _
        // Predicated region
        $region41: #{down_forward.3} parent=27 // pred_check
          %p1632 = pneg %p117
        $region42: #{down_forward.3} parent=27 // pred_check_branch
          %1634 = sbr.rel (%p1632) target = $region44
        $region43: #{down_forward.3} parent=27 // pred_region
          %s1636 = ssub.s32 16, 16
          %1637 = vsyncadd %s1609, %s1636
          %s1638 = smul.addr %s26, 16
          %s1639 = scalar_lea.hbm %s3, %s1638
          %s1641 = sshll.u32 %s1611, 4
          %s1642 = int_to_ptr.vmem [resolvable:$true] %s1641
          %1644 = dma.vmem_to_hbm [thread:$0]  %s1642, 16, %s1639, %s1609
        $region44: #{down_forward.3} parent=27 // pred_fallthru
          _
        // Predicated region
        $region45: #{down_forward.3} parent=27 // pred_check
          %p1645 = pneg %p143
        $region46: #{down_forward.3} parent=27 // pred_check_branch
          %1647 = sbr.rel (%p1645) target = $region48
        $region47: #{down_forward.3} parent=27 // pred_region
          %s1649 = ssub.s32 16, 16
          %1650 = vsyncadd %s1613, %s1649
          %s1651 = smul.addr %s26, 16
          %s1652 = scalar_lea.hbm %s4, %s1651
          %s1654 = sshll.u32 %s1615, 4
          %s1655 = int_to_ptr.vmem [resolvable:$true] %s1654
          %1657 = dma.vmem_to_hbm [thread:$0]  %s1655, 16, %s1652, %s1613
        $region48: #{down_forward.3} parent=27 // pred_fallthru
          _
      $region28: #{down_forward.3} parent=5 // pred_fallthru
        _
      %p1658 = scmp.le.s32.totalorder 2, %s21
      // Predicated region
      $region49: #{down_forward.3} parent=5 // pred_check
        %p1659 = pneg %p1658
      $region50: #{down_forward.3} parent=5 // pred_check_branch
        %1661 = sbr.rel (%p1659) target = $region52
      $region51: #{down_forward.3} parent=5 // pred_region
        %s1662 = ssub.s32 %s21, 2
        // Predicated region
        $region53: #{down_forward.3} parent=51 // pred_check
          %p1663 = pneg %p97
        $region54: #{down_forward.3} parent=51 // pred_check_branch
          %1665 = sbr.rel (%p1663) target = $region56
        $region55: #{down_forward.3} parent=51 // pred_region
          %s1666 = sand.u32 %s82, 1
          %s1667 = scalar_lea.sflag [#allocation5], %s1666
          %s1668 = sand.u32 %s82, 1
          %s1669 = smul.addr %s1668, 64
          %s1670 = scalar_lea.vmem [#allocation8], %s1669
          %1671 = dma.done %s1667, 1024
        $region56: #{down_forward.3} parent=51 // pred_fallthru
          _
        // Predicated region
        $region57: #{down_forward.3} parent=51 // pred_check
          %p1672 = pneg %p123
        $region58: #{down_forward.3} parent=51 // pred_check_branch
          %1674 = sbr.rel (%p1672) target = $region60
        $region59: #{down_forward.3} parent=51 // pred_region
          %s1675 = sand.u32 %s27, 1
          %s1676 = scalar_lea.sflag [#allocation10], %s1675
          %s1677 = sand.u32 %s108, 1
          %s1678 = scalar_lea.vmem [#allocation9], %s1677
          %1679 = dma.done %s1676, 16
        $region60: #{down_forward.3} parent=51 // pred_fallthru
          _
        // Predicated region
        $region61: #{down_forward.3} parent=51 // pred_check
          %p1680 = pneg %p149
        $region62: #{down_forward.3} parent=51 // pred_check_branch
          %1682 = sbr.rel (%p1680) target = $region64
        $region63: #{down_forward.3} parent=51 // pred_region
          %s1683 = sand.u32 %s27, 1
          %s1684 = scalar_lea.sflag [#allocation10], %s1683
          %s1685 = sand.u32 %s134, 1
          %s1686 = scalar_lea.vmem [#allocation11], %s1685
          %1687 = dma.done %s1684, 16
        $region64: #{down_forward.3} parent=51 // pred_fallthru
          _
      $region52: #{down_forward.3} parent=5 // pred_fallthru
        _
    $region6: #{down_forward.3} parent=1 // loop_footer
      %s25 = sadd.s32 1, %s21
    $region7: #{down_forward.3} parent=1 // loop_footer_branch
      %20 = sbr.rel target = $region3
    $region8: #{down_forward.3} parent=1 // loop_exit
      _
    %1688 = vsyncpa [#allocation4], 1
    %s1689 = scalar_lea.sflag [#allocation4], 1
    %1690 = vsyncpa %s1689, 1
    %1691 = vsyncpa [#allocation7], 1
    %1692 = vsyncpa [#allocation5], 1
    %s1693 = scalar_lea.sflag [#allocation5], 1
    %1694 = vsyncpa %s1693, 1
    %1695 = vsyncpa [#allocation10], 1
    %s1696 = scalar_lea.sflag [#allocation10], 1
    %1697 = vsyncpa %s1696, 1

// kernel: down_forward.4
$region0: #{down_forward.4}
  #allocation0 [shape = 'u32[]', space=smem, size = 0x4, offset = 0x4, fixed_abs, tag = 'smem constant byte address 0x4 - core index']
  #allocation1 [shape = 'u32[144,128]{1,0:T(1,128)}', space=vmem, size = 0x12000, scoped, tag = 'internal scratch']
  #allocation2 [shape = 'f32[10,10,128]{2,1,0:T(8,128)}', space=vmem, size = 0x14000, scoped, tag = 'scratch operand']
  %s0 = inlined_call_operand.hbm [shape: f32[2,8,8,128], index: 0, kind: input, shape index: {}]
  %s1 = inlined_call_operand.hbm [shape: f32[1,128], index: 1, kind: input, shape index: {}]
  %s2 = inlined_call_operand.hbm [shape: f32[1,128], index: 2, kind: input, shape index: {}]
  %s3 = inlined_call_operand.hbm [shape: f32[9,128,128], index: 3, kind: input, shape index: {}]
  %s4 = inlined_call_operand.hbm [shape: f32[2,8,8,128], index: 4, kind: output, shape index: {0}]
  %s5 = inlined_call_operand.hbm [shape: f32[2,1,128], index: 5, kind: output, shape index: {1}]
  %s6 = inlined_call_operand.hbm [shape: f32[2,1,128], index: 6, kind: output, shape index: {2}]
  %7 = xla_tuple %s4, %s5, %s6
  %s8 = sld [smem:[#allocation0]]
  $region81: #{down_forward.4} parent=0
    _
  %s10 = ssub.s32 1, %s8
  %s11 = scalar_select 0, %s10, %s8
  $region1: #{down_forward.4} parent=0
    #allocation3 [shape = 'u8[65536]{0}', space=vmem, size = 0x10000, scoped, tag = 'input window, operand 0']
    #allocation4 [shape = 's32[2]{0}', space=sflag, size = 0x8, scoped, tag = 'scoped memory for down_forward.4']
    #allocation5 [shape = 's32[2]{0}', space=sflag, size = 0x8, scoped, tag = 'scoped memory for down_forward.4']
    #allocation6 [shape = 'u8[512]{0}', space=vmem, size = 0x400, scoped, tag = 'input window, operand 1, single buffered']
    #allocation7 [shape = 's32[1]{0}', space=sflag, size = 0x4, scoped, tag = 'scoped memory for down_forward.4']
    #allocation8 [shape = 'u8[512]{0}', space=vmem, size = 0x400, scoped, tag = 'input window, operand 2, single buffered']
    #allocation9 [shape = 'u8[589824]{0}', space=vmem, size = 0x90000, scoped, tag = 'input window, operand 3, single buffered']
    #allocation10 [shape = 's32[1]{0}', space=sflag, size = 0x4, scoped, tag = 'scoped memory for down_forward.4']
    #allocation11 [shape = 'u8[65536]{0}', space=vmem, size = 0x10000, scoped, tag = 'output window, operand 0']
    #allocation12 [shape = 'u8[1024]{0}', space=vmem, size = 0x400, scoped, tag = 'output window, operand 1']
    #allocation13 [shape = 's32[2]{0}', space=sflag, size = 0x8, scoped, tag = 'scoped memory for down_forward.4']
    #allocation14 [shape = 'u8[1024]{0}', space=vmem, size = 0x400, scoped, tag = 'output window, operand 2']
    %12 = vsyncpa [#allocation4], 0
    %s13 = scalar_lea.sflag [#allocation4], 1
    %14 = vsyncpa %s13, 0
    %15 = vsyncpa [#allocation7], 0
    %16 = vsyncpa [#allocation10], 0
    %17 = vsyncpa [#allocation5], 0
    %s18 = scalar_lea.sflag [#allocation5], 1
    %19 = vsyncpa %s18, 0
    %20 = vsyncpa [#allocation13], 0
    %s21 = scalar_lea.sflag [#allocation13], 1
    %22 = vsyncpa %s21, 0
    loop: start=0, step=1, limit=4
    $region2: #{down_forward.4} parent=1 // loop_pre_header
      _
    $region3: #{down_forward.4} parent=1 // loop_header
      %s24 = sphi 0, %s28
      %p25 = scmp.ge.s32.totalorder %s24, 4
      %s34 = sphi 0, %s36
      %s37 = sphi 0, %s34
      %s38 = sphi 0, %s37
      %s54 = sphi 0, %s38
      %s58 = sphi 0, %s58
      %s60 = sphi 0, %s58
      %s61 = sphi 0, %s60
      %s75 = sphi 0, %s61
      %s79 = sphi 0, %s79
      %s81 = sphi 0, %s79
      %s82 = sphi 0, %s81
      %s96 = sphi 0, %s82
      %s100 = sphi 0, %s100
      %s102 = sphi 0, %s100
      %s103 = sphi 0, %s102
      %s117 = sphi 0, %s103
      %s123 = sphi 0, %s125
      %s126 = sphi 0, %s123
      %s127 = sphi 0, %s126
      %s143 = sphi 0, %s127
      %s149 = sphi 0, %s151
      %s152 = sphi 0, %s149
      %s153 = sphi 0, %s152
      %s169 = sphi 0, %s153
      %s175 = sphi 0, %s177
      %s178 = sphi 0, %s175
      %s179 = sphi 0, %s178
      %s195 = sphi 0, %s179
    $region4: #{down_forward.4} parent=1 // loop_header_branch
      %27 = sbr.rel (%p25) target = $region8
    $region5: #{down_forward.4} parent=1 // loop_body
      %s29 = ssub.s32 %s24, 1
      %s30 = ssub.s32 %s24, 2
      %s31 = sadd.s32 %s24, 1
      %s32 = ssub.s32 %s24, %s31
      %p33 = scmp.eq.s32.totalorder %s32, 0
      %s35 = sadd.s32 %s34, 1
      %s36 = scalar_select %p33, %s34, %s35
      %p39 = pneg %p33
      %p40 = scmp.eq.s32.totalorder %s24, 1
      %p41 = por %p39, %p40
      %p42 = scmp.ne.s32.totalorder %s34, %s37
      %p43 = scmp.eq.s32.totalorder %s24, 0
      %p44 = por %p42, %p43
      %p45 = scmp.ne.s32.totalorder %s34, %s37
      %p46 = scmp.eq.s32.totalorder %s29, 1
      %p47 = por %p45, %p46
      %p48 = scmp.ne.s32.totalorder %s37, %s38
      %p49 = scmp.eq.s32.totalorder %s29, 0
      %p50 = por %p48, %p49
      %p51 = scmp.ne.s32.totalorder %s37, %s38
      %p52 = scmp.eq.s32.totalorder %s30, 1
      %p53 = por %p51, %p52
      %p55 = scmp.ne.s32.totalorder %s38, %s54
      %p56 = scmp.eq.s32.totalorder %s30, 0
      %p57 = por %p55, %p56
      %s59 = sadd.s32 %s58, 1
      %p62 = scmp.eq.s32.totalorder %s24, 1
      %p63 = scmp.ne.s32.totalorder %s58, %s60
      %p64 = scmp.eq.s32.totalorder %s24, 0
      %p65 = por %p63, %p64
      %p66 = scmp.ne.s32.totalorder %s58, %s60
      %p67 = scmp.eq.s32.totalorder %s29, 1
      %p68 = por %p66, %p67
      %p69 = scmp.ne.s32.totalorder %s60, %s61
      %p70 = scmp.eq.s32.totalorder %s29, 0
      %p71 = por %p69, %p70
      %p72 = scmp.ne.s32.totalorder %s60, %s61
      %p73 = scmp.eq.s32.totalorder %s30, 1
      %p74 = por %p72, %p73
      %p76 = scmp.ne.s32.totalorder %s61, %s75
      %p77 = scmp.eq.s32.totalorder %s30, 0
      %p78 = por %p76, %p77
      %s80 = sadd.s32 %s79, 1
      %p83 = scmp.eq.s32.totalorder %s24, 1
      %p84 = scmp.ne.s32.totalorder %s79, %s81
      %p85 = scmp.eq.s32.totalorder %s24, 0
      %p86 = por %p84, %p85
      %p87 = scmp.ne.s32.totalorder %s79, %s81
      %p88 = scmp.eq.s32.totalorder %s29, 1
      %p89 = por %p87, %p88
      %p90 = scmp.ne.s32.totalorder %s81, %s82
      %p91 = scmp.eq.s32.totalorder %s29, 0
      %p92 = por %p90, %p91
      %p93 = scmp.ne.s32.totalorder %s81, %s82
      %p94 = scmp.eq.s32.totalorder %s30, 1
      %p95 = por %p93, %p94
      %p97 = scmp.ne.s32.totalorder %s82, %s96
      %p98 = scmp.eq.s32.totalorder %s30, 0
      %p99 = por %p97, %p98
      %s101 = sadd.s32 %s100, 1
      %p104 = scmp.eq.s32.totalorder %s24, 1
      %p105 = scmp.ne.s32.totalorder %s100, %s102
      %p106 = scmp.eq.s32.totalorder %s24, 0
      %p107 = por %p105, %p106
      %p108 = scmp.ne.s32.totalorder %s100, %s102
      %p109 = scmp.eq.s32.totalorder %s29, 1
      %p110 = por %p108, %p109
      %p111 = scmp.ne.s32.totalorder %s102, %s103
      %p112 = scmp.eq.s32.totalorder %s29, 0
      %p113 = por %p111, %p112
      %p114 = scmp.ne.s32.totalorder %s102, %s103
      %p115 = scmp.eq.s32.totalorder %s30, 1
      %p116 = por %p114, %p115
      %p118 = scmp.ne.s32.totalorder %s103, %s117
      %p119 = scmp.eq.s32.totalorder %s30, 0
      %p120 = por %p118, %p119
      %s121 = ssub.s32 %s24, %s31
      %p122 = scmp.eq.s32.totalorder %s121, 0
      %s124 = sadd.s32 %s123, 1
      %s125 = scalar_select %p122, %s123, %s124
      %p128 = pneg %p122
      %p129 = scmp.eq.s32.totalorder %s24, 1
      %p130 = por %p128, %p129
      %p131 = scmp.ne.s32.totalorder %s123, %s126
      %p132 = scmp.eq.s32.totalorder %s24, 0
      %p133 = por %p131, %p132
      %p134 = scmp.ne.s32.totalorder %s123, %s126
      %p135 = scmp.eq.s32.totalorder %s29, 1
      %p136 = por %p134, %p135
      %p137 = scmp.ne.s32.totalorder %s126, %s127
      %p138 = scmp.eq.s32.totalorder %s29, 0
      %p139 = por %p137, %p138
      %p140 = scmp.ne.s32.totalorder %s126, %s127
      %p141 = scmp.eq.s32.totalorder %s30, 1
      %p142 = por %p140, %p141
      %p144 = scmp.ne.s32.totalorder %s127, %s143
      %p145 = scmp.eq.s32.totalorder %s30, 0
      %p146 = por %p144, %p145
      %s147 = ssub.s32 %s24, %s31
      %p148 = scmp.eq.s32.totalorder %s147, 0
      %s150 = sadd.s32 %s149, 1
      %s151 = scalar_select %p148, %s149, %s150
      %p154 = pneg %p148
      %p155 = scmp.eq.s32.totalorder %s24, 1
      %p156 = por %p154, %p155
      %p157 = scmp.ne.s32.totalorder %s149, %s152
      %p158 = scmp.eq.s32.totalorder %s24, 0
      %p159 = por %p157, %p158
      %p160 = scmp.ne.s32.totalorder %s149, %s152
      %p161 = scmp.eq.s32.totalorder %s29, 1
      %p162 = por %p160, %p161
      %p163 = scmp.ne.s32.totalorder %s152, %s153
      %p164 = scmp.eq.s32.totalorder %s29, 0
      %p165 = por %p163, %p164
      %p166 = scmp.ne.s32.totalorder %s152, %s153
      %p167 = scmp.eq.s32.totalorder %s30, 1
      %p168 = por %p166, %p167
      %p170 = scmp.ne.s32.totalorder %s153, %s169
      %p171 = scmp.eq.s32.totalorder %s30, 0
      %p172 = por %p170, %p171
      %s173 = ssub.s32 %s24, %s31
      %p174 = scmp.eq.s32.totalorder %s173, 0
      %s176 = sadd.s32 %s175, 1
      %s177 = scalar_select %p174, %s175, %s176
      %p180 = pneg %p174
      %p181 = scmp.eq.s32.totalorder %s24, 1
      %p182 = por %p180, %p181
      %p183 = scmp.ne.s32.totalorder %s175, %s178
      %p184 = scmp.eq.s32.totalorder %s24, 0
      %p185 = por %p183, %p184
      %p186 = scmp.ne.s32.totalorder %s175, %s178
      %p187 = scmp.eq.s32.totalorder %s29, 1
      %p188 = por %p186, %p187
      %p189 = scmp.ne.s32.totalorder %s178, %s179
      %p190 = scmp.eq.s32.totalorder %s29, 0
      %p191 = por %p189, %p190
      %p192 = scmp.ne.s32.totalorder %s178, %s179
      %p193 = scmp.eq.s32.totalorder %s30, 1
      %p194 = por %p192, %p193
      %p196 = scmp.ne.s32.totalorder %s179, %s195
      %p197 = scmp.eq.s32.totalorder %s30, 0
      %p198 = por %p196, %p197
      %p199 = scmp.le.s32.totalorder 1, %s24
      %p200 = scmp.lt.s32.totalorder %s24, 3
      %p201 = pnand %p199, %p200
      %p202 = pneg %p201
      // Predicated region
      $region9: #{down_forward.4} parent=5 // pred_check
        _
      $region10: #{down_forward.4} parent=5 // pred_check_branch
        %204 = sbr.rel (%p201) target = $region12
      $region11: #{down_forward.4} parent=5 // pred_region
        %s205 = ssub.s32 %s24, 1
        // Predicated region
        $region13: #{down_forward.4} parent=11 // pred_check
          %p206 = pneg %p71
        $region14: #{down_forward.4} parent=11 // pred_check_branch
          %208 = sbr.rel (%p206) target = $region16
        $region15: #{down_forward.4} parent=11 // pred_region
          %s210 = ssub.s32 16, 16
          %211 = vsyncadd [#allocation7], %s210
          %s213 = sshll.u32 [#allocation6], 4
          %s214 = int_to_ptr.vmem [resolvable:$true] %s213
          %216 = dma.hbm_to_vmem [thread:$0]  %s1, 16, %s214, [#allocation7]
        $region16: #{down_forward.4} parent=11 // pred_fallthru
          _
        // Predicated region
        $region17: #{down_forward.4} parent=11 // pred_check
          %p217 = pneg %p92
        $region18: #{down_forward.4} parent=11 // pred_check_branch
          %219 = sbr.rel (%p217) target = $region20
        $region19: #{down_forward.4} parent=11 // pred_region
          %s221 = ssub.s32 16, 16
          %222 = vsyncadd [#allocation7], %s221
          %s224 = sshll.u32 [#allocation8], 4
          %s225 = int_to_ptr.vmem [resolvable:$true] %s224
          %227 = dma.hbm_to_vmem [thread:$0]  %s2, 16, %s225, [#allocation7]
        $region20: #{down_forward.4} parent=11 // pred_fallthru
          _
        // Predicated region
        $region21: #{down_forward.4} parent=11 // pred_check
          %p228 = pneg %p113
        $region22: #{down_forward.4} parent=11 // pred_check_branch
          %230 = sbr.rel (%p228) target = $region24
        $region23: #{down_forward.4} parent=11 // pred_region
          %s232 = ssub.s32 18432, 18432
          %233 = vsyncadd [#allocation10], %s232
          %s234 = sshll.u32 [#allocation9], 4
          %s235 = int_to_ptr.vmem [resolvable:$true] %s234
          %240 = dma.hbm_to_vmem [thread:$0]  %s3, 18432, %s235, [#allocation10], 128, 128, 8
        $region24: #{down_forward.4} parent=11 // pred_fallthru
          _
      $region12: #{down_forward.4} parent=5 // pred_fallthru
        _
      %p241 = scmp.lt.s32.totalorder %s24, 2
      // Predicated region
      $region25: #{down_forward.4} parent=5 // pred_check
        %p242 = pneg %p241
      $region26: #{down_forward.4} parent=5 // pred_check_branch
        %244 = sbr.rel (%p242) target = $region28
      $region27: #{down_forward.4} parent=5 // pred_region
        // Predicated region
        $region29: #{down_forward.4} parent=27 // pred_check
          %p245 = pneg %p44
        $region30: #{down_forward.4} parent=27 // pred_check_branch
          %247 = sbr.rel (%p245) target = $region32
        $region31: #{down_forward.4} parent=27 // pred_region
          %s248 = sand.u32 %s34, 1
          %s249 = scalar_lea.sflag [#allocation4], %s248
          %s250 = sand.u32 %s34, 1
          %s251 = smul.addr %s250, 64
          %s252 = scalar_lea.vmem [#allocation3], %s251
          %s254 = ssub.s32 1024, 1024
          %255 = vsyncadd %s249, %s254
          %s256 = smul.addr %s24, 8
          %s257 = smul.addr %s256, 128
          %s258 = scalar_lea.hbm %s0, %s257
          %s259 = sshll.u32 %s252, 4
          %s260 = int_to_ptr.vmem [resolvable:$true] %s259
          %265 = dma.hbm_to_vmem [thread:$0]  %s258, 1024, %s260, %s249, 128, 128, 8
        $region32: #{down_forward.4} parent=27 // pred_fallthru
          _
      $region28: #{down_forward.4} parent=5 // pred_fallthru
        _
      %p266 = scmp.le.s32.totalorder 1, %s24
      %p267 = scmp.lt.s32.totalorder %s24, 3
      %p268 = pnand %p266, %p267
      %p269 = pneg %p268
      // Predicated region
      $region33: #{down_forward.4} parent=5 // pred_check
        _
      $region34: #{down_forward.4} parent=5 // pred_check_branch
        %271 = sbr.rel (%p268) target = $region36
      $region35: #{down_forward.4} parent=5 // pred_region
        %s272 = ssub.s32 %s24, 1
        %s273 = sand.u32 %s37, 1
        %s274 = scalar_lea.sflag [#allocation4], %s273
        %s275 = sand.u32 %s37, 1
        %s276 = smul.addr %s275, 64
        %s277 = scalar_lea.vmem [#allocation3], %s276
        // Predicated region
        $region37: #{down_forward.4} parent=35 // pred_check
          %p278 = pneg %p50
        $region38: #{down_forward.4} parent=35 // pred_check_branch
          %280 = sbr.rel (%p278) target = $region40
        $region39: #{down_forward.4} parent=35 // pred_region
          %281 = dma.done %s274, 1024
        $region40: #{down_forward.4} parent=35 // pred_fallthru
          _
        // Predicated region
        $region41: #{down_forward.4} parent=35 // pred_check
          %p282 = pneg %p71
        $region42: #{down_forward.4} parent=35 // pred_check_branch
          %284 = sbr.rel (%p282) target = $region44
        $region43: #{down_forward.4} parent=35 // pred_region
          %285 = dma.done [#allocation7], 16
        $region44: #{down_forward.4} parent=35 // pred_fallthru
          _
        // Predicated region
        $region45: #{down_forward.4} parent=35 // pred_check
          %p286 = pneg %p92
        $region46: #{down_forward.4} parent=35 // pred_check_branch
          %288 = sbr.rel (%p286) target = $region48
        $region47: #{down_forward.4} parent=35 // pred_region
          %289 = dma.done [#allocation7], 16
        $region48: #{down_forward.4} parent=35 // pred_fallthru
          _
        // Predicated region
        $region49: #{down_forward.4} parent=35 // pred_check
          %p290 = pneg %p113
        $region50: #{down_forward.4} parent=35 // pred_check_branch
          %292 = sbr.rel (%p290) target = $region52
        $region51: #{down_forward.4} parent=35 // pred_region
          %293 = dma.done [#allocation10], 18432
        $region52: #{down_forward.4} parent=35 // pred_fallthru
          _
        %s294 = sand.u32 %s37, 1
        %s295 = scalar_lea.sflag [#allocation4], %s294
        %s296 = sand.u32 %s37, 1
        %s297 = smul.addr %s296, 64
        %s298 = scalar_lea.vmem [#allocation3], %s297
        %p299 = pneg %p50
        %p300 = pneg %p47
        %p301 = pneg %p71
        %p302 = pneg %p68
        %p303 = pneg %p92
        %p304 = pneg %p89
        %p305 = pneg %p113
        %p306 = pneg %p110
        %p307 = pneg %p139
        %p308 = pneg %p136
        %s309 = sand.u32 %s126, 1
        %s310 = scalar_lea.sflag [#allocation5], %s309
        %s311 = sand.u32 %s126, 1
        %s312 = smul.addr %s311, 64
        %s313 = scalar_lea.vmem [#allocation11], %s312
        %p314 = pneg %p165
        %p315 = pneg %p162
        %s316 = sand.u32 %s29, 1
        %s317 = scalar_lea.sflag [#allocation13], %s316
        %s318 = sand.u32 %s152, 1
        %s319 = scalar_lea.vmem [#allocation12], %s318
        %p320 = pneg %p191
        %p321 = pneg %p188
        %s322 = sand.u32 %s29, 1
        %s323 = scalar_lea.sflag [#allocation13], %s322
        %s324 = sand.u32 %s178, 1
        %s325 = scalar_lea.vmem [#allocation14], %s324
        %v326 = vld [vmem:[#allocation6] sm:$0x1]
        %v327 = vld [vmem:[#allocation8] sm:$0x1]
        %v328 = vld [vmem:[%s277] sm:$0xff]
        %v329 = vld [vmem:[%s277 + $0x8] sm:$0xff]
        %v330 = vld [vmem:[%s277 + $0x10] sm:$0xff]
        %v331 = vld [vmem:[%s277 + $0x18] sm:$0xff]
        %v332 = vld [vmem:[%s277 + $0x20] sm:$0xff]
        %v333 = vld [vmem:[%s277 + $0x28] sm:$0xff]
        %v334 = vld [vmem:[%s277 + $0x30] sm:$0xff]
        %v335 = vld [vmem:[%s277 + $0x38] sm:$0xff]
        %v337 = vlaneseq
        %v338 = vshrl.u32 %v337, 7
        %v339 = vsub.s32 0, %v338
        %v340 = vrot.slane %v326, %v339
        %v342 = vmul.f32 %v328, %v340
        %v343 = vmul.f32 %v329, %v340
        %v344 = vmul.f32 %v330, %v340
        %v345 = vmul.f32 %v331, %v340
        %v346 = vmul.f32 %v332, %v340
        %v347 = vmul.f32 %v333, %v340
        %v348 = vmul.f32 %v334, %v340
        %v349 = vmul.f32 %v335, %v340
        %v351 = vlaneseq
        %v352 = vshrl.u32 %v351, 7
        %v353 = vsub.s32 0, %v352
        %v354 = vrot.slane %v327, %v353
        %v356 = vadd.f32 %v342, %v354
        %v357 = vadd.f32 %v343, %v354
        %v358 = vadd.f32 %v344, %v354
        %v359 = vadd.f32 %v345, %v354
        %v360 = vadd.f32 %v346, %v354
        %v361 = vadd.f32 %v347, %v354
        %v362 = vadd.f32 %v348, %v354
        %v363 = vadd.f32 %v349, %v354
        %v364 = vmax.f32 %v356, 0.0
        %v365 = vmax.f32 %v357, 0.0
        %v366 = vmax.f32 %v358, 0.0
        %v367 = vmax.f32 %v359, 0.0
        %v368 = vmax.f32 %v360, 0.0
        %v369 = vmax.f32 %v361, 0.0
        %v370 = vmax.f32 %v362, 0.0
        %v371 = vmax.f32 %v363, 0.0
        %372 = vst [vmem:[#allocation2] sm:$0xff] 0.0
        %373 = vst [vmem:[#allocation2 + $0x8] sm:$0x3] 0.0
        %374 = vst [vmem:[#allocation2 + $0x10] sm:$0xff] 0.0
        %375 = vst [vmem:[#allocation2 + $0x18] sm:$0x3] 0.0
        %376 = vst [vmem:[#allocation2 + $0x20] sm:$0xff] 0.0
        %377 = vst [vmem:[#allocation2 + $0x28] sm:$0x3] 0.0
        %378 = vst [vmem:[#allocation2 + $0x30] sm:$0xff] 0.0
        %379 = vst [vmem:[#allocation2 + $0x38] sm:$0x3] 0.0
        %380 = vst [vmem:[#allocation2 + $0x40] sm:$0xff] 0.0
        %381 = vst [vmem:[#allocation2 + $0x48] sm:$0x3] 0.0
        %382 = vst [vmem:[#allocation2 + $0x50] sm:$0xff] 0.0
        %383 = vst [vmem:[#allocation2 + $0x58] sm:$0x3] 0.0
        %384 = vst [vmem:[#allocation2 + $0x60] sm:$0xff] 0.0
        %385 = vst [vmem:[#allocation2 + $0x68] sm:$0x3] 0.0
        %386 = vst [vmem:[#allocation2 + $0x70] sm:$0xff] 0.0
        %387 = vst [vmem:[#allocation2 + $0x78] sm:$0x3] 0.0
        %388 = vst [vmem:[#allocation2 + $0x80] sm:$0xff] 0.0
        %389 = vst [vmem:[#allocation2 + $0x88] sm:$0x3] 0.0
        %390 = vst [vmem:[#allocation2 + $0x90] sm:$0xff] 0.0
        %391 = vst [vmem:[#allocation2 + $0x98] sm:$0x3] 0.0
        %s392 = scalar_lea.vmem [#allocation2], 16
        %393 = vst [vmem:[%s392 + $0x1] sm:$0xff] %v364
        %394 = vst [vmem:[%s392 + $0x11] sm:$0xff] %v365
        %395 = vst [vmem:[%s392 + $0x21] sm:$0xff] %v366
        %396 = vst [vmem:[%s392 + $0x31] sm:$0xff] %v367
        %397 = vst [vmem:[%s392 + $0x41] sm:$0xff] %v368
        %398 = vst [vmem:[%s392 + $0x51] sm:$0xff] %v369
        %399 = vst [vmem:[%s392 + $0x61] sm:$0xff] %v370
        %400 = vst [vmem:[%s392 + $0x71] sm:$0xff] %v371
        %v401 = vld [vmem:[#allocation2] sm:$0xff]
        %v402 = vld [vmem:[#allocation2 + $0x10] sm:$0xff]
        %v403 = vld [vmem:[#allocation2 + $0x20] sm:$0xff]
        %v404 = vld [vmem:[#allocation2 + $0x30] sm:$0xff]
        %v405 = vld [vmem:[#allocation2 + $0x40] sm:$0xff]
        %v406 = vld [vmem:[#allocation2 + $0x50] sm:$0xff]
        %v407 = vld [vmem:[#allocation2 + $0x60] sm:$0xff]
        %v408 = vld [vmem:[#allocation2 + $0x70] sm:$0xff]
        %v409 = vld [vmem:[#allocation9] sm:$0xff]
        %v410 = vld [vmem:[#allocation9 + $0x8] sm:$0xff]
        %v411 = vld [vmem:[#allocation9 + $0x10] sm:$0xff]
        %v412 = vld [vmem:[#allocation9 + $0x18] sm:$0xff]
        %v413 = vld [vmem:[#allocation9 + $0x20] sm:$0xff]
        %v414 = vld [vmem:[#allocation9 + $0x28] sm:$0xff]
        %v415 = vld [vmem:[#allocation9 + $0x30] sm:$0xff]
        %v416 = vld [vmem:[#allocation9 + $0x38] sm:$0xff]
        %v417 = vld [vmem:[#allocation9 + $0x40] sm:$0xff]
        %v418 = vld [vmem:[#allocation9 + $0x48] sm:$0xff]
        %v419 = vld [vmem:[#allocation9 + $0x50] sm:$0xff]
        %v420 = vld [vmem:[#allocation9 + $0x58] sm:$0xff]
        %v421 = vld [vmem:[#allocation9 + $0x60] sm:$0xff]
        %v422 = vld [vmem:[#allocation9 + $0x68] sm:$0xff]
        %v423 = vld [vmem:[#allocation9 + $0x70] sm:$0xff]
        %v424 = vld [vmem:[#allocation9 + $0x78] sm:$0xff]
        %v425 = vld [vmem:[#allocation2 + $0x1] sm:$0xff]
        %v426 = vld [vmem:[#allocation2 + $0x11] sm:$0xff]
        %v427 = vld [vmem:[#allocation2 + $0x21] sm:$0xff]
        %v428 = vld [vmem:[#allocation2 + $0x31] sm:$0xff]
        %v429 = vld [vmem:[#allocation2 + $0x41] sm:$0xff]
        %v430 = vld [vmem:[#allocation2 + $0x51] sm:$0xff]
        %v431 = vld [vmem:[#allocation2 + $0x61] sm:$0xff]
        %v432 = vld [vmem:[#allocation2 + $0x71] sm:$0xff]
        %s433 = scalar_lea.vmem [#allocation9], 128
        %v434 = vld [vmem:[%s433] sm:$0xff]
        %v435 = vld [vmem:[%s433 + $0x8] sm:$0xff]
        %v436 = vld [vmem:[%s433 + $0x10] sm:$0xff]
        %v437 = vld [vmem:[%s433 + $0x18] sm:$0xff]
        %v438 = vld [vmem:[%s433 + $0x20] sm:$0xff]
        %v439 = vld [vmem:[%s433 + $0x28] sm:$0xff]
        %v440 = vld [vmem:[%s433 + $0x30] sm:$0xff]
        %v441 = vld [vmem:[%s433 + $0x38] sm:$0xff]
        %v442 = vld [vmem:[%s433 + $0x40] sm:$0xff]
        %v443 = vld [vmem:[%s433 + $0x48] sm:$0xff]
        %v444 = vld [vmem:[%s433 + $0x50] sm:$0xff]
        %v445 = vld [vmem:[%s433 + $0x58] sm:$0xff]
        %v446 = vld [vmem:[%s433 + $0x60] sm:$0xff]
        %v447 = vld [vmem:[%s433 + $0x68] sm:$0xff]
        %v448 = vld [vmem:[%s433 + $0x70] sm:$0xff]
        %v449 = vld [vmem:[%s433 + $0x78] sm:$0xff]
        %450 = vmatprep.subr.mxu0 0.0
        %451 = vmatpush1.msra.mxu0 %v434
        %452 = vmatprep.subr.mxu0 0.0
        %453 = vmatpush1.msra.mxu0 %v435
        %454 = vmatprep.subr.mxu0 0.0
        %455 = vmatpush1.msra.mxu0 %v436
        %456 = vmatprep.subr.mxu0 0.0
        %457 = vmatpush1.msra.mxu0 %v437
        %458 = vmatprep.subr.mxu0 0.0
        %459 = vmatpush1.msra.mxu0 %v438
        %460 = vmatprep.subr.mxu0 0.0
        %461 = vmatpush1.msra.mxu0 %v439
        %462 = vmatprep.subr.mxu0 0.0
        %463 = vmatpush1.msra.mxu0 %v440
        %464 = vmatprep.subr.mxu0 0.0
        %465 = vmatpush1.msra.mxu0 %v441
        %466 = vmatprep.subr.mxu0 0.0
        %467 = vmatpush1.msra.mxu0 %v442
        %468 = vmatprep.subr.mxu0 0.0
        %469 = vmatpush1.msra.mxu0 %v443
        %470 = vmatprep.subr.mxu0 0.0
        %471 = vmatpush1.msra.mxu0 %v444
        %472 = vmatprep.subr.mxu0 0.0
        %473 = vmatpush1.msra.mxu0 %v445
        %474 = vmatprep.subr.mxu0 0.0
        %475 = vmatpush1.msra.mxu0 %v446
        %476 = vmatprep.subr.mxu0 0.0
        %477 = vmatpush1.msra.mxu0 %v447
        %478 = vmatprep.subr.mxu0 0.0
        %479 = vmatpush1.msra.mxu0 %v448
        %480 = vmatprep.subr.mxu0 0.0
        %481 = vmatpush1.msra.mxu0 %v449
        %482 = vmatprep.subr.mxu0 0.0
        %483 = vmatpush1.msra.mxu0 0.0
        %484 = vmatprep.subr.mxu0 0.0
        %485 = vmatpush1.msra.mxu0 0.0
        %486 = vmatprep.subr.mxu0 0.0
        %487 = vmatpush1.msra.mxu0 0.0
        %488 = vmatprep.subr.mxu0 0.0
        %489 = vmatpush1.msra.mxu0 0.0
        %490 = vmatprep.subr.mxu0 0.0
        %491 = vmatpush1.msra.mxu0 0.0
        %492 = vmatprep.subr.mxu0 0.0
        %493 = vmatpush1.msra.mxu0 0.0
        %494 = vmatprep.subr.mxu0 0.0
        %495 = vmatpush1.msra.mxu0 0.0
        %496 = vmatprep.subr.mxu0 0.0
        %497 = vmatpush1.msra.mxu0 0.0
        %498 = vmatprep.subr.mxu0 0.0
        %499 = vmatpush1.msra.mxu0 0.0
        %500 = vmatprep.subr.mxu0 0.0
        %501 = vmatpush1.msra.mxu0 0.0
        %502 = vmatprep.subr.mxu0 0.0
        %503 = vmatpush1.msra.mxu0 0.0
        %504 = vmatprep.subr.mxu0 0.0
        %505 = vmatpush1.msra.mxu0 0.0
        %506 = vmatprep.subr.mxu0 0.0
        %507 = vmatpush1.msra.mxu0 0.0
        %508 = vmatprep.subr.mxu0 0.0
        %509 = vmatpush1.msra.mxu0 0.0
        %510 = vmatprep.subr.mxu0 0.0
        %511 = vmatpush1.msra.mxu0 0.0
        %512 = vmatprep.subr.mxu0 0.0
        %513 = vmatpush1.msra.mxu0 0.0
        %514 = vmatprep.mubr.f32.mxu0 0.0
        %515 = vmatmul.mubr.f32.gmra.mrb[0].mxu0 %v425
        %v516 = vpop.f32.mrb[0].mxu0
        %v517 = vadd.f32 0.0, %v516
        %v518 = vpop.f32.mrb[0].mxu0
        %519 = vmatprep.mubr.f32.mxu0 0.0
        %520 = vmatmul.mubr.f32.gmra.mrb[0].mxu0 %v426
        %v521 = vpop.f32.mrb[0].mxu0
        %v522 = vadd.f32 0.0, %v521
        %v523 = vpop.f32.mrb[0].mxu0
        %524 = vmatprep.mubr.f32.mxu0 0.0
        %525 = vmatmul.mubr.f32.gmra.mrb[0].mxu0 %v427
        %v526 = vpop.f32.mrb[0].mxu0
        %v527 = vadd.f32 0.0, %v526
        %v528 = vpop.f32.mrb[0].mxu0
        %529 = vmatprep.mubr.f32.mxu0 0.0
        %530 = vmatmul.mubr.f32.gmra.mrb[0].mxu0 %v428
        %v531 = vpop.f32.mrb[0].mxu0
        %v532 = vadd.f32 0.0, %v531
        %v533 = vpop.f32.mrb[0].mxu0
        %534 = vmatprep.mubr.f32.mxu0 0.0
        %535 = vmatmul.mubr.f32.gmra.mrb[0].mxu0 %v429
        %v536 = vpop.f32.mrb[0].mxu0
        %v537 = vadd.f32 0.0, %v536
        %v538 = vpop.f32.mrb[0].mxu0
        %539 = vmatprep.mubr.f32.mxu0 0.0
        %540 = vmatmul.mubr.f32.gmra.mrb[0].mxu0 %v430
        %v541 = vpop.f32.mrb[0].mxu0
        %v542 = vadd.f32 0.0, %v541
        %v543 = vpop.f32.mrb[0].mxu0
        %544 = vmatprep.mubr.f32.mxu0 0.0
        %545 = vmatmul.mubr.f32.gmra.mrb[0].mxu0 %v431
        %v546 = vpop.f32.mrb[0].mxu0
        %v547 = vadd.f32 0.0, %v546
        %v548 = vpop.f32.mrb[0].mxu0
        %549 = vmatprep.mubr.f32.mxu0 0.0
        %550 = vmatmul.mubr.f32.gmra.mrb[0].mxu0 %v432
        %v551 = vpop.f32.mrb[0].mxu0
        %v552 = vadd.f32 0.0, %v551
        %v553 = vpop.f32.mrb[0].mxu0
        %554 = vdwg.mxu0
        %555 = vmatprep.subr.mxu0 0.0
        %556 = vmatpush1.msra.mxu0 %v409
        %557 = vmatprep.subr.mxu0 0.0
        %558 = vmatpush1.msra.mxu0 %v410
        %559 = vmatprep.subr.mxu0 0.0
        %560 = vmatpush1.msra.mxu0 %v411
        %561 = vmatprep.subr.mxu0 0.0
        %562 = vmatpush1.msra.mxu0 %v412
        %563 = vmatprep.subr.mxu0 0.0
        %564 = vmatpush1.msra.mxu0 %v413
        %565 = vmatprep.subr.mxu0 0.0
        %566 = vmatpush1.msra.mxu0 %v414
        %567 = vmatprep.subr.mxu0 0.0
        %568 = vmatpush1.msra.mxu0 %v415
        %569 = vmatprep.subr.mxu0 0.0
        %570 = vmatpush1.msra.mxu0 %v416
        %571 = vmatprep.subr.mxu0 0.0
        %572 = vmatpush1.msra.mxu0 %v417
        %573 = vmatprep.subr.mxu0 0.0
        %574 = vmatpush1.msra.mxu0 %v418
        %575 = vmatprep.subr.mxu0 0.0
        %576 = vmatpush1.msra.mxu0 %v419
        %577 = vmatprep.subr.mxu0 0.0
        %578 = vmatpush1.msra.mxu0 %v420
        %579 = vmatprep.subr.mxu0 0.0
        %580 = vmatpush1.msra.mxu0 %v421
        %581 = vmatprep.subr.mxu0 0.0
        %582 = vmatpush1.msra.mxu0 %v422
        %583 = vmatprep.subr.mxu0 0.0
        %584 = vmatpush1.msra.mxu0 %v423
        %585 = vmatprep.subr.mxu0 0.0
        %586 = vmatpush1.msra.mxu0 %v424
        %587 = vmatprep.subr.mxu0 0.0
        %588 = vmatpush1.msra.mxu0 0.0
        %589 = vmatprep.subr.mxu0 0.0
        %590 = vmatpush1.msra.mxu0 0.0
        %591 = vmatprep.subr.mxu0 0.0
        %592 = vmatpush1.msra.mxu0 0.0
        %593 = vmatprep.subr.mxu0 0.0
        %594 = vmatpush1.msra.mxu0 0.0
        %595 = vmatprep.subr.mxu0 0.0
        %596 = vmatpush1.msra.mxu0 0.0
        %597 = vmatprep.subr.mxu0 0.0
        %598 = vmatpush1.msra.mxu0 0.0
        %599 = vmatprep.subr.mxu0 0.0
        %600 = vmatpush1.msra.mxu0 0.0
        %601 = vmatprep.subr.mxu0 0.0
        %602 = vmatpush1.msra.mxu0 0.0
        %603 = vmatprep.subr.mxu0 0.0
        %604 = vmatpush1.msra.mxu0 0.0
        %605 = vmatprep.subr.mxu0 0.0
        %606 = vmatpush1.msra.mxu0 0.0
        %607 = vmatprep.subr.mxu0 0.0
        %608 = vmatpush1.msra.mxu0 0.0
        %609 = vmatprep.subr.mxu0 0.0
        %610 = vmatpush1.msra.mxu0 0.0
        %611 = vmatprep.subr.mxu0 0.0
        %612 = vmatpush1.msra.mxu0 0.0
        %613 = vmatprep.subr.mxu0 0.0
        %614 = vmatpush1.msra.mxu0 0.0
        %615 = vmatprep.subr.mxu0 0.0
        %616 = vmatpush1.msra.mxu0 0.0
        %617 = vmatprep.subr.mxu0 0.0
        %618 = vmatpush1.msra.mxu0 0.0
        %619 = vmatprep.mubr.f32.mxu0 0.0
        %620 = vmatmul.mubr.f32.gmra.mrb[0].mxu0 %v401
        %v621 = vpop.f32.mrb[0].mxu0
        %v622 = vadd.f32 %v517, %v621
        %v623 = vpop.f32.mrb[0].mxu0
        %624 = vmatprep.mubr.f32.mxu0 0.0
        %625 = vmatmul.mubr.f32.gmra.mrb[0].mxu0 %v402
        %v626 = vpop.f32.mrb[0].mxu0
        %v627 = vadd.f32 %v522, %v626
        %v628 = vpop.f32.mrb[0].mxu0
        %629 = vmatprep.mubr.f32.mxu0 0.0
        %630 = vmatmul.mubr.f32.gmra.mrb[0].mxu0 %v403
        %v631 = vpop.f32.mrb[0].mxu0
        %v632 = vadd.f32 %v527, %v631
        %v633 = vpop.f32.mrb[0].mxu0
        %634 = vmatprep.mubr.f32.mxu0 0.0
        %635 = vmatmul.mubr.f32.gmra.mrb[0].mxu0 %v404
        %v636 = vpop.f32.mrb[0].mxu0
        %v637 = vadd.f32 %v532, %v636
        %v638 = vpop.f32.mrb[0].mxu0
        %639 = vmatprep.mubr.f32.mxu0 0.0
        %640 = vmatmul.mubr.f32.gmra.mrb[0].mxu0 %v405
        %v641 = vpop.f32.mrb[0].mxu0
        %v642 = vadd.f32 %v537, %v641
        %v643 = vpop.f32.mrb[0].mxu0
        %644 = vmatprep.mubr.f32.mxu0 0.0
        %645 = vmatmul.mubr.f32.gmra.mrb[0].mxu0 %v406
        %v646 = vpop.f32.mrb[0].mxu0
        %v647 = vadd.f32 %v542, %v646
        %v648 = vpop.f32.mrb[0].mxu0
        %649 = vmatprep.mubr.f32.mxu0 0.0
        %650 = vmatmul.mubr.f32.gmra.mrb[0].mxu0 %v407
        %v651 = vpop.f32.mrb[0].mxu0
        %v652 = vadd.f32 %v547, %v651
        %v653 = vpop.f32.mrb[0].mxu0
        %654 = vmatprep.mubr.f32.mxu0 0.0
        %655 = vmatmul.mubr.f32.gmra.mrb[0].mxu0 %v408
        %v656 = vpop.f32.mrb[0].mxu0
        %v657 = vadd.f32 %v552, %v656
        %v658 = vpop.f32.mrb[0].mxu0
        %659 = vdwg.mxu0
        %v660 = vld [vmem:[#allocation2 + $0x2] sm:$0xff]
        %v661 = vld [vmem:[#allocation2 + $0x12] sm:$0xff]
        %v662 = vld [vmem:[#allocation2 + $0x22] sm:$0xff]
        %v663 = vld [vmem:[#allocation2 + $0x32] sm:$0xff]
        %v664 = vld [vmem:[#allocation2 + $0x42] sm:$0xff]
        %v665 = vld [vmem:[#allocation2 + $0x52] sm:$0xff]
        %v666 = vld [vmem:[#allocation2 + $0x62] sm:$0xff]
        %v667 = vld [vmem:[#allocation2 + $0x72] sm:$0xff]
        %s668 = scalar_lea.vmem [#allocation9], 256
        %v669 = vld [vmem:[%s668] sm:$0xff]
        %v670 = vld [vmem:[%s668 + $0x8] sm:$0xff]
        %v671 = vld [vmem:[%s668 + $0x10] sm:$0xff]
        %v672 = vld [vmem:[%s668 + $0x18] sm:$0xff]
        %v673 = vld [vmem:[%s668 + $0x20] sm:$0xff]
        %v674 = vld [vmem:[%s668 + $0x28] sm:$0xff]
        %v675 = vld [vmem:[%s668 + $0x30] sm:$0xff]
        %v676 = vld [vmem:[%s668 + $0x38] sm:$0xff]
        %v677 = vld [vmem:[%s668 + $0x40] sm:$0xff]
        %v678 = vld [vmem:[%s668 + $0x48] sm:$0xff]
        %v679 = vld [vmem:[%s668 + $0x50] sm:$0xff]
        %v680 = vld [vmem:[%s668 + $0x58] sm:$0xff]
        %v681 = vld [vmem:[%s668 + $0x60] sm:$0xff]
        %v682 = vld [vmem:[%s668 + $0x68] sm:$0xff]
        %v683 = vld [vmem:[%s668 + $0x70] sm:$0xff]
        %v684 = vld [vmem:[%s668 + $0x78] sm:$0xff]
        %685 = vmatprep.subr.mxu0 0.0
        %686 = vmatpush1.msra.mxu0 %v669
        %687 = vmatprep.subr.mxu0 0.0
        %688 = vmatpush1.msra.mxu0 %v670
        %689 = vmatprep.subr.mxu0 0.0
        %690 = vmatpush1.msra.mxu0 %v671
        %691 = vmatprep.subr.mxu0 0.0
        %692 = vmatpush1.msra.mxu0 %v672
        %693 = vmatprep.subr.mxu0 0.0
        %694 = vmatpush1.msra.mxu0 %v673
        %695 = vmatprep.subr.mxu0 0.0
        %696 = vmatpush1.msra.mxu0 %v674
        %697 = vmatprep.subr.mxu0 0.0
        %698 = vmatpush1.msra.mxu0 %v675
        %699 = vmatprep.subr.mxu0 0.0
        %700 = vmatpush1.msra.mxu0 %v676
        %701 = vmatprep.subr.mxu0 0.0
        %702 = vmatpush1.msra.mxu0 %v677
        %703 = vmatprep.subr.mxu0 0.0
        %704 = vmatpush1.msra.mxu0 %v678
        %705 = vmatprep.subr.mxu0 0.0
        %706 = vmatpush1.msra.mxu0 %v679
        %707 = vmatprep.subr.mxu0 0.0
        %708 = vmatpush1.msra.mxu0 %v680
        %709 = vmatprep.subr.mxu0 0.0
        %710 = vmatpush1.msra.mxu0 %v681
        %711 = vmatprep.subr.mxu0 0.0
        %712 = vmatpush1.msra.mxu0 %v682
        %713 = vmatprep.subr.mxu0 0.0
        %714 = vmatpush1.msra.mxu0 %v683
        %715 = vmatprep.subr.mxu0 0.0
        %716 = vmatpush1.msra.mxu0 %v684
        %717 = vmatprep.subr.mxu0 0.0
        %718 = vmatpush1.msra.mxu0 0.0
        %719 = vmatprep.subr.mxu0 0.0
        %720 = vmatpush1.msra.mxu0 0.0
        %721 = vmatprep.subr.mxu0 0.0
        %722 = vmatpush1.msra.mxu0 0.0
        %723 = vmatprep.subr.mxu0 0.0
        %724 = vmatpush1.msra.mxu0 0.0
        %725 = vmatprep.subr.mxu0 0.0
        %726 = vmatpush1.msra.mxu0 0.0
        %727 = vmatprep.subr.mxu0 0.0
        %728 = vmatpush1.msra.mxu0 0.0
        %729 = vmatprep.subr.mxu0 0.0
        %730 = vmatpush1.msra.mxu0 0.0
        %731 = vmatprep.subr.mxu0 0.0
        %732 = vmatpush1.msra.mxu0 0.0
        %733 = vmatprep.subr.mxu0 0.0
        %734 = vmatpush1.msra.mxu0 0.0
        %735 = vmatprep.subr.mxu0 0.0
        %736 = vmatpush1.msra.mxu0 0.0
        %737 = vmatprep.subr.mxu0 0.0
        %738 = vmatpush1.msra.mxu0 0.0
        %739 = vmatprep.subr.mxu0 0.0
        %740 = vmatpush1.msra.mxu0 0.0
        %741 = vmatprep.subr.mxu0 0.0
        %742 = vmatpush1.msra.mxu0 0.0
        %743 = vmatprep.subr.mxu0 0.0
        %744 = vmatpush1.msra.mxu0 0.0
        %745 = vmatprep.subr.mxu0 0.0
        %746 = vmatpush1.msra.mxu0 0.0
        %747 = vmatprep.subr.mxu0 0.0
        %748 = vmatpush1.msra.mxu0 0.0
        %749 = vmatprep.mubr.f32.mxu0 0.0
        %750 = vmatmul.mubr.f32.gmra.mrb[0].mxu0 %v660
        %v751 = vpop.f32.mrb[0].mxu0
        %v752 = vadd.f32 0.0, %v751
        %v753 = vpop.f32.mrb[0].mxu0
        %754 = vmatprep.mubr.f32.mxu0 0.0
        %755 = vmatmul.mubr.f32.gmra.mrb[0].mxu0 %v661
        %v756 = vpop.f32.mrb[0].mxu0
        %v757 = vadd.f32 0.0, %v756
        %v758 = vpop.f32.mrb[0].mxu0
        %759 = vmatprep.mubr.f32.mxu0 0.0
        %760 = vmatmul.mubr.f32.gmra.mrb[0].mxu0 %v662
        %v761 = vpop.f32.mrb[0].mxu0
        %v762 = vadd.f32 0.0, %v761
        %v763 = vpop.f32.mrb[0].mxu0
        %764 = vmatprep.mubr.f32.mxu0 0.0
        %765 = vmatmul.mubr.f32.gmra.mrb[0].mxu0 %v663
        %v766 = vpop.f32.mrb[0].mxu0
        %v767 = vadd.f32 0.0, %v766
        %v768 = vpop.f32.mrb[0].mxu0
        %769 = vmatprep.mubr.f32.mxu0 0.0
        %770 = vmatmul.mubr.f32.gmra.mrb[0].mxu0 %v664
        %v771 = vpop.f32.mrb[0].mxu0
        %v772 = vadd.f32 0.0, %v771
        %v773 = vpop.f32.mrb[0].mxu0
        %774 = vmatprep.mubr.f32.mxu0 0.0
        %775 = vmatmul.mubr.f32.gmra.mrb[0].mxu0 %v665
        %v776 = vpop.f32.mrb[0].mxu0
        %v777 = vadd.f32 0.0, %v776
        %v778 = vpop.f32.mrb[0].mxu0
        %779 = vmatprep.mubr.f32.mxu0 0.0
        %780 = vmatmul.mubr.f32.gmra.mrb[0].mxu0 %v666
        %v781 = vpop.f32.mrb[0].mxu0
        %v782 = vadd.f32 0.0, %v781
        %v783 = vpop.f32.mrb[0].mxu0
        %784 = vmatprep.mubr.f32.mxu0 0.0
        %785 = vmatmul.mubr.f32.gmra.mrb[0].mxu0 %v667
        %v786 = vpop.f32.mrb[0].mxu0
        %v787 = vadd.f32 0.0, %v786
        %v788 = vpop.f32.mrb[0].mxu0
        %789 = vdwg.mxu0
        %v790 = vadd.f32 %v622, %v752
        %v791 = vadd.f32 %v627, %v757
        %v792 = vadd.f32 %v632, %v762
        %v793 = vadd.f32 %v637, %v767
        %v794 = vadd.f32 %v642, %v772
        %v795 = vadd.f32 %v647, %v777
        %v796 = vadd.f32 %v652, %v782
        %v797 = vadd.f32 %v657, %v787
        %v798 = vld [vmem:[%s392] sm:$0xff]
        %v799 = vld [vmem:[%s392 + $0x10] sm:$0xff]
        %v800 = vld [vmem:[%s392 + $0x20] sm:$0xff]
        %v801 = vld [vmem:[%s392 + $0x30] sm:$0xff]
        %v802 = vld [vmem:[%s392 + $0x40] sm:$0xff]
        %v803 = vld [vmem:[%s392 + $0x50] sm:$0xff]
        %v804 = vld [vmem:[%s392 + $0x60] sm:$0xff]
        %v805 = vld [vmem:[%s392 + $0x70] sm:$0xff]
        %s806 = scalar_lea.vmem [#allocation9], 384
        %v807 = vld [vmem:[%s806] sm:$0xff]
        %v808 = vld [vmem:[%s806 + $0x8] sm:$0xff]
        %v809 = vld [vmem:[%s806 + $0x10] sm:$0xff]
        %v810 = vld [vmem:[%s806 + $0x18] sm:$0xff]
        %v811 = vld [vmem:[%s806 + $0x20] sm:$0xff]
        %v812 = vld [vmem:[%s806 + $0x28] sm:$0xff]
        %v813 = vld [vmem:[%s806 + $0x30] sm:$0xff]
        %v814 = vld [vmem:[%s806 + $0x38] sm:$0xff]
        %v815 = vld [vmem:[%s806 + $0x40] sm:$0xff]
        %v816 = vld [vmem:[%s806 + $0x48] sm:$0xff]
        %v817 = vld [vmem:[%s806 + $0x50] sm:$0xff]
        %v818 = vld [vmem:[%s806 + $0x58] sm:$0xff]
        %v819 = vld [vmem:[%s806 + $0x60] sm:$0xff]
        %v820 = vld [vmem:[%s806 + $0x68] sm:$0xff]
        %v821 = vld [vmem:[%s806 + $0x70] sm:$0xff]
        %v822 = vld [vmem:[%s806 + $0x78] sm:$0xff]
        %823 = vmatprep.subr.mxu0 0.0
        %824 = vmatpush1.msra.mxu0 %v807
        %825 = vmatprep.subr.mxu0 0.0
        %826 = vmatpush1.msra.mxu0 %v808
        %827 = vmatprep.subr.mxu0 0.0
        %828 = vmatpush1.msra.mxu0 %v809
        %829 = vmatprep.subr.mxu0 0.0
        %830 = vmatpush1.msra.mxu0 %v810
        %831 = vmatprep.subr.mxu0 0.0
        %832 = vmatpush1.msra.mxu0 %v811
        %833 = vmatprep.subr.mxu0 0.0
        %834 = vmatpush1.msra.mxu0 %v812
        %835 = vmatprep.subr.mxu0 0.0
        %836 = vmatpush1.msra.mxu0 %v813
        %837 = vmatprep.subr.mxu0 0.0
        %838 = vmatpush1.msra.mxu0 %v814
        %839 = vmatprep.subr.mxu0 0.0
        %840 = vmatpush1.msra.mxu0 %v815
        %841 = vmatprep.subr.mxu0 0.0
        %842 = vmatpush1.msra.mxu0 %v816
        %843 = vmatprep.subr.mxu0 0.0
        %844 = vmatpush1.msra.mxu0 %v817
        %845 = vmatprep.subr.mxu0 0.0
        %846 = vmatpush1.msra.mxu0 %v818
        %847 = vmatprep.subr.mxu0 0.0
        %848 = vmatpush1.msra.mxu0 %v819
        %849 = vmatprep.subr.mxu0 0.0
        %850 = vmatpush1.msra.mxu0 %v820
        %851 = vmatprep.subr.mxu0 0.0
        %852 = vmatpush1.msra.mxu0 %v821
        %853 = vmatprep.subr.mxu0 0.0
        %854 = vmatpush1.msra.mxu0 %v822
        %855 = vmatprep.subr.mxu0 0.0
        %856 = vmatpush1.msra.mxu0 0.0
        %857 = vmatprep.subr.mxu0 0.0
        %858 = vmatpush1.msra.mxu0 0.0
        %859 = vmatprep.subr.mxu0 0.0
        %860 = vmatpush1.msra.mxu0 0.0
        %861 = vmatprep.subr.mxu0 0.0
        %862 = vmatpush1.msra.mxu0 0.0
        %863 = vmatprep.subr.mxu0 0.0
        %864 = vmatpush1.msra.mxu0 0.0
        %865 = vmatprep.subr.mxu0 0.0
        %866 = vmatpush1.msra.mxu0 0.0
        %867 = vmatprep.subr.mxu0 0.0
        %868 = vmatpush1.msra.mxu0 0.0
        %869 = vmatprep.subr.mxu0 0.0
        %870 = vmatpush1.msra.mxu0 0.0
        %871 = vmatprep.subr.mxu0 0.0
        %872 = vmatpush1.msra.mxu0 0.0
        %873 = vmatprep.subr.mxu0 0.0
        %874 = vmatpush1.msra.mxu0 0.0
        %875 = vmatprep.subr.mxu0 0.0
        %876 = vmatpush1.msra.mxu0 0.0
        %877 = vmatprep.subr.mxu0 0.0
        %878 = vmatpush1.msra.mxu0 0.0
        %879 = vmatprep.subr.mxu0 0.0
        %880 = vmatpush1.msra.mxu0 0.0
        %881 = vmatprep.subr.mxu0 0.0
        %882 = vmatpush1.msra.mxu0 0.0
        %883 = vmatprep.subr.mxu0 0.0
        %884 = vmatpush1.msra.mxu0 0.0
        %885 = vmatprep.subr.mxu0 0.0
        %886 = vmatpush1.msra.mxu0 0.0
        %887 = vmatprep.mubr.f32.mxu0 0.0
        %888 = vmatmul.mubr.f32.gmra.mrb[0].mxu0 %v798
        %v889 = vpop.f32.mrb[0].mxu0
        %v890 = vadd.f32 0.0, %v889
        %v891 = vpop.f32.mrb[0].mxu0
        %892 = vmatprep.mubr.f32.mxu0 0.0
        %893 = vmatmul.mubr.f32.gmra.mrb[0].mxu0 %v799
        %v894 = vpop.f32.mrb[0].mxu0
        %v895 = vadd.f32 0.0, %v894
        %v896 = vpop.f32.mrb[0].mxu0
        %897 = vmatprep.mubr.f32.mxu0 0.0
        %898 = vmatmul.mubr.f32.gmra.mrb[0].mxu0 %v800
        %v899 = vpop.f32.mrb[0].mxu0
        %v900 = vadd.f32 0.0, %v899
        %v901 = vpop.f32.mrb[0].mxu0
        %902 = vmatprep.mubr.f32.mxu0 0.0
        %903 = vmatmul.mubr.f32.gmra.mrb[0].mxu0 %v801
        %v904 = vpop.f32.mrb[0].mxu0
        %v905 = vadd.f32 0.0, %v904
        %v906 = vpop.f32.mrb[0].mxu0
        %907 = vmatprep.mubr.f32.mxu0 0.0
        %908 = vmatmul.mubr.f32.gmra.mrb[0].mxu0 %v802
        %v909 = vpop.f32.mrb[0].mxu0
        %v910 = vadd.f32 0.0, %v909
        %v911 = vpop.f32.mrb[0].mxu0
        %912 = vmatprep.mubr.f32.mxu0 0.0
        %913 = vmatmul.mubr.f32.gmra.mrb[0].mxu0 %v803
        %v914 = vpop.f32.mrb[0].mxu0
        %v915 = vadd.f32 0.0, %v914
        %v916 = vpop.f32.mrb[0].mxu0
        %917 = vmatprep.mubr.f32.mxu0 0.0
        %918 = vmatmul.mubr.f32.gmra.mrb[0].mxu0 %v804
        %v919 = vpop.f32.mrb[0].mxu0
        %v920 = vadd.f32 0.0, %v919
        %v921 = vpop.f32.mrb[0].mxu0
        %922 = vmatprep.mubr.f32.mxu0 0.0
        %923 = vmatmul.mubr.f32.gmra.mrb[0].mxu0 %v805
        %v924 = vpop.f32.mrb[0].mxu0
        %v925 = vadd.f32 0.0, %v924
        %v926 = vpop.f32.mrb[0].mxu0
        %927 = vdwg.mxu0
        %v928 = vadd.f32 %v790, %v890
        %v929 = vadd.f32 %v791, %v895
        %v930 = vadd.f32 %v792, %v900
        %v931 = vadd.f32 %v793, %v905
        %v932 = vadd.f32 %v794, %v910
        %v933 = vadd.f32 %v795, %v915
        %v934 = vadd.f32 %v796, %v920
        %v935 = vadd.f32 %v797, %v925
        %v936 = vld [vmem:[%s392 + $0x1] sm:$0xff]
        %v937 = vld [vmem:[%s392 + $0x11] sm:$0xff]
        %v938 = vld [vmem:[%s392 + $0x21] sm:$0xff]
        %v939 = vld [vmem:[%s392 + $0x31] sm:$0xff]
        %v940 = vld [vmem:[%s392 + $0x41] sm:$0xff]
        %v941 = vld [vmem:[%s392 + $0x51] sm:$0xff]
        %v942 = vld [vmem:[%s392 + $0x61] sm:$0xff]
        %v943 = vld [vmem:[%s392 + $0x71] sm:$0xff]
        %s944 = scalar_lea.vmem [#allocation9], 512
        %v945 = vld [vmem:[%s944] sm:$0xff]
        %v946 = vld [vmem:[%s944 + $0x8] sm:$0xff]
        %v947 = vld [vmem:[%s944 + $0x10] sm:$0xff]
        %v948 = vld [vmem:[%s944 + $0x18] sm:$0xff]
        %v949 = vld [vmem:[%s944 + $0x20] sm:$0xff]
        %v950 = vld [vmem:[%s944 + $0x28] sm:$0xff]
        %v951 = vld [vmem:[%s944 + $0x30] sm:$0xff]
        %v952 = vld [vmem:[%s944 + $0x38] sm:$0xff]
        %v953 = vld [vmem:[%s944 + $0x40] sm:$0xff]
        %v954 = vld [vmem:[%s944 + $0x48] sm:$0xff]
        %v955 = vld [vmem:[%s944 + $0x50] sm:$0xff]
        %v956 = vld [vmem:[%s944 + $0x58] sm:$0xff]
        %v957 = vld [vmem:[%s944 + $0x60] sm:$0xff]
        %v958 = vld [vmem:[%s944 + $0x68] sm:$0xff]
        %v959 = vld [vmem:[%s944 + $0x70] sm:$0xff]
        %v960 = vld [vmem:[%s944 + $0x78] sm:$0xff]
        %961 = vmatprep.subr.mxu0 0.0
        %962 = vmatpush1.msra.mxu0 %v945
        %963 = vmatprep.subr.mxu0 0.0
        %964 = vmatpush1.msra.mxu0 %v946
        %965 = vmatprep.subr.mxu0 0.0
        %966 = vmatpush1.msra.mxu0 %v947
        %967 = vmatprep.subr.mxu0 0.0
        %968 = vmatpush1.msra.mxu0 %v948
        %969 = vmatprep.subr.mxu0 0.0
        %970 = vmatpush1.msra.mxu0 %v949
        %971 = vmatprep.subr.mxu0 0.0
        %972 = vmatpush1.msra.mxu0 %v950
        %973 = vmatprep.subr.mxu0 0.0
        %974 = vmatpush1.msra.mxu0 %v951
        %975 = vmatprep.subr.mxu0 0.0
        %976 = vmatpush1.msra.mxu0 %v952
        %977 = vmatprep.subr.mxu0 0.0
        %978 = vmatpush1.msra.mxu0 %v953
        %979 = vmatprep.subr.mxu0 0.0
        %980 = vmatpush1.msra.mxu0 %v954
        %981 = vmatprep.subr.mxu0 0.0
        %982 = vmatpush1.msra.mxu0 %v955
        %983 = vmatprep.subr.mxu0 0.0
        %984 = vmatpush1.msra.mxu0 %v956
        %985 = vmatprep.subr.mxu0 0.0
        %986 = vmatpush1.msra.mxu0 %v957
        %987 = vmatprep.subr.mxu0 0.0
        %988 = vmatpush1.msra.mxu0 %v958
        %989 = vmatprep.subr.mxu0 0.0
        %990 = vmatpush1.msra.mxu0 %v959
        %991 = vmatprep.subr.mxu0 0.0
        %992 = vmatpush1.msra.mxu0 %v960
        %993 = vmatprep.subr.mxu0 0.0
        %994 = vmatpush1.msra.mxu0 0.0
        %995 = vmatprep.subr.mxu0 0.0
        %996 = vmatpush1.msra.mxu0 0.0
        %997 = vmatprep.subr.mxu0 0.0
        %998 = vmatpush1.msra.mxu0 0.0
        %999 = vmatprep.subr.mxu0 0.0
        %1000 = vmatpush1.msra.mxu0 0.0
        %1001 = vmatprep.subr.mxu0 0.0
        %1002 = vmatpush1.msra.mxu0 0.0
        %1003 = vmatprep.subr.mxu0 0.0
        %1004 = vmatpush1.msra.mxu0 0.0
        %1005 = vmatprep.subr.mxu0 0.0
        %1006 = vmatpush1.msra.mxu0 0.0
        %1007 = vmatprep.subr.mxu0 0.0
        %1008 = vmatpush1.msra.mxu0 0.0
        %1009 = vmatprep.subr.mxu0 0.0
        %1010 = vmatpush1.msra.mxu0 0.0
        %1011 = vmatprep.subr.mxu0 0.0
        %1012 = vmatpush1.msra.mxu0 0.0
        %1013 = vmatprep.subr.mxu0 0.0
        %1014 = vmatpush1.msra.mxu0 0.0
        %1015 = vmatprep.subr.mxu0 0.0
        %1016 = vmatpush1.msra.mxu0 0.0
        %1017 = vmatprep.subr.mxu0 0.0
        %1018 = vmatpush1.msra.mxu0 0.0
        %1019 = vmatprep.subr.mxu0 0.0
        %1020 = vmatpush1.msra.mxu0 0.0
        %1021 = vmatprep.subr.mxu0 0.0
        %1022 = vmatpush1.msra.mxu0 0.0
        %1023 = vmatprep.subr.mxu0 0.0
        %1024 = vmatpush1.msra.mxu0 0.0
        %1025 = vmatprep.mubr.f32.mxu0 0.0
        %1026 = vmatmul.mubr.f32.gmra.mrb[0].mxu0 %v936
        %v1027 = vpop.f32.mrb[0].mxu0
        %v1028 = vadd.f32 0.0, %v1027
        %v1029 = vpop.f32.mrb[0].mxu0
        %1030 = vmatprep.mubr.f32.mxu0 0.0
        %1031 = vmatmul.mubr.f32.gmra.mrb[0].mxu0 %v937
        %v1032 = vpop.f32.mrb[0].mxu0
        %v1033 = vadd.f32 0.0, %v1032
        %v1034 = vpop.f32.mrb[0].mxu0
        %1035 = vmatprep.mubr.f32.mxu0 0.0
        %1036 = vmatmul.mubr.f32.gmra.mrb[0].mxu0 %v938
        %v1037 = vpop.f32.mrb[0].mxu0
        %v1038 = vadd.f32 0.0, %v1037
        %v1039 = vpop.f32.mrb[0].mxu0
        %1040 = vmatprep.mubr.f32.mxu0 0.0
        %1041 = vmatmul.mubr.f32.gmra.mrb[0].mxu0 %v939
        %v1042 = vpop.f32.mrb[0].mxu0
        %v1043 = vadd.f32 0.0, %v1042
        %v1044 = vpop.f32.mrb[0].mxu0
        %1045 = vmatprep.mubr.f32.mxu0 0.0
        %1046 = vmatmul.mubr.f32.gmra.mrb[0].mxu0 %v940
        %v1047 = vpop.f32.mrb[0].mxu0
        %v1048 = vadd.f32 0.0, %v1047
        %v1049 = vpop.f32.mrb[0].mxu0
        %1050 = vmatprep.mubr.f32.mxu0 0.0
        %1051 = vmatmul.mubr.f32.gmra.mrb[0].mxu0 %v941
        %v1052 = vpop.f32.mrb[0].mxu0
        %v1053 = vadd.f32 0.0, %v1052
        %v1054 = vpop.f32.mrb[0].mxu0
        %1055 = vmatprep.mubr.f32.mxu0 0.0
        %1056 = vmatmul.mubr.f32.gmra.mrb[0].mxu0 %v942
        %v1057 = vpop.f32.mrb[0].mxu0
        %v1058 = vadd.f32 0.0, %v1057
        %v1059 = vpop.f32.mrb[0].mxu0
        %1060 = vmatprep.mubr.f32.mxu0 0.0
        %1061 = vmatmul.mubr.f32.gmra.mrb[0].mxu0 %v943
        %v1062 = vpop.f32.mrb[0].mxu0
        %v1063 = vadd.f32 0.0, %v1062
        %v1064 = vpop.f32.mrb[0].mxu0
        %1065 = vdwg.mxu0
        %v1066 = vadd.f32 %v928, %v1028
        %v1067 = vadd.f32 %v929, %v1033
        %v1068 = vadd.f32 %v930, %v1038
        %v1069 = vadd.f32 %v931, %v1043
        %v1070 = vadd.f32 %v932, %v1048
        %v1071 = vadd.f32 %v933, %v1053
        %v1072 = vadd.f32 %v934, %v1058
        %v1073 = vadd.f32 %v935, %v1063
        %v1074 = vld [vmem:[%s392 + $0x2] sm:$0xff]
        %v1075 = vld [vmem:[%s392 + $0x12] sm:$0xff]
        %v1076 = vld [vmem:[%s392 + $0x22] sm:$0xff]
        %v1077 = vld [vmem:[%s392 + $0x32] sm:$0xff]
        %v1078 = vld [vmem:[%s392 + $0x42] sm:$0xff]
        %v1079 = vld [vmem:[%s392 + $0x52] sm:$0xff]
        %v1080 = vld [vmem:[%s392 + $0x62] sm:$0xff]
        %v1081 = vld [vmem:[%s392 + $0x72] sm:$0xff]
        %s1082 = scalar_lea.vmem [#allocation9], 640
        %v1083 = vld [vmem:[%s1082] sm:$0xff]
        %v1084 = vld [vmem:[%s1082 + $0x8] sm:$0xff]
        %v1085 = vld [vmem:[%s1082 + $0x10] sm:$0xff]
        %v1086 = vld [vmem:[%s1082 + $0x18] sm:$0xff]
        %v1087 = vld [vmem:[%s1082 + $0x20] sm:$0xff]
        %v1088 = vld [vmem:[%s1082 + $0x28] sm:$0xff]
        %v1089 = vld [vmem:[%s1082 + $0x30] sm:$0xff]
        %v1090 = vld [vmem:[%s1082 + $0x38] sm:$0xff]
        %v1091 = vld [vmem:[%s1082 + $0x40] sm:$0xff]
        %v1092 = vld [vmem:[%s1082 + $0x48] sm:$0xff]
        %v1093 = vld [vmem:[%s1082 + $0x50] sm:$0xff]
        %v1094 = vld [vmem:[%s1082 + $0x58] sm:$0xff]
        %v1095 = vld [vmem:[%s1082 + $0x60] sm:$0xff]
        %v1096 = vld [vmem:[%s1082 + $0x68] sm:$0xff]
        %v1097 = vld [vmem:[%s1082 + $0x70] sm:$0xff]
        %v1098 = vld [vmem:[%s1082 + $0x78] sm:$0xff]
        %1099 = vmatprep.subr.mxu0 0.0
        %1100 = vmatpush1.msra.mxu0 %v1083
        %1101 = vmatprep.subr.mxu0 0.0
        %1102 = vmatpush1.msra.mxu0 %v1084
        %1103 = vmatprep.subr.mxu0 0.0
        %1104 = vmatpush1.msra.mxu0 %v1085
        %1105 = vmatprep.subr.mxu0 0.0
        %1106 = vmatpush1.msra.mxu0 %v1086
        %1107 = vmatprep.subr.mxu0 0.0
        %1108 = vmatpush1.msra.mxu0 %v1087
        %1109 = vmatprep.subr.mxu0 0.0
        %1110 = vmatpush1.msra.mxu0 %v1088
        %1111 = vmatprep.subr.mxu0 0.0
        %1112 = vmatpush1.msra.mxu0 %v1089
        %1113 = vmatprep.subr.mxu0 0.0
        %1114 = vmatpush1.msra.mxu0 %v1090
        %1115 = vmatprep.subr.mxu0 0.0
        %1116 = vmatpush1.msra.mxu0 %v1091
        %1117 = vmatprep.subr.mxu0 0.0
        %1118 = vmatpush1.msra.mxu0 %v1092
        %1119 = vmatprep.subr.mxu0 0.0
        %1120 = vmatpush1.msra.mxu0 %v1093
        %1121 = vmatprep.subr.mxu0 0.0
        %1122 = vmatpush1.msra.mxu0 %v1094
        %1123 = vmatprep.subr.mxu0 0.0
        %1124 = vmatpush1.msra.mxu0 %v1095
        %1125 = vmatprep.subr.mxu0 0.0
        %1126 = vmatpush1.msra.mxu0 %v1096
        %1127 = vmatprep.subr.mxu0 0.0
        %1128 = vmatpush1.msra.mxu0 %v1097
        %1129 = vmatprep.subr.mxu0 0.0
        %1130 = vmatpush1.msra.mxu0 %v1098
        %1131 = vmatprep.subr.mxu0 0.0
        %1132 = vmatpush1.msra.mxu0 0.0
        %1133 = vmatprep.subr.mxu0 0.0
        %1134 = vmatpush1.msra.mxu0 0.0
        %1135 = vmatprep.subr.mxu0 0.0
        %1136 = vmatpush1.msra.mxu0 0.0
        %1137 = vmatprep.subr.mxu0 0.0
        %1138 = vmatpush1.msra.mxu0 0.0
        %1139 = vmatprep.subr.mxu0 0.0
        %1140 = vmatpush1.msra.mxu0 0.0
        %1141 = vmatprep.subr.mxu0 0.0
        %1142 = vmatpush1.msra.mxu0 0.0
        %1143 = vmatprep.subr.mxu0 0.0
        %1144 = vmatpush1.msra.mxu0 0.0
        %1145 = vmatprep.subr.mxu0 0.0
        %1146 = vmatpush1.msra.mxu0 0.0
        %1147 = vmatprep.subr.mxu0 0.0
        %1148 = vmatpush1.msra.mxu0 0.0
        %1149 = vmatprep.subr.mxu0 0.0
        %1150 = vmatpush1.msra.mxu0 0.0
        %1151 = vmatprep.subr.mxu0 0.0
        %1152 = vmatpush1.msra.mxu0 0.0
        %1153 = vmatprep.subr.mxu0 0.0
        %1154 = vmatpush1.msra.mxu0 0.0
        %1155 = vmatprep.subr.mxu0 0.0
        %1156 = vmatpush1.msra.mxu0 0.0
        %1157 = vmatprep.subr.mxu0 0.0
        %1158 = vmatpush1.msra.mxu0 0.0
        %1159 = vmatprep.subr.mxu0 0.0
        %1160 = vmatpush1.msra.mxu0 0.0
        %1161 = vmatprep.subr.mxu0 0.0
        %1162 = vmatpush1.msra.mxu0 0.0
        %1163 = vmatprep.mubr.f32.mxu0 0.0
        %1164 = vmatmul.mubr.f32.gmra.mrb[0].mxu0 %v1074
        %v1165 = vpop.f32.mrb[0].mxu0
        %v1166 = vadd.f32 0.0, %v1165
        %v1167 = vpop.f32.mrb[0].mxu0
        %1168 = vmatprep.mubr.f32.mxu0 0.0
        %1169 = vmatmul.mubr.f32.gmra.mrb[0].mxu0 %v1075
        %v1170 = vpop.f32.mrb[0].mxu0
        %v1171 = vadd.f32 0.0, %v1170
        %v1172 = vpop.f32.mrb[0].mxu0
        %1173 = vmatprep.mubr.f32.mxu0 0.0
        %1174 = vmatmul.mubr.f32.gmra.mrb[0].mxu0 %v1076
        %v1175 = vpop.f32.mrb[0].mxu0
        %v1176 = vadd.f32 0.0, %v1175
        %v1177 = vpop.f32.mrb[0].mxu0
        %1178 = vmatprep.mubr.f32.mxu0 0.0
        %1179 = vmatmul.mubr.f32.gmra.mrb[0].mxu0 %v1077
        %v1180 = vpop.f32.mrb[0].mxu0
        %v1181 = vadd.f32 0.0, %v1180
        %v1182 = vpop.f32.mrb[0].mxu0
        %1183 = vmatprep.mubr.f32.mxu0 0.0
        %1184 = vmatmul.mubr.f32.gmra.mrb[0].mxu0 %v1078
        %v1185 = vpop.f32.mrb[0].mxu0
        %v1186 = vadd.f32 0.0, %v1185
        %v1187 = vpop.f32.mrb[0].mxu0
        %1188 = vmatprep.mubr.f32.mxu0 0.0
        %1189 = vmatmul.mubr.f32.gmra.mrb[0].mxu0 %v1079
        %v1190 = vpop.f32.mrb[0].mxu0
        %v1191 = vadd.f32 0.0, %v1190
        %v1192 = vpop.f32.mrb[0].mxu0
        %1193 = vmatprep.mubr.f32.mxu0 0.0
        %1194 = vmatmul.mubr.f32.gmra.mrb[0].mxu0 %v1080
        %v1195 = vpop.f32.mrb[0].mxu0
        %v1196 = vadd.f32 0.0, %v1195
        %v1197 = vpop.f32.mrb[0].mxu0
        %1198 = vmatprep.mubr.f32.mxu0 0.0
        %1199 = vmatmul.mubr.f32.gmra.mrb[0].mxu0 %v1081
        %v1200 = vpop.f32.mrb[0].mxu0
        %v1201 = vadd.f32 0.0, %v1200
        %v1202 = vpop.f32.mrb[0].mxu0
        %1203 = vdwg.mxu0
        %v1204 = vadd.f32 %v1066, %v1166
        %v1205 = vadd.f32 %v1067, %v1171
        %v1206 = vadd.f32 %v1068, %v1176
        %v1207 = vadd.f32 %v1069, %v1181
        %v1208 = vadd.f32 %v1070, %v1186
        %v1209 = vadd.f32 %v1071, %v1191
        %v1210 = vadd.f32 %v1072, %v1196
        %v1211 = vadd.f32 %v1073, %v1201
        %s1212 = scalar_lea.vmem [#allocation2], 32
        %v1213 = vld [vmem:[%s1212] sm:$0xff]
        %v1214 = vld [vmem:[%s1212 + $0x10] sm:$0xff]
        %v1215 = vld [vmem:[%s1212 + $0x20] sm:$0xff]
        %v1216 = vld [vmem:[%s1212 + $0x30] sm:$0xff]
        %v1217 = vld [vmem:[%s1212 + $0x40] sm:$0xff]
        %v1218 = vld [vmem:[%s1212 + $0x50] sm:$0xff]
        %v1219 = vld [vmem:[%s1212 + $0x60] sm:$0xff]
        %v1220 = vld [vmem:[%s1212 + $0x70] sm:$0xff]
        %s1221 = scalar_lea.vmem [#allocation9], 768
        %v1222 = vld [vmem:[%s1221] sm:$0xff]
        %v1223 = vld [vmem:[%s1221 + $0x8] sm:$0xff]
        %v1224 = vld [vmem:[%s1221 + $0x10] sm:$0xff]
        %v1225 = vld [vmem:[%s1221 + $0x18] sm:$0xff]
        %v1226 = vld [vmem:[%s1221 + $0x20] sm:$0xff]
        %v1227 = vld [vmem:[%s1221 + $0x28] sm:$0xff]
        %v1228 = vld [vmem:[%s1221 + $0x30] sm:$0xff]
        %v1229 = vld [vmem:[%s1221 + $0x38] sm:$0xff]
        %v1230 = vld [vmem:[%s1221 + $0x40] sm:$0xff]
        %v1231 = vld [vmem:[%s1221 + $0x48] sm:$0xff]
        %v1232 = vld [vmem:[%s1221 + $0x50] sm:$0xff]
        %v1233 = vld [vmem:[%s1221 + $0x58] sm:$0xff]
        %v1234 = vld [vmem:[%s1221 + $0x60] sm:$0xff]
        %v1235 = vld [vmem:[%s1221 + $0x68] sm:$0xff]
        %v1236 = vld [vmem:[%s1221 + $0x70] sm:$0xff]
        %v1237 = vld [vmem:[%s1221 + $0x78] sm:$0xff]
        %1238 = vmatprep.subr.mxu0 0.0
        %1239 = vmatpush1.msra.mxu0 %v1222
        %1240 = vmatprep.subr.mxu0 0.0
        %1241 = vmatpush1.msra.mxu0 %v1223
        %1242 = vmatprep.subr.mxu0 0.0
        %1243 = vmatpush1.msra.mxu0 %v1224
        %1244 = vmatprep.subr.mxu0 0.0
        %1245 = vmatpush1.msra.mxu0 %v1225
        %1246 = vmatprep.subr.mxu0 0.0
        %1247 = vmatpush1.msra.mxu0 %v1226
        %1248 = vmatprep.subr.mxu0 0.0
        %1249 = vmatpush1.msra.mxu0 %v1227
        %1250 = vmatprep.subr.mxu0 0.0
        %1251 = vmatpush1.msra.mxu0 %v1228
        %1252 = vmatprep.subr.mxu0 0.0
        %1253 = vmatpush1.msra.mxu0 %v1229
        %1254 = vmatprep.subr.mxu0 0.0
        %1255 = vmatpush1.msra.mxu0 %v1230
        %1256 = vmatprep.subr.mxu0 0.0
        %1257 = vmatpush1.msra.mxu0 %v1231
        %1258 = vmatprep.subr.mxu0 0.0
        %1259 = vmatpush1.msra.mxu0 %v1232
        %1260 = vmatprep.subr.mxu0 0.0
        %1261 = vmatpush1.msra.mxu0 %v1233
        %1262 = vmatprep.subr.mxu0 0.0
        %1263 = vmatpush1.msra.mxu0 %v1234
        %1264 = vmatprep.subr.mxu0 0.0
        %1265 = vmatpush1.msra.mxu0 %v1235
        %1266 = vmatprep.subr.mxu0 0.0
        %1267 = vmatpush1.msra.mxu0 %v1236
        %1268 = vmatprep.subr.mxu0 0.0
        %1269 = vmatpush1.msra.mxu0 %v1237
        %1270 = vmatprep.subr.mxu0 0.0
        %1271 = vmatpush1.msra.mxu0 0.0
        %1272 = vmatprep.subr.mxu0 0.0
        %1273 = vmatpush1.msra.mxu0 0.0
        %1274 = vmatprep.subr.mxu0 0.0
        %1275 = vmatpush1.msra.mxu0 0.0
        %1276 = vmatprep.subr.mxu0 0.0
        %1277 = vmatpush1.msra.mxu0 0.0
        %1278 = vmatprep.subr.mxu0 0.0
        %1279 = vmatpush1.msra.mxu0 0.0
        %1280 = vmatprep.subr.mxu0 0.0
        %1281 = vmatpush1.msra.mxu0 0.0
        %1282 = vmatprep.subr.mxu0 0.0
        %1283 = vmatpush1.msra.mxu0 0.0
        %1284 = vmatprep.subr.mxu0 0.0
        %1285 = vmatpush1.msra.mxu0 0.0
        %1286 = vmatprep.subr.mxu0 0.0
        %1287 = vmatpush1.msra.mxu0 0.0
        %1288 = vmatprep.subr.mxu0 0.0
        %1289 = vmatpush1.msra.mxu0 0.0
        %1290 = vmatprep.subr.mxu0 0.0
        %1291 = vmatpush1.msra.mxu0 0.0
        %1292 = vmatprep.subr.mxu0 0.0
        %1293 = vmatpush1.msra.mxu0 0.0
        %1294 = vmatprep.subr.mxu0 0.0
        %1295 = vmatpush1.msra.mxu0 0.0
        %1296 = vmatprep.subr.mxu0 0.0
        %1297 = vmatpush1.msra.mxu0 0.0
        %1298 = vmatprep.subr.mxu0 0.0
        %1299 = vmatpush1.msra.mxu0 0.0
        %1300 = vmatprep.subr.mxu0 0.0
        %1301 = vmatpush1.msra.mxu0 0.0
        %1302 = vmatprep.mubr.f32.mxu0 0.0
        %1303 = vmatmul.mubr.f32.gmra.mrb[0].mxu0 %v1213
        %v1304 = vpop.f32.mrb[0].mxu0
        %v1305 = vadd.f32 0.0, %v1304
        %v1306 = vpop.f32.mrb[0].mxu0
        %1307 = vmatprep.mubr.f32.mxu0 0.0
        %1308 = vmatmul.mubr.f32.gmra.mrb[0].mxu0 %v1214
        %v1309 = vpop.f32.mrb[0].mxu0
        %v1310 = vadd.f32 0.0, %v1309
        %v1311 = vpop.f32.mrb[0].mxu0
        %1312 = vmatprep.mubr.f32.mxu0 0.0
        %1313 = vmatmul.mubr.f32.gmra.mrb[0].mxu0 %v1215
        %v1314 = vpop.f32.mrb[0].mxu0
        %v1315 = vadd.f32 0.0, %v1314
        %v1316 = vpop.f32.mrb[0].mxu0
        %1317 = vmatprep.mubr.f32.mxu0 0.0
        %1318 = vmatmul.mubr.f32.gmra.mrb[0].mxu0 %v1216
        %v1319 = vpop.f32.mrb[0].mxu0
        %v1320 = vadd.f32 0.0, %v1319
        %v1321 = vpop.f32.mrb[0].mxu0
        %1322 = vmatprep.mubr.f32.mxu0 0.0
        %1323 = vmatmul.mubr.f32.gmra.mrb[0].mxu0 %v1217
        %v1324 = vpop.f32.mrb[0].mxu0
        %v1325 = vadd.f32 0.0, %v1324
        %v1326 = vpop.f32.mrb[0].mxu0
        %1327 = vmatprep.mubr.f32.mxu0 0.0
        %1328 = vmatmul.mubr.f32.gmra.mrb[0].mxu0 %v1218
        %v1329 = vpop.f32.mrb[0].mxu0
        %v1330 = vadd.f32 0.0, %v1329
        %v1331 = vpop.f32.mrb[0].mxu0
        %1332 = vmatprep.mubr.f32.mxu0 0.0
        %1333 = vmatmul.mubr.f32.gmra.mrb[0].mxu0 %v1219
        %v1334 = vpop.f32.mrb[0].mxu0
        %v1335 = vadd.f32 0.0, %v1334
        %v1336 = vpop.f32.mrb[0].mxu0
        %1337 = vmatprep.mubr.f32.mxu0 0.0
        %1338 = vmatmul.mubr.f32.gmra.mrb[0].mxu0 %v1220
        %v1339 = vpop.f32.mrb[0].mxu0
        %v1340 = vadd.f32 0.0, %v1339
        %v1341 = vpop.f32.mrb[0].mxu0
        %1342 = vdwg.mxu0
        %v1343 = vadd.f32 %v1204, %v1305
        %v1344 = vadd.f32 %v1205, %v1310
        %v1345 = vadd.f32 %v1206, %v1315
        %v1346 = vadd.f32 %v1207, %v1320
        %v1347 = vadd.f32 %v1208, %v1325
        %v1348 = vadd.f32 %v1209, %v1330
        %v1349 = vadd.f32 %v1210, %v1335
        %v1350 = vadd.f32 %v1211, %v1340
        %v1351 = vld [vmem:[%s1212 + $0x1] sm:$0xff]
        %v1352 = vld [vmem:[%s1212 + $0x11] sm:$0xff]
        %v1353 = vld [vmem:[%s1212 + $0x21] sm:$0xff]
        %v1354 = vld [vmem:[%s1212 + $0x31] sm:$0xff]
        %v1355 = vld [vmem:[%s1212 + $0x41] sm:$0xff]
        %v1356 = vld [vmem:[%s1212 + $0x51] sm:$0xff]
        %v1357 = vld [vmem:[%s1212 + $0x61] sm:$0xff]
        %v1358 = vld [vmem:[%s1212 + $0x71] sm:$0xff]
        %s1359 = scalar_lea.vmem [#allocation9], 896
        %v1360 = vld [vmem:[%s1359] sm:$0xff]
        %v1361 = vld [vmem:[%s1359 + $0x8] sm:$0xff]
        %v1362 = vld [vmem:[%s1359 + $0x10] sm:$0xff]
        %v1363 = vld [vmem:[%s1359 + $0x18] sm:$0xff]
        %v1364 = vld [vmem:[%s1359 + $0x20] sm:$0xff]
        %v1365 = vld [vmem:[%s1359 + $0x28] sm:$0xff]
        %v1366 = vld [vmem:[%s1359 + $0x30] sm:$0xff]
        %v1367 = vld [vmem:[%s1359 + $0x38] sm:$0xff]
        %v1368 = vld [vmem:[%s1359 + $0x40] sm:$0xff]
        %v1369 = vld [vmem:[%s1359 + $0x48] sm:$0xff]
        %v1370 = vld [vmem:[%s1359 + $0x50] sm:$0xff]
        %v1371 = vld [vmem:[%s1359 + $0x58] sm:$0xff]
        %v1372 = vld [vmem:[%s1359 + $0x60] sm:$0xff]
        %v1373 = vld [vmem:[%s1359 + $0x68] sm:$0xff]
        %v1374 = vld [vmem:[%s1359 + $0x70] sm:$0xff]
        %v1375 = vld [vmem:[%s1359 + $0x78] sm:$0xff]
        %1376 = vmatprep.subr.mxu0 0.0
        %1377 = vmatpush1.msra.mxu0 %v1360
        %1378 = vmatprep.subr.mxu0 0.0
        %1379 = vmatpush1.msra.mxu0 %v1361
        %1380 = vmatprep.subr.mxu0 0.0
        %1381 = vmatpush1.msra.mxu0 %v1362
        %1382 = vmatprep.subr.mxu0 0.0
        %1383 = vmatpush1.msra.mxu0 %v1363
        %1384 = vmatprep.subr.mxu0 0.0
        %1385 = vmatpush1.msra.mxu0 %v1364
        %1386 = vmatprep.subr.mxu0 0.0
        %1387 = vmatpush1.msra.mxu0 %v1365
        %1388 = vmatprep.subr.mxu0 0.0
        %1389 = vmatpush1.msra.mxu0 %v1366
        %1390 = vmatprep.subr.mxu0 0.0
        %1391 = vmatpush1.msra.mxu0 %v1367
        %1392 = vmatprep.subr.mxu0 0.0
        %1393 = vmatpush1.msra.mxu0 %v1368
        %1394 = vmatprep.subr.mxu0 0.0
        %1395 = vmatpush1.msra.mxu0 %v1369
        %1396 = vmatprep.subr.mxu0 0.0
        %1397 = vmatpush1.msra.mxu0 %v1370
        %1398 = vmatprep.subr.mxu0 0.0
        %1399 = vmatpush1.msra.mxu0 %v1371
        %1400 = vmatprep.subr.mxu0 0.0
        %1401 = vmatpush1.msra.mxu0 %v1372
        %1402 = vmatprep.subr.mxu0 0.0
        %1403 = vmatpush1.msra.mxu0 %v1373
        %1404 = vmatprep.subr.mxu0 0.0
        %1405 = vmatpush1.msra.mxu0 %v1374
        %1406 = vmatprep.subr.mxu0 0.0
        %1407 = vmatpush1.msra.mxu0 %v1375
        %1408 = vmatprep.subr.mxu0 0.0
        %1409 = vmatpush1.msra.mxu0 0.0
        %1410 = vmatprep.subr.mxu0 0.0
        %1411 = vmatpush1.msra.mxu0 0.0
        %1412 = vmatprep.subr.mxu0 0.0
        %1413 = vmatpush1.msra.mxu0 0.0
        %1414 = vmatprep.subr.mxu0 0.0
        %1415 = vmatpush1.msra.mxu0 0.0
        %1416 = vmatprep.subr.mxu0 0.0
        %1417 = vmatpush1.msra.mxu0 0.0
        %1418 = vmatprep.subr.mxu0 0.0
        %1419 = vmatpush1.msra.mxu0 0.0
        %1420 = vmatprep.subr.mxu0 0.0
        %1421 = vmatpush1.msra.mxu0 0.0
        %1422 = vmatprep.subr.mxu0 0.0
        %1423 = vmatpush1.msra.mxu0 0.0
        %1424 = vmatprep.subr.mxu0 0.0
        %1425 = vmatpush1.msra.mxu0 0.0
        %1426 = vmatprep.subr.mxu0 0.0
        %1427 = vmatpush1.msra.mxu0 0.0
        %1428 = vmatprep.subr.mxu0 0.0
        %1429 = vmatpush1.msra.mxu0 0.0
        %1430 = vmatprep.subr.mxu0 0.0
        %1431 = vmatpush1.msra.mxu0 0.0
        %1432 = vmatprep.subr.mxu0 0.0
        %1433 = vmatpush1.msra.mxu0 0.0
        %1434 = vmatprep.subr.mxu0 0.0
        %1435 = vmatpush1.msra.mxu0 0.0
        %1436 = vmatprep.subr.mxu0 0.0
        %1437 = vmatpush1.msra.mxu0 0.0
        %1438 = vmatprep.subr.mxu0 0.0
        %1439 = vmatpush1.msra.mxu0 0.0
        %1440 = vmatprep.mubr.f32.mxu0 0.0
        %1441 = vmatmul.mubr.f32.gmra.mrb[0].mxu0 %v1351
        %v1442 = vpop.f32.mrb[0].mxu0
        %v1443 = vadd.f32 0.0, %v1442
        %v1444 = vpop.f32.mrb[0].mxu0
        %1445 = vmatprep.mubr.f32.mxu0 0.0
        %1446 = vmatmul.mubr.f32.gmra.mrb[0].mxu0 %v1352
        %v1447 = vpop.f32.mrb[0].mxu0
        %v1448 = vadd.f32 0.0, %v1447
        %v1449 = vpop.f32.mrb[0].mxu0
        %1450 = vmatprep.mubr.f32.mxu0 0.0
        %1451 = vmatmul.mubr.f32.gmra.mrb[0].mxu0 %v1353
        %v1452 = vpop.f32.mrb[0].mxu0
        %v1453 = vadd.f32 0.0, %v1452
        %v1454 = vpop.f32.mrb[0].mxu0
        %1455 = vmatprep.mubr.f32.mxu0 0.0
        %1456 = vmatmul.mubr.f32.gmra.mrb[0].mxu0 %v1354
        %v1457 = vpop.f32.mrb[0].mxu0
        %v1458 = vadd.f32 0.0, %v1457
        %v1459 = vpop.f32.mrb[0].mxu0
        %1460 = vmatprep.mubr.f32.mxu0 0.0
        %1461 = vmatmul.mubr.f32.gmra.mrb[0].mxu0 %v1355
        %v1462 = vpop.f32.mrb[0].mxu0
        %v1463 = vadd.f32 0.0, %v1462
        %v1464 = vpop.f32.mrb[0].mxu0
        %1465 = vmatprep.mubr.f32.mxu0 0.0
        %1466 = vmatmul.mubr.f32.gmra.mrb[0].mxu0 %v1356
        %v1467 = vpop.f32.mrb[0].mxu0
        %v1468 = vadd.f32 0.0, %v1467
        %v1469 = vpop.f32.mrb[0].mxu0
        %1470 = vmatprep.mubr.f32.mxu0 0.0
        %1471 = vmatmul.mubr.f32.gmra.mrb[0].mxu0 %v1357
        %v1472 = vpop.f32.mrb[0].mxu0
        %v1473 = vadd.f32 0.0, %v1472
        %v1474 = vpop.f32.mrb[0].mxu0
        %1475 = vmatprep.mubr.f32.mxu0 0.0
        %1476 = vmatmul.mubr.f32.gmra.mrb[0].mxu0 %v1358
        %v1477 = vpop.f32.mrb[0].mxu0
        %v1478 = vadd.f32 0.0, %v1477
        %v1479 = vpop.f32.mrb[0].mxu0
        %1480 = vdwg.mxu0
        %v1481 = vadd.f32 %v1343, %v1443
        %v1482 = vadd.f32 %v1344, %v1448
        %v1483 = vadd.f32 %v1345, %v1453
        %v1484 = vadd.f32 %v1346, %v1458
        %v1485 = vadd.f32 %v1347, %v1463
        %v1486 = vadd.f32 %v1348, %v1468
        %v1487 = vadd.f32 %v1349, %v1473
        %v1488 = vadd.f32 %v1350, %v1478
        %v1489 = vld [vmem:[%s1212 + $0x2] sm:$0xff]
        %v1490 = vld [vmem:[%s1212 + $0x12] sm:$0xff]
        %v1491 = vld [vmem:[%s1212 + $0x22] sm:$0xff]
        %v1492 = vld [vmem:[%s1212 + $0x32] sm:$0xff]
        %v1493 = vld [vmem:[%s1212 + $0x42] sm:$0xff]
        %v1494 = vld [vmem:[%s1212 + $0x52] sm:$0xff]
        %v1495 = vld [vmem:[%s1212 + $0x62] sm:$0xff]
        %v1496 = vld [vmem:[%s1212 + $0x72] sm:$0xff]
        %s1497 = scalar_lea.vmem [#allocation9], 1024
        %v1498 = vld [vmem:[%s1497] sm:$0xff]
        %v1499 = vld [vmem:[%s1497 + $0x8] sm:$0xff]
        %v1500 = vld [vmem:[%s1497 + $0x10] sm:$0xff]
        %v1501 = vld [vmem:[%s1497 + $0x18] sm:$0xff]
        %v1502 = vld [vmem:[%s1497 + $0x20] sm:$0xff]
        %v1503 = vld [vmem:[%s1497 + $0x28] sm:$0xff]
        %v1504 = vld [vmem:[%s1497 + $0x30] sm:$0xff]
        %v1505 = vld [vmem:[%s1497 + $0x38] sm:$0xff]
        %v1506 = vld [vmem:[%s1497 + $0x40] sm:$0xff]
        %v1507 = vld [vmem:[%s1497 + $0x48] sm:$0xff]
        %v1508 = vld [vmem:[%s1497 + $0x50] sm:$0xff]
        %v1509 = vld [vmem:[%s1497 + $0x58] sm:$0xff]
        %v1510 = vld [vmem:[%s1497 + $0x60] sm:$0xff]
        %v1511 = vld [vmem:[%s1497 + $0x68] sm:$0xff]
        %v1512 = vld [vmem:[%s1497 + $0x70] sm:$0xff]
        %v1513 = vld [vmem:[%s1497 + $0x78] sm:$0xff]
        %1514 = vmatprep.subr.mxu0 0.0
        %1515 = vmatpush1.msra.mxu0 %v1498
        %1516 = vmatprep.subr.mxu0 0.0
        %1517 = vmatpush1.msra.mxu0 %v1499
        %1518 = vmatprep.subr.mxu0 0.0
        %1519 = vmatpush1.msra.mxu0 %v1500
        %1520 = vmatprep.subr.mxu0 0.0
        %1521 = vmatpush1.msra.mxu0 %v1501
        %1522 = vmatprep.subr.mxu0 0.0
        %1523 = vmatpush1.msra.mxu0 %v1502
        %1524 = vmatprep.subr.mxu0 0.0
        %1525 = vmatpush1.msra.mxu0 %v1503
        %1526 = vmatprep.subr.mxu0 0.0
        %1527 = vmatpush1.msra.mxu0 %v1504
        %1528 = vmatprep.subr.mxu0 0.0
        %1529 = vmatpush1.msra.mxu0 %v1505
        %1530 = vmatprep.subr.mxu0 0.0
        %1531 = vmatpush1.msra.mxu0 %v1506
        %1532 = vmatprep.subr.mxu0 0.0
        %1533 = vmatpush1.msra.mxu0 %v1507
        %1534 = vmatprep.subr.mxu0 0.0
        %1535 = vmatpush1.msra.mxu0 %v1508
        %1536 = vmatprep.subr.mxu0 0.0
        %1537 = vmatpush1.msra.mxu0 %v1509
        %1538 = vmatprep.subr.mxu0 0.0
        %1539 = vmatpush1.msra.mxu0 %v1510
        %1540 = vmatprep.subr.mxu0 0.0
        %1541 = vmatpush1.msra.mxu0 %v1511
        %1542 = vmatprep.subr.mxu0 0.0
        %1543 = vmatpush1.msra.mxu0 %v1512
        %1544 = vmatprep.subr.mxu0 0.0
        %1545 = vmatpush1.msra.mxu0 %v1513
        %1546 = vmatprep.subr.mxu0 0.0
        %1547 = vmatpush1.msra.mxu0 0.0
        %1548 = vmatprep.subr.mxu0 0.0
        %1549 = vmatpush1.msra.mxu0 0.0
        %1550 = vmatprep.subr.mxu0 0.0
        %1551 = vmatpush1.msra.mxu0 0.0
        %1552 = vmatprep.subr.mxu0 0.0
        %1553 = vmatpush1.msra.mxu0 0.0
        %1554 = vmatprep.subr.mxu0 0.0
        %1555 = vmatpush1.msra.mxu0 0.0
        %1556 = vmatprep.subr.mxu0 0.0
        %1557 = vmatpush1.msra.mxu0 0.0
        %1558 = vmatprep.subr.mxu0 0.0
        %1559 = vmatpush1.msra.mxu0 0.0
        %1560 = vmatprep.subr.mxu0 0.0
        %1561 = vmatpush1.msra.mxu0 0.0
        %1562 = vmatprep.subr.mxu0 0.0
        %1563 = vmatpush1.msra.mxu0 0.0
        %1564 = vmatprep.subr.mxu0 0.0
        %1565 = vmatpush1.msra.mxu0 0.0
        %1566 = vmatprep.subr.mxu0 0.0
        %1567 = vmatpush1.msra.mxu0 0.0
        %1568 = vmatprep.subr.mxu0 0.0
        %1569 = vmatpush1.msra.mxu0 0.0
        %1570 = vmatprep.subr.mxu0 0.0
        %1571 = vmatpush1.msra.mxu0 0.0
        %1572 = vmatprep.subr.mxu0 0.0
        %1573 = vmatpush1.msra.mxu0 0.0
        %1574 = vmatprep.subr.mxu0 0.0
        %1575 = vmatpush1.msra.mxu0 0.0
        %1576 = vmatprep.subr.mxu0 0.0
        %1577 = vmatpush1.msra.mxu0 0.0
        %1578 = vmatprep.mubr.f32.mxu0 0.0
        %1579 = vmatmul.mubr.f32.gmra.mrb[0].mxu0 %v1489
        %v1580 = vpop.f32.mrb[0].mxu0
        %v1581 = vadd.f32 0.0, %v1580
        %v1582 = vpop.f32.mrb[0].mxu0
        %1583 = vmatprep.mubr.f32.mxu0 0.0
        %1584 = vmatmul.mubr.f32.gmra.mrb[0].mxu0 %v1490
        %v1585 = vpop.f32.mrb[0].mxu0
        %v1586 = vadd.f32 0.0, %v1585
        %v1587 = vpop.f32.mrb[0].mxu0
        %1588 = vmatprep.mubr.f32.mxu0 0.0
        %1589 = vmatmul.mubr.f32.gmra.mrb[0].mxu0 %v1491
        %v1590 = vpop.f32.mrb[0].mxu0
        %v1591 = vadd.f32 0.0, %v1590
        %v1592 = vpop.f32.mrb[0].mxu0
        %1593 = vmatprep.mubr.f32.mxu0 0.0
        %1594 = vmatmul.mubr.f32.gmra.mrb[0].mxu0 %v1492
        %v1595 = vpop.f32.mrb[0].mxu0
        %v1596 = vadd.f32 0.0, %v1595
        %v1597 = vpop.f32.mrb[0].mxu0
        %1598 = vmatprep.mubr.f32.mxu0 0.0
        %1599 = vmatmul.mubr.f32.gmra.mrb[0].mxu0 %v1493
        %v1600 = vpop.f32.mrb[0].mxu0
        %v1601 = vadd.f32 0.0, %v1600
        %v1602 = vpop.f32.mrb[0].mxu0
        %1603 = vmatprep.mubr.f32.mxu0 0.0
        %1604 = vmatmul.mubr.f32.gmra.mrb[0].mxu0 %v1494
        %v1605 = vpop.f32.mrb[0].mxu0
        %v1606 = vadd.f32 0.0, %v1605
        %v1607 = vpop.f32.mrb[0].mxu0
        %1608 = vmatprep.mubr.f32.mxu0 0.0
        %1609 = vmatmul.mubr.f32.gmra.mrb[0].mxu0 %v1495
        %v1610 = vpop.f32.mrb[0].mxu0
        %v1611 = vadd.f32 0.0, %v1610
        %v1612 = vpop.f32.mrb[0].mxu0
        %1613 = vmatprep.mubr.f32.mxu0 0.0
        %1614 = vmatmul.mubr.f32.gmra.mrb[0].mxu0 %v1496
        %v1615 = vpop.f32.mrb[0].mxu0
        %v1616 = vadd.f32 0.0, %v1615
        %v1617 = vpop.f32.mrb[0].mxu0
        %1618 = vdwg.mxu0
        %v1619 = vadd.f32 %v1481, %v1581
        %v1620 = vadd.f32 %v1482, %v1586
        %v1621 = vadd.f32 %v1483, %v1591
        %v1622 = vadd.f32 %v1484, %v1596
        %v1623 = vadd.f32 %v1485, %v1601
        %v1624 = vadd.f32 %v1486, %v1606
        %v1625 = vadd.f32 %v1487, %v1611
        %v1626 = vadd.f32 %v1488, %v1616
        %1627 = vst [vmem:[%s313] sm:$0xff] %v1619
        %1628 = vst [vmem:[%s313 + $0x8] sm:$0xff] %v1620
        %1629 = vst [vmem:[%s313 + $0x10] sm:$0xff] %v1621
        %1630 = vst [vmem:[%s313 + $0x18] sm:$0xff] %v1622
        %1631 = vst [vmem:[%s313 + $0x20] sm:$0xff] %v1623
        %1632 = vst [vmem:[%s313 + $0x28] sm:$0xff] %v1624
        %1633 = vst [vmem:[%s313 + $0x30] sm:$0xff] %v1625
        %1634 = vst [vmem:[%s313 + $0x38] sm:$0xff] %v1626
        %v1635 = vadd.f32 %v1619, %v1620
        %v1636 = vadd.f32 %v1635, %v1621
        %v1637 = vadd.f32 %v1636, %v1622
        %v1638 = vadd.f32 %v1637, %v1623
        %v1639 = vadd.f32 %v1638, %v1624
        %v1640 = vadd.f32 %v1639, %v1625
        %v1641 = vadd.f32 %v1640, %v1626
        %v1642 = vrot.slane %v1641, 4
        %v1643 = vadd.f32 %v1641, %v1642
        %v1644 = vrot.slane %v1643, 2
        %v1645 = vadd.f32 %v1643, %v1644
        %v1646 = vrot.slane %v1645, 1
        %v1647 = vadd.f32 %v1645, %v1646
        %1648 = vst [vmem:[%s319] sm:$0x1] %v1647
        %v1649 = vmul.f32 %v1619, %v1619
        %v1650 = vmul.f32 %v1620, %v1620
        %v1651 = vmul.f32 %v1621, %v1621
        %v1652 = vmul.f32 %v1622, %v1622
        %v1653 = vmul.f32 %v1623, %v1623
        %v1654 = vmul.f32 %v1624, %v1624
        %v1655 = vmul.f32 %v1625, %v1625
        %v1656 = vmul.f32 %v1626, %v1626
        %v1657 = vadd.f32 %v1649, %v1650
        %v1658 = vadd.f32 %v1657, %v1651
        %v1659 = vadd.f32 %v1658, %v1652
        %v1660 = vadd.f32 %v1659, %v1653
        %v1661 = vadd.f32 %v1660, %v1654
        %v1662 = vadd.f32 %v1661, %v1655
        %v1663 = vadd.f32 %v1662, %v1656
        %v1664 = vrot.slane %v1663, 4
        %v1665 = vadd.f32 %v1663, %v1664
        %v1666 = vrot.slane %v1665, 2
        %v1667 = vadd.f32 %v1665, %v1666
        %v1668 = vrot.slane %v1667, 1
        %v1669 = vadd.f32 %v1667, %v1668
        %1670 = vst [vmem:[%s325] sm:$0x1] %v1669
        %s1671 = sand.u32 %s126, 1
        %s1672 = scalar_lea.sflag [#allocation5], %s1671
        %s1673 = sand.u32 %s126, 1
        %s1674 = smul.addr %s1673, 64
        %s1675 = scalar_lea.vmem [#allocation11], %s1674
        %s1676 = sand.u32 %s29, 1
        %s1677 = scalar_lea.sflag [#allocation13], %s1676
        %s1678 = sand.u32 %s152, 1
        %s1679 = scalar_lea.vmem [#allocation12], %s1678
        %s1680 = sand.u32 %s29, 1
        %s1681 = scalar_lea.sflag [#allocation13], %s1680
        %s1682 = sand.u32 %s178, 1
        %s1683 = scalar_lea.vmem [#allocation14], %s1682
        // Predicated region
        $region53: #{down_forward.4} parent=35 // pred_check
          %p1684 = pneg %p136
        $region54: #{down_forward.4} parent=35 // pred_check_branch
          %1686 = sbr.rel (%p1684) target = $region56
        $region55: #{down_forward.4} parent=35 // pred_region
          %s1688 = ssub.s32 1024, 1024
          %1689 = vsyncadd %s1672, %s1688
          %s1690 = smul.addr %s29, 8
          %s1691 = smul.addr %s1690, 128
          %s1692 = scalar_lea.hbm %s4, %s1691
          %s1693 = sshll.u32 %s1675, 4
          %s1694 = int_to_ptr.vmem [resolvable:$true] %s1693
          %1699 = dma.vmem_to_hbm [thread:$0]  %s1694, 1024, %s1692, %s1672, 128, 128, 8
        $region56: #{down_forward.4} parent=35 // pred_fallthru
          _
        // Predicated region
        $region57: #{down_forward.4} parent=35 // pred_check
          %p1700 = pneg %p162
        $region58: #{down_forward.4} parent=35 // pred_check_branch
          %1702 = sbr.rel (%p1700) target = $region60
        $region59: #{down_forward.4} parent=35 // pred_region
          %s1704 = ssub.s32 16, 16
          %1705 = vsyncadd %s1677, %s1704
          %s1706 = smul.addr %s29, 16
          %s1707 = scalar_lea.hbm %s5, %s1706
          %s1709 = sshll.u32 %s1679, 4
          %s1710 = int_to_ptr.vmem [resolvable:$true] %s1709
          %1712 = dma.vmem_to_hbm [thread:$0]  %s1710, 16, %s1707, %s1677
        $region60: #{down_forward.4} parent=35 // pred_fallthru
          _
        // Predicated region
        $region61: #{down_forward.4} parent=35 // pred_check
          %p1713 = pneg %p188
        $region62: #{down_forward.4} parent=35 // pred_check_branch
          %1715 = sbr.rel (%p1713) target = $region64
        $region63: #{down_forward.4} parent=35 // pred_region
          %s1717 = ssub.s32 16, 16
          %1718 = vsyncadd %s1681, %s1717
          %s1719 = smul.addr %s29, 16
          %s1720 = scalar_lea.hbm %s6, %s1719
          %s1722 = sshll.u32 %s1683, 4
          %s1723 = int_to_ptr.vmem [resolvable:$true] %s1722
          %1725 = dma.vmem_to_hbm [thread:$0]  %s1723, 16, %s1720, %s1681
        $region64: #{down_forward.4} parent=35 // pred_fallthru
          _
      $region36: #{down_forward.4} parent=5 // pred_fallthru
        _
      %p1726 = scmp.le.s32.totalorder 2, %s24
      // Predicated region
      $region65: #{down_forward.4} parent=5 // pred_check
        %p1727 = pneg %p1726
      $region66: #{down_forward.4} parent=5 // pred_check_branch
        %1729 = sbr.rel (%p1727) target = $region68
      $region67: #{down_forward.4} parent=5 // pred_region
        %s1730 = ssub.s32 %s24, 2
        // Predicated region
        $region69: #{down_forward.4} parent=67 // pred_check
          %p1731 = pneg %p142
        $region70: #{down_forward.4} parent=67 // pred_check_branch
          %1733 = sbr.rel (%p1731) target = $region72
        $region71: #{down_forward.4} parent=67 // pred_region
          %s1734 = sand.u32 %s127, 1
          %s1735 = scalar_lea.sflag [#allocation5], %s1734
          %s1736 = sand.u32 %s127, 1
          %s1737 = smul.addr %s1736, 64
          %s1738 = scalar_lea.vmem [#allocation11], %s1737
          %1739 = dma.done %s1735, 1024
        $region72: #{down_forward.4} parent=67 // pred_fallthru
          _
        // Predicated region
        $region73: #{down_forward.4} parent=67 // pred_check
          %p1740 = pneg %p168
        $region74: #{down_forward.4} parent=67 // pred_check_branch
          %1742 = sbr.rel (%p1740) target = $region76
        $region75: #{down_forward.4} parent=67 // pred_region
          %s1743 = sand.u32 %s30, 1
          %s1744 = scalar_lea.sflag [#allocation13], %s1743
          %s1745 = sand.u32 %s153, 1
          %s1746 = scalar_lea.vmem [#allocation12], %s1745
          %1747 = dma.done %s1744, 16
        $region76: #{down_forward.4} parent=67 // pred_fallthru
          _
        // Predicated region
        $region77: #{down_forward.4} parent=67 // pred_check
          %p1748 = pneg %p194
        $region78: #{down_forward.4} parent=67 // pred_check_branch
          %1750 = sbr.rel (%p1748) target = $region80
        $region79: #{down_forward.4} parent=67 // pred_region
          %s1751 = sand.u32 %s30, 1
          %s1752 = scalar_lea.sflag [#allocation13], %s1751
          %s1753 = sand.u32 %s179, 1
          %s1754 = scalar_lea.vmem [#allocation14], %s1753
          %1755 = dma.done %s1752, 16
        $region80: #{down_forward.4} parent=67 // pred_fallthru
          _
      $region68: #{down_forward.4} parent=5 // pred_fallthru
        _
    $region6: #{down_forward.4} parent=1 // loop_footer
      %s28 = sadd.s32 1, %s24
    $region7: #{down_forward.4} parent=1 // loop_footer_branch
      %23 = sbr.rel target = $region3
    $region8: #{down_forward.4} parent=1 // loop_exit
      _
    %1756 = vsyncpa [#allocation4], 1
    %s1757 = scalar_lea.sflag [#allocation4], 1
    %1758 = vsyncpa %s1757, 1
    %1759 = vsyncpa [#allocation7], 1
    %1760 = vsyncpa [#allocation10], 1
    %1761 = vsyncpa [#allocation5], 1
    %s1762 = scalar_lea.sflag [#allocation5], 1
    %1763 = vsyncpa %s1762, 1
    %1764 = vsyncpa [#allocation13], 1
    %s1765 = scalar_lea.sflag [#allocation13], 1
    %1766 = vsyncpa %s1765, 1

</llo_original>
